<compile_context>
chip_gen: v6e
topology: v6e:2x2x1
jax: 0.10.0
libtpu: 0.0.40
codegen_flags: <defaults>
</compile_context>

<pallas_src>
import numpy as np
import jax
import jax.numpy as jnp
from jax.experimental import pallas as pl
from jax.experimental.pallas import tpu as pltpu


# ----------------------------------------------------------------------------
# Parameter preparation (runs once, eagerly, outside the kernel hot path).
# ----------------------------------------------------------------------------
def _conv_as_matrix(w_oihw, H, W):
    """Lower a 3x3 'same' conv to a dense (H*W*Cin, H*W*Cout) matrix.

    Activations are NHWC-flattened per image: feature index = (i*W + j)*C + c.
    Each matrix entry is a single weight (no re-summation), so casting the
    matrix to bf16 is identical to casting the original weights.
    """
    Cout, Cin, KH, KW = w_oihw.shape
    assert (KH, KW) == (3, 3)
    HW = H * W
    T = np.zeros((HW, HW, 3, 3), np.float32)
    for oi in range(H):
        for oj in range(W):
            for kh in range(3):
                for kw in range(3):
                    i, j = oi + kh - 1, oj + kw - 1
                    if 0 <= i < H and 0 <= j < W:
                        T[oi * W + oj, i * W + j, kh, kw] = 1.0
    w_hwio = jnp.transpose(w_oihw, (2, 3, 1, 0))            # (3, 3, Cin, Cout)
    m = jnp.einsum("opab,abic->pioc", jnp.asarray(T), w_hwio)
    return m.reshape(HW * Cin, HW * Cout)


def _pool_select_matrices(H, W, C):
    """Four 0/1 matrices such that maxpool2x2(x) == max_t (x_flat @ S[t])."""
    Ho, Wo = H // 2, W // 2
    S = np.zeros((4, H * W * C, Ho * Wo * C), np.float32)
    for t, (dh, dw) in enumerate(((0, 0), (0, 1), (1, 0), (1, 1))):
        for oi in range(Ho):
            for oj in range(Wo):
                ii, jj = 2 * oi + dh, 2 * oj + dw
                for c in range(C):
                    S[t, (ii * W + jj) * C + c, (oi * Wo + oj) * C + c] = 1.0
    return jnp.asarray(S)


def _nhwc_to_nchw_perm(H, W, C):
    """perm[p_nhwc] = torch NCHW-flat index of the same feature."""
    perm = np.zeros(H * W * C, np.int32)
    for i in range(H):
        for j in range(W):
            for c in range(C):
                perm[(i * W + j) * C + c] = c * H * W + i * W + j
    return jnp.asarray(perm)


def init_params(key):
    """Parameters in PyTorch layout (Conv2d: OIHW, Linear: (out, in))."""
    ks = jax.random.split(key, 12)

    def conv_w(k, cout, cin):
        return 0.1 * jax.random.normal(k, (cout, cin, 3, 3), jnp.float32)

    def lin_w(k, dout, din):
        return 0.1 * jax.random.normal(k, (dout, din), jnp.float32)

    def bias(k, d):
        return 0.01 * jax.random.normal(k, (d,), jnp.float32)

    return dict(
        conv1_w=conv_w(ks[0], 8, 1),   conv1_b=bias(ks[1], 8),
        conv2_w=conv_w(ks[2], 8, 8),   conv2_b=bias(ks[3], 8),
        conv3_w=conv_w(ks[4], 10, 8),  conv3_b=bias(ks[5], 10),
        conv4_w=conv_w(ks[6], 16, 10), conv4_b=bias(ks[7], 16),
        fc1_w=lin_w(ks[8], 100, 64),   fc1_b=bias(ks[9], 100),
        fc2_w=lin_w(ks[10], 10, 100),  fc2_b=bias(ks[11], 10),
    )


def prepare_fused_params(params, weight_dtype=jnp.bfloat16):
    """Precompute the structured, lane-dense matrices the fused kernel uses."""
    def tiled(b, n_pix):                        # NHWC-flat bias: (pixel, channel)
        return jnp.tile(b, n_pix).astype(jnp.float32)

    # --- conv layers as dense matrices (NHWC-flat features) ------------------
    m1 = _conv_as_matrix(params["conv1_w"], 8, 8)                      # (64, 512)
    m2 = _conv_as_matrix(params["conv2_w"], 8, 8)                      # (512, 512)
    conv3_w = jnp.pad(params["conv3_w"], ((0, 6), (0, 0), (0, 0), (0, 0)))  # Cout 10->16
    conv4_w = jnp.pad(params["conv4_w"], ((0, 0), (0, 6), (0, 0), (0, 0)))  # Cin  10->16
    m3 = _conv_as_matrix(conv3_w, 4, 4)                                # (128, 256)
    m4 = _conv_as_matrix(conv4_w, 4, 4)                                # (256, 256)

    b1 = tiled(params["conv1_b"], 64)                                  # (512,)
    b2 = tiled(params["conv2_b"], 64)                                  # (512,)
    b3 = tiled(jnp.pad(params["conv3_b"], (0, 6)), 16)                 # (256,)
    b4 = tiled(params["conv4_b"], 16)                                  # (256,)

    # --- fold pool1 into conv2 (exact: selection commutes with relu/max) -----
    s1 = _pool_select_matrices(8, 8, 8)                                # (4, 512, 128)
    m2p = jnp.concatenate([m2 @ s1[t] for t in range(4)], axis=1)      # (512, 512)
    b2p = jnp.concatenate([b2 @ s1[t] for t in range(4)], axis=0)      # (512,)

    # --- fold pool2 into conv4; pad each pooled 64-wide slice to 128 lanes ---
    s2 = _pool_select_matrices(4, 4, 16)                               # (4, 256, 64)
    m4p = jnp.concatenate(
        [jnp.pad(m4 @ s2[t], ((0, 0), (0, 64))) for t in range(4)], axis=1)   # (256, 512)
    b4p = jnp.concatenate(
        [jnp.pad(b4 @ s2[t], (0, 64)) for t in range(4)], axis=0)             # (512,)

    # --- fc1: fold torch NCHW flatten via row permutation; pad to 128x128 ----
    perm = _nhwc_to_nchw_perm(2, 2, 16)
    w5 = jnp.take(params["fc1_w"].T, perm, axis=0)                     # (64, 100)
    w5 = jnp.pad(w5, ((0, 64), (0, 28)))                               # (128, 128)
    b5 = jnp.pad(params["fc1_b"], (0, 28))                             # (128,)

    # --- fc2: pad to 128x128 (lane-dense output; wrapper slices [:, :10]) ----
    w6 = jnp.pad(params["fc2_w"].T, ((0, 28), (0, 118)))               # (128, 128)
    b6 = jnp.pad(params["fc2_b"], (0, 118))                            # (128,)

    # --- input features padded 64 -> 128 (zero rows of m1) -------------------
    m1 = jnp.pad(m1, ((0, 64), (0, 0)))                                # (128, 512)

    fused = dict(
        m1=m1,   b1=b1.reshape(1, -1),
        m2p=m2p, b2p=b2p.reshape(1, -1),
        m3=m3,   b3=b3.reshape(1, -1),
        m4p=m4p, b4p=b4p.reshape(1, -1),
        w5=w5,   b5=b5.reshape(1, -1),
        w6=w6,   b6=b6.reshape(1, -1),
    )
    # bf16 weight storage: exact (entries are single weight copies); biases f32.
    for k in ("m1", "m2p", "m3", "m4p", "w5", "w6"):
        fused[k] = fused[k].astype(weight_dtype)
    return fused


# ----------------------------------------------------------------------------
# The fused kernel: entire SimpleVGG forward for one batch tile, VMEM-resident.
# ----------------------------------------------------------------------------
_FUSED_KEYS = ("m1", "b1", "m2p", "b2p", "m3", "b3", "m4p", "b4p",
               "w5", "b5", "w6", "b6")


def _fused_vgg_kernel(x_ref, m1_ref, b1_ref, m2p_ref, b2p_ref,
                      m3_ref, b3_ref, m4p_ref, b4p_ref,
                      w5_ref, b5_ref, w6_ref, b6_ref, o_ref):
    bf16 = jnp.bfloat16

    def dense(h, w_ref, b_ref, relu=True):
        # bf16 operands -> single-pass MXU matmul, f32 accumulation/epilogue.
        y = jnp.dot(h.astype(bf16), w_ref[...],
                    preferred_element_type=jnp.float32) + b_ref[...]
        return jnp.maximum(y, 0.0) if relu else y

    def conv_pool(h, w_ref, b_ref):
        # Conv with the 2x2 max-pool folded in: one matmul producing 4
        # shifted copies side by side, then a 3-way max over 128-lane-aligned
        # column slices, then relu.  Exact vs. pool(relu(conv(h))).
        y = jnp.dot(h.astype(bf16), w_ref[...],
                    preferred_element_type=jnp.float32) + b_ref[...]
        p = jnp.maximum(jnp.maximum(y[:, 0:128], y[:, 128:256]),
                        jnp.maximum(y[:, 256:384], y[:, 384:512]))
        return jnp.maximum(p, 0.0)

    h = x_ref[...]                               # (bt, 128) padded 8x8x1 input
    h = dense(h, m1_ref, b1_ref)                 # (bt, 512) conv1 + relu
    h = conv_pool(h, m2p_ref, b2p_ref)           # (bt, 128) conv2 + relu + pool1
    h = dense(h, m3_ref, b3_ref)                 # (bt, 256) conv3 + relu (Cout->16)
    h = conv_pool(h, m4p_ref, b4p_ref)           # (bt, 128) conv4 + relu + pool2
    h = dense(h, w5_ref, b5_ref)                 # (bt, 128) fc1 + relu (100 real)
    h = dense(h, w6_ref, b6_ref, relu=False)     # (bt, 128) fc2       (10 real)
    o_ref[...] = h.astype(o_ref.dtype)


def simple_vgg_forward(fused, x_nchw, *, batch_tile=128):
    """x_nchw: (N, 1, 8, 8) float32 -> (N, 10) logits."""
    N = x_nchw.shape[0]
    # NCHW flat == NHWC flat for Cin=1; pad features 64 -> 128 (lane-dense).
    x2d = x_nchw.reshape(N, 8 * 8).astype(jnp.float32)

    bt = batch_tile
    num_tiles = pl.cdiv(N, bt)
    padded = num_tiles * bt
    x2d = jnp.pad(x2d, ((0, padded - N), (0, 64)))

    consts = [fused[k] for k in _FUSED_KEYS]

    def _const_spec(a):
        zeros = (0,) * a.ndim
        return pl.BlockSpec(a.shape, lambda n, _z=zeros: _z)

    out = pl.pallas_call(
        _fused_vgg_kernel,
        out_shape=jax.ShapeDtypeStruct((padded, 128), jnp.float32),
        grid=(num_tiles,),
        in_specs=[pl.BlockSpec((bt, 128), lambda n: (n, 0))]
                 + [_const_spec(a) for a in consts],
        out_specs=pl.BlockSpec((bt, 128), lambda n: (n, 0)),
        compiler_params=pltpu.CompilerParams(
            dimension_semantics=("parallel",)),
    )(x2d, *consts)
    return out[:N, :10]


# ----------------------------------------------------------------------------
# Pure-JAX reference mirroring the kernel's numerics (bf16 matmul operands,
# f32 accumulation / bias / relu / pool) for the in-script self-check.
# ----------------------------------------------------------------------------
def reference_forward(params, x_nchw):
    bf = jnp.bfloat16

    def conv(x, w_oihw, b):
        w = jnp.transpose(w_oihw, (2, 3, 1, 0)).astype(bf)     # HWIO
        y = jax.lax.conv_general_dilated(
            x.astype(bf), w, window_strides=(1, 1), padding="SAME",
            dimension_numbers=("NHWC", "HWIO", "NHWC"),
            preferred_element_type=jnp.float32)
        return jnp.maximum(y + b, 0.0)

    def pool(x):
        return jax.lax.reduce_window(
            x, -jnp.inf, jax.lax.max, (1, 2, 2, 1), (1, 2, 2, 1), "VALID")

    x = jnp.transpose(x_nchw, (0, 2, 3, 1))                    # NHWC
    x = pool(conv(conv(x, params["conv1_w"], params["conv1_b"]),
                  params["conv2_w"], params["conv2_b"]))
    x = pool(conv(conv(x, params["conv3_w"], params["conv3_b"]),
                  params["conv4_w"], params["conv4_b"]))
    x = jnp.transpose(x, (0, 3, 1, 2)).reshape(x.shape[0], 64)  # torch .view
    h = jnp.dot(x.astype(bf), params["fc1_w"].T.astype(bf),
                preferred_element_type=jnp.float32) + params["fc1_b"]
    h = jnp.maximum(h, 0.0)
    return jnp.dot(h.astype(bf), params["fc2_w"].T.astype(bf),
                   preferred_element_type=jnp.float32) + params["fc2_b"]


if __name__ == "__main__":
    key = jax.random.PRNGKey(0)
    k_param, k_data = jax.random.split(key)
    params = init_params(k_param)
    fused = prepare_fused_params(params)

    # Batch of 256 -> two 128-image tiles (both v7x TensorCores get a tile).
    x = jax.random.normal(k_data, (256, 1, 8, 8), jnp.float32)

    fwd = jax.jit(simple_vgg_forward)
    out = jax.block_until_ready(fwd(fused, x))

    assert out.shape == (256, 10), out.shape
    assert bool(jnp.all(jnp.isfinite(out)))

    ref = jax.block_until_ready(jax.jit(reference_forward)(params, x))
    err = float(jnp.max(jnp.abs(out - ref)))
    tol = 5e-3 * (1.0 + float(jnp.max(jnp.abs(ref))))
    assert err <= tol, (err, tol)

    print("KERNEL_OK")
</pallas_src>

<mosaic_0001>
module attributes {stable_mosaic.version = 11 : i64} {
  func.func @_fused_vgg_kernel(%arg0: i32, %arg1: memref<128x128xf32, #tpu.memory_space<vmem>>, %arg2: memref<128x512xbf16, #tpu.memory_space<vmem>>, %arg3: memref<1x512xf32, #tpu.memory_space<vmem>>, %arg4: memref<512x512xbf16, #tpu.memory_space<vmem>>, %arg5: memref<1x512xf32, #tpu.memory_space<vmem>>, %arg6: memref<128x256xbf16, #tpu.memory_space<vmem>>, %arg7: memref<1x256xf32, #tpu.memory_space<vmem>>, %arg8: memref<256x512xbf16, #tpu.memory_space<vmem>>, %arg9: memref<1x512xf32, #tpu.memory_space<vmem>>, %arg10: memref<128x128xbf16, #tpu.memory_space<vmem>>, %arg11: memref<1x128xf32, #tpu.memory_space<vmem>>, %arg12: memref<128x128xbf16, #tpu.memory_space<vmem>>, %arg13: memref<1x128xf32, #tpu.memory_space<vmem>>, %arg14: memref<128x128xf32, #tpu.memory_space<vmem>>) attributes {dimension_semantics = [#tpu.dimension_semantics<parallel>], iteration_bounds = array<i64: 2>, scalar_prefetch = 0 : i64, scratch_operands = 0 : i64, tpu.core_type = #tpu.core_type<tc>, window_params = [{transform_indices = @transform_0, window_bounds = array<i64: 128, 128>}, {pipeline_mode = #tpu.pipeline_mode<synchronous>, transform_indices = @transform_1, window_bounds = array<i64: 128, 512>}, {pipeline_mode = #tpu.pipeline_mode<synchronous>, transform_indices = @transform_2, window_bounds = array<i64: 1, 512>}, {pipeline_mode = #tpu.pipeline_mode<synchronous>, transform_indices = @transform_3, window_bounds = array<i64: 512, 512>}, {pipeline_mode = #tpu.pipeline_mode<synchronous>, transform_indices = @transform_4, window_bounds = array<i64: 1, 512>}, {pipeline_mode = #tpu.pipeline_mode<synchronous>, transform_indices = @transform_5, window_bounds = array<i64: 128, 256>}, {pipeline_mode = #tpu.pipeline_mode<synchronous>, transform_indices = @transform_6, window_bounds = array<i64: 1, 256>}, {pipeline_mode = #tpu.pipeline_mode<synchronous>, transform_indices = @transform_7, window_bounds = array<i64: 256, 512>}, {pipeline_mode = #tpu.pipeline_mode<synchronous>, transform_indices = @transform_8, window_bounds = array<i64: 1, 512>}, {pipeline_mode = #tpu.pipeline_mode<synchronous>, transform_indices = @transform_9, window_bounds = array<i64: 128, 128>}, {pipeline_mode = #tpu.pipeline_mode<synchronous>, transform_indices = @transform_10, window_bounds = array<i64: 1, 128>}, {pipeline_mode = #tpu.pipeline_mode<synchronous>, transform_indices = @transform_11, window_bounds = array<i64: 128, 128>}, {pipeline_mode = #tpu.pipeline_mode<synchronous>, transform_indices = @transform_12, window_bounds = array<i64: 1, 128>}, {transform_indices = @transform_13, window_bounds = array<i64: 128, 128>}]} {
    %c0 = arith.constant 0 : index
    %c0_0 = arith.constant 0 : index
    %0 = vector.load %arg1[%c0, %c0_0] : memref<128x128xf32, #tpu.memory_space<vmem>>, vector<128x128xf32>
    %1 = arith.truncf %0 : vector<128x128xf32> to vector<128x128xbf16>
    %c0_1 = arith.constant 0 : index
    %c0_2 = arith.constant 0 : index
    %2 = vector.load %arg2[%c0_1, %c0_2] : memref<128x512xbf16, #tpu.memory_space<vmem>>, vector<128x512xbf16>
    %cst = arith.constant dense<0.000000e+00> : vector<128x512xf32>
    %3 = tpu.matmul %1, %2, %cst {dimension_numbers = #tpu.dot_dimension_numbers<[1], [0], [0], [1], [0, 0, 1, 1], [], []>} : vector<128x128xbf16>, vector<128x512xbf16>, vector<128x512xf32> -> vector<128x512xf32>
    %c0_3 = arith.constant 0 : index
    %c0_4 = arith.constant 0 : index
    %4 = vector.load %arg3[%c0_3, %c0_4] : memref<1x512xf32, #tpu.memory_space<vmem>>, vector<1x512xf32>
    %5 = vector.broadcast %4 : vector<1x512xf32> to vector<128x512xf32>
    %6 = arith.addf %3, %5 : vector<128x512xf32>
    %cst_5 = arith.constant 0.000000e+00 : f32
    %7 = vector.broadcast %cst_5 : f32 to vector<128x512xf32>
    %8 = arith.maximumf %6, %7 : vector<128x512xf32>
    %9 = arith.truncf %8 : vector<128x512xf32> to vector<128x512xbf16>
    %c0_6 = arith.constant 0 : index
    %c0_7 = arith.constant 0 : index
    %10 = vector.load %arg4[%c0_6, %c0_7] : memref<512x512xbf16, #tpu.memory_space<vmem>>, vector<512x512xbf16>
    %cst_8 = arith.constant dense<0.000000e+00> : vector<128x512xf32>
    %11 = tpu.matmul %9, %10, %cst_8 {dimension_numbers = #tpu.dot_dimension_numbers<[1], [0], [0], [1], [0, 0, 1, 1], [], []>} : vector<128x512xbf16>, vector<512x512xbf16>, vector<128x512xf32> -> vector<128x512xf32>
    %c0_9 = arith.constant 0 : index
    %c0_10 = arith.constant 0 : index
    %12 = vector.load %arg5[%c0_9, %c0_10] : memref<1x512xf32, #tpu.memory_space<vmem>>, vector<1x512xf32>
    %13 = vector.broadcast %12 : vector<1x512xf32> to vector<128x512xf32>
    %14 = arith.addf %11, %13 : vector<128x512xf32>
    %15 = vector.extract_strided_slice %14 {offsets = [0, 0], sizes = [128, 128], strides = [1, 1]} : vector<128x512xf32> to vector<128x128xf32>
    %16 = vector.extract_strided_slice %14 {offsets = [0, 128], sizes = [128, 128], strides = [1, 1]} : vector<128x512xf32> to vector<128x128xf32>
    %17 = arith.maximumf %15, %16 : vector<128x128xf32>
    %18 = vector.extract_strided_slice %14 {offsets = [0, 256], sizes = [128, 128], strides = [1, 1]} : vector<128x512xf32> to vector<128x128xf32>
    %19 = vector.extract_strided_slice %14 {offsets = [0, 384], sizes = [128, 128], strides = [1, 1]} : vector<128x512xf32> to vector<128x128xf32>
    %20 = arith.maximumf %18, %19 : vector<128x128xf32>
    %21 = arith.maximumf %17, %20 : vector<128x128xf32>
    %cst_11 = arith.constant 0.000000e+00 : f32
    %22 = vector.broadcast %cst_11 : f32 to vector<128x128xf32>
    %23 = arith.maximumf %21, %22 : vector<128x128xf32>
    %24 = arith.truncf %23 : vector<128x128xf32> to vector<128x128xbf16>
    %c0_12 = arith.constant 0 : index
    %c0_13 = arith.constant 0 : index
    %25 = vector.load %arg6[%c0_12, %c0_13] : memref<128x256xbf16, #tpu.memory_space<vmem>>, vector<128x256xbf16>
    %cst_14 = arith.constant dense<0.000000e+00> : vector<128x256xf32>
    %26 = tpu.matmul %24, %25, %cst_14 {dimension_numbers = #tpu.dot_dimension_numbers<[1], [0], [0], [1], [0, 0, 1, 1], [], []>} : vector<128x128xbf16>, vector<128x256xbf16>, vector<128x256xf32> -> vector<128x256xf32>
    %c0_15 = arith.constant 0 : index
    %c0_16 = arith.constant 0 : index
    %27 = vector.load %arg7[%c0_15, %c0_16] : memref<1x256xf32, #tpu.memory_space<vmem>>, vector<1x256xf32>
    %28 = vector.broadcast %27 : vector<1x256xf32> to vector<128x256xf32>
    %29 = arith.addf %26, %28 : vector<128x256xf32>
    %cst_17 = arith.constant 0.000000e+00 : f32
    %30 = vector.broadcast %cst_17 : f32 to vector<128x256xf32>
    %31 = arith.maximumf %29, %30 : vector<128x256xf32>
    %32 = arith.truncf %31 : vector<128x256xf32> to vector<128x256xbf16>
    %c0_18 = arith.constant 0 : index
    %c0_19 = arith.constant 0 : index
    %33 = vector.load %arg8[%c0_18, %c0_19] : memref<256x512xbf16, #tpu.memory_space<vmem>>, vector<256x512xbf16>
    %cst_20 = arith.constant dense<0.000000e+00> : vector<128x512xf32>
    %34 = tpu.matmul %32, %33, %cst_20 {dimension_numbers = #tpu.dot_dimension_numbers<[1], [0], [0], [1], [0, 0, 1, 1], [], []>} : vector<128x256xbf16>, vector<256x512xbf16>, vector<128x512xf32> -> vector<128x512xf32>
    %c0_21 = arith.constant 0 : index
    %c0_22 = arith.constant 0 : index
    %35 = vector.load %arg9[%c0_21, %c0_22] : memref<1x512xf32, #tpu.memory_space<vmem>>, vector<1x512xf32>
    %36 = vector.broadcast %35 : vector<1x512xf32> to vector<128x512xf32>
    %37 = arith.addf %34, %36 : vector<128x512xf32>
    %38 = vector.extract_strided_slice %37 {offsets = [0, 0], sizes = [128, 128], strides = [1, 1]} : vector<128x512xf32> to vector<128x128xf32>
    %39 = vector.extract_strided_slice %37 {offsets = [0, 128], sizes = [128, 128], strides = [1, 1]} : vector<128x512xf32> to vector<128x128xf32>
    %40 = arith.maximumf %38, %39 : vector<128x128xf32>
    %41 = vector.extract_strided_slice %37 {offsets = [0, 256], sizes = [128, 128], strides = [1, 1]} : vector<128x512xf32> to vector<128x128xf32>
    %42 = vector.extract_strided_slice %37 {offsets = [0, 384], sizes = [128, 128], strides = [1, 1]} : vector<128x512xf32> to vector<128x128xf32>
    %43 = arith.maximumf %41, %42 : vector<128x128xf32>
    %44 = arith.maximumf %40, %43 : vector<128x128xf32>
    %cst_23 = arith.constant 0.000000e+00 : f32
    %45 = vector.broadcast %cst_23 : f32 to vector<128x128xf32>
    %46 = arith.maximumf %44, %45 : vector<128x128xf32>
    %47 = arith.truncf %46 : vector<128x128xf32> to vector<128x128xbf16>
    %c0_24 = arith.constant 0 : index
    %c0_25 = arith.constant 0 : index
    %48 = vector.load %arg10[%c0_24, %c0_25] : memref<128x128xbf16, #tpu.memory_space<vmem>>, vector<128x128xbf16>
    %cst_26 = arith.constant dense<0.000000e+00> : vector<128x128xf32>
    %49 = tpu.matmul %47, %48, %cst_26 {dimension_numbers = #tpu.dot_dimension_numbers<[1], [0], [0], [1], [0, 0, 1, 1], [], []>} : vector<128x128xbf16>, vector<128x128xbf16>, vector<128x128xf32> -> vector<128x128xf32>
    %c0_27 = arith.constant 0 : index
    %c0_28 = arith.constant 0 : index
    %50 = vector.load %arg11[%c0_27, %c0_28] : memref<1x128xf32, #tpu.memory_space<vmem>>, vector<1x128xf32>
    %51 = vector.broadcast %50 : vector<1x128xf32> to vector<128x128xf32>
    %52 = arith.addf %49, %51 : vector<128x128xf32>
    %cst_29 = arith.constant 0.000000e+00 : f32
    %53 = vector.broadcast %cst_29 : f32 to vector<128x128xf32>
    %54 = arith.maximumf %52, %53 : vector<128x128xf32>
    %55 = arith.truncf %54 : vector<128x128xf32> to vector<128x128xbf16>
    %c0_30 = arith.constant 0 : index
    %c0_31 = arith.constant 0 : index
    %56 = vector.load %arg12[%c0_30, %c0_31] : memref<128x128xbf16, #tpu.memory_space<vmem>>, vector<128x128xbf16>
    %cst_32 = arith.constant dense<0.000000e+00> : vector<128x128xf32>
    %57 = tpu.matmul %55, %56, %cst_32 {dimension_numbers = #tpu.dot_dimension_numbers<[1], [0], [0], [1], [0, 0, 1, 1], [], []>} : vector<128x128xbf16>, vector<128x128xbf16>, vector<128x128xf32> -> vector<128x128xf32>
    %c0_33 = arith.constant 0 : index
    %c0_34 = arith.constant 0 : index
    %58 = vector.load %arg13[%c0_33, %c0_34] : memref<1x128xf32, #tpu.memory_space<vmem>>, vector<1x128xf32>
    %59 = vector.broadcast %58 : vector<1x128xf32> to vector<128x128xf32>
    %60 = arith.addf %57, %59 : vector<128x128xf32>
    %c0_35 = arith.constant 0 : index
    %c0_36 = arith.constant 0 : index
    %61 = vector.load %arg14[%c0_35, %c0_36] : memref<128x128xf32, #tpu.memory_space<vmem>>, vector<128x128xf32>
    tpu.vector_store %arg14[%c0_35, %c0_36], %60 {strides = array<i32>} : memref<128x128xf32, #tpu.memory_space<vmem>>, vector<128x128xf32>,
    return
  }
  func.func @transform_0(%arg0: i32) -> (i32, i32) {
    %c0_i32 = arith.constant 0 : i32
    %c0_i32_0 = arith.constant 0 : i32
    return %arg0, %c0_i32 : i32, i32
  }
  func.func @transform_1(%arg0: i32) -> (i32, i32) {
    %c0_i32 = arith.constant 0 : i32
    %c0_i32_0 = arith.constant 0 : i32
    %c0_i32_1 = arith.constant 0 : i32
    return %c0_i32, %c0_i32_0 : i32, i32
  }
  func.func @transform_2(%arg0: i32) -> (i32, i32) {
    %c0_i32 = arith.constant 0 : i32
    %c0_i32_0 = arith.constant 0 : i32
    %c0_i32_1 = arith.constant 0 : i32
    return %c0_i32, %c0_i32_0 : i32, i32
  }
  func.func @transform_3(%arg0: i32) -> (i32, i32) {
    %c0_i32 = arith.constant 0 : i32
    %c0_i32_0 = arith.constant 0 : i32
    %c0_i32_1 = arith.constant 0 : i32
    return %c0_i32, %c0_i32_0 : i32, i32
  }
  func.func @transform_4(%arg0: i32) -> (i32, i32) {
    %c0_i32 = arith.constant 0 : i32
    %c0_i32_0 = arith.constant 0 : i32
    %c0_i32_1 = arith.constant 0 : i32
    return %c0_i32, %c0_i32_0 : i32, i32
  }
  func.func @transform_5(%arg0: i32) -> (i32, i32) {
    %c0_i32 = arith.constant 0 : i32
    %c0_i32_0 = arith.constant 0 : i32
    %c0_i32_1 = arith.constant 0 : i32
    return %c0_i32, %c0_i32_0 : i32, i32
  }
  func.func @transform_6(%arg0: i32) -> (i32, i32) {
    %c0_i32 = arith.constant 0 : i32
    %c0_i32_0 = arith.constant 0 : i32
    %c0_i32_1 = arith.constant 0 : i32
    return %c0_i32, %c0_i32_0 : i32, i32
  }
  func.func @transform_7(%arg0: i32) -> (i32, i32) {
    %c0_i32 = arith.constant 0 : i32
    %c0_i32_0 = arith.constant 0 : i32
    %c0_i32_1 = arith.constant 0 : i32
    return %c0_i32, %c0_i32_0 : i32, i32
  }
  func.func @transform_8(%arg0: i32) -> (i32, i32) {
    %c0_i32 = arith.constant 0 : i32
    %c0_i32_0 = arith.constant 0 : i32
    %c0_i32_1 = arith.constant 0 : i32
    return %c0_i32, %c0_i32_0 : i32, i32
  }
  func.func @transform_9(%arg0: i32) -> (i32, i32) {
    %c0_i32 = arith.constant 0 : i32
    %c0_i32_0 = arith.constant 0 : i32
    %c0_i32_1 = arith.constant 0 : i32
    return %c0_i32, %c0_i32_0 : i32, i32
  }
  func.func @transform_10(%arg0: i32) -> (i32, i32) {
    %c0_i32 = arith.constant 0 : i32
    %c0_i32_0 = arith.constant 0 : i32
    %c0_i32_1 = arith.constant 0 : i32
    return %c0_i32, %c0_i32_0 : i32, i32
  }
  func.func @transform_11(%arg0: i32) -> (i32, i32) {
    %c0_i32 = arith.constant 0 : i32
    %c0_i32_0 = arith.constant 0 : i32
    %c0_i32_1 = arith.constant 0 : i32
    return %c0_i32, %c0_i32_0 : i32, i32
  }
  func.func @transform_12(%arg0: i32) -> (i32, i32) {
    %c0_i32 = arith.constant 0 : i32
    %c0_i32_0 = arith.constant 0 : i32
    %c0_i32_1 = arith.constant 0 : i32
    return %c0_i32, %c0_i32_0 : i32, i32
  }
  func.func @transform_13(%arg0: i32) -> (i32, i32) {
    %c0_i32 = arith.constant 0 : i32
    %c0_i32_0 = arith.constant 0 : i32
    return %arg0, %c0_i32 : i32, i32
  }
}

</mosaic_0001>

<llo_original>
// kernel: simple_vgg_forward.1
$region0: #{simple_vgg_forward.1}
  #allocation0 [shape = 'u32[]', space=smem, size = 0x4, offset = 0x4, fixed_abs, tag = 'smem constant byte address 0x4 - core index']
  #allocation1 [shape = 'u32[144,128]{1,0:T(1,128)}', space=vmem, size = 0x12000, scoped, tag = 'internal scratch']
  %s0 = inlined_call_operand.vmem [shape: f32[256,128], index: 0, kind: input, shape index: {}]
  %s1 = inlined_call_operand.vmem [shape: bf16[128,512], index: 1, kind: input, shape index: {}]
  %s2 = inlined_call_operand.vmem [shape: f32[1,512], index: 2, kind: input, shape index: {}]
  %s3 = inlined_call_operand.hbm [shape: bf16[512,512], index: 3, kind: input, shape index: {}]
  %s4 = inlined_call_operand.vmem [shape: f32[1,512], index: 4, kind: input, shape index: {}]
  %s5 = inlined_call_operand.vmem [shape: bf16[128,256], index: 5, kind: input, shape index: {}]
  %s6 = inlined_call_operand.vmem [shape: f32[1,256], index: 6, kind: input, shape index: {}]
  %s7 = inlined_call_operand.vmem [shape: bf16[256,512], index: 7, kind: input, shape index: {}]
  %s8 = inlined_call_operand.vmem [shape: f32[1,512], index: 8, kind: input, shape index: {}]
  %s9 = inlined_call_operand.hbm [shape: bf16[128,128], index: 9, kind: input, shape index: {}]
  %s10 = inlined_call_operand.vmem [shape: f32[1,128], index: 10, kind: input, shape index: {}]
  %s11 = inlined_call_operand.hbm [shape: bf16[128,128], index: 11, kind: input, shape index: {}]
  %s12 = inlined_call_operand.vmem [shape: f32[1,128], index: 12, kind: input, shape index: {}]
  %s13 = inlined_call_operand.vmem [shape: f32[256,128], index: 13, kind: output, shape index: {}]
  %s14 = sld [smem:[#allocation0]]
  $region97: #{simple_vgg_forward.1} parent=0
    _
  %s16 = ssub.s32 1, %s14
  %s17 = scalar_select 0, %s16, %s14
  $region1: #{simple_vgg_forward.1} parent=0
    #allocation2 [shape = 'u8[524288]{0}', space=vmem, size = 0x80000, scoped, tag = 'input window, operand 3, single buffered']
    #allocation3 [shape = 's32[2]{0}', space=sflag, size = 0x8, scoped, tag = 'scoped memory for simple_vgg_forward.1']
    #allocation4 [shape = 'u8[32768]{0}', space=vmem, size = 0x8000, scoped, tag = 'input window, operand 9, single buffered']
    #allocation5 [shape = 's32[1]{0}', space=sflag, size = 0x4, scoped, tag = 'scoped memory for simple_vgg_forward.1']
    #allocation6 [shape = 'u8[32768]{0}', space=vmem, size = 0x8000, scoped, tag = 'input window, operand 11, single buffered']
    %18 = vsyncpa [#allocation3], 0
    %19 = vsyncpa [#allocation5], 0
    loop: start=0, step=1, limit=4
    $region2: #{simple_vgg_forward.1} parent=1 // loop_pre_header
      _
    $region3: #{simple_vgg_forward.1} parent=1 // loop_header
      %s21 = sphi 0, %s25
      %p22 = scmp.ge.s32.totalorder %s21, 4
      %s31 = sphi 0, %s33
      %s34 = sphi 0, %s31
      %s35 = sphi 0, %s34
      %s51 = sphi 0, %s35
      %s55 = sphi 0, %s55
      %s57 = sphi 0, %s55
      %s58 = sphi 0, %s57
      %s72 = sphi 0, %s58
      %s76 = sphi 0, %s76
      %s78 = sphi 0, %s76
      %s79 = sphi 0, %s78
      %s93 = sphi 0, %s79
      %s97 = sphi 0, %s97
      %s99 = sphi 0, %s97
      %s100 = sphi 0, %s99
      %s114 = sphi 0, %s100
      %s118 = sphi 0, %s118
      %s120 = sphi 0, %s118
      %s121 = sphi 0, %s120
      %s135 = sphi 0, %s121
      %s139 = sphi 0, %s139
      %s141 = sphi 0, %s139
      %s142 = sphi 0, %s141
      %s156 = sphi 0, %s142
      %s160 = sphi 0, %s160
      %s162 = sphi 0, %s160
      %s163 = sphi 0, %s162
      %s177 = sphi 0, %s163
      %s181 = sphi 0, %s181
      %s183 = sphi 0, %s181
      %s184 = sphi 0, %s183
      %s198 = sphi 0, %s184
      %s202 = sphi 0, %s202
      %s204 = sphi 0, %s202
      %s205 = sphi 0, %s204
      %s219 = sphi 0, %s205
      %s223 = sphi 0, %s223
      %s225 = sphi 0, %s223
      %s226 = sphi 0, %s225
      %s240 = sphi 0, %s226
      %s244 = sphi 0, %s244
      %s246 = sphi 0, %s244
      %s247 = sphi 0, %s246
      %s261 = sphi 0, %s247
      %s265 = sphi 0, %s265
      %s267 = sphi 0, %s265
      %s268 = sphi 0, %s267
      %s282 = sphi 0, %s268
      %s286 = sphi 0, %s286
      %s288 = sphi 0, %s286
      %s289 = sphi 0, %s288
      %s303 = sphi 0, %s289
      %s309 = sphi 0, %s311
      %s312 = sphi 0, %s309
      %s313 = sphi 0, %s312
      %s329 = sphi 0, %s313
    $region4: #{simple_vgg_forward.1} parent=1 // loop_header_branch
      %24 = sbr.rel (%p22) target = $region8
    $region5: #{simple_vgg_forward.1} parent=1 // loop_body
      %s26 = ssub.s32 %s21, 1
      %s27 = ssub.s32 %s21, 2
      %s28 = sadd.s32 %s21, 1
      %s29 = ssub.s32 %s21, %s28
      %p30 = scmp.eq.s32.totalorder %s29, 0
      %s32 = sadd.s32 %s31, 1
      %s33 = scalar_select %p30, %s31, %s32
      %p36 = pneg %p30
      %p37 = scmp.eq.s32.totalorder %s21, 1
      %p38 = por %p36, %p37
      %p39 = scmp.ne.s32.totalorder %s31, %s34
      %p40 = scmp.eq.s32.totalorder %s21, 0
      %p41 = por %p39, %p40
      %p42 = scmp.ne.s32.totalorder %s31, %s34
      %p43 = scmp.eq.s32.totalorder %s26, 1
      %p44 = por %p42, %p43
      %p45 = scmp.ne.s32.totalorder %s34, %s35
      %p46 = scmp.eq.s32.totalorder %s26, 0
      %p47 = por %p45, %p46
      %p48 = scmp.ne.s32.totalorder %s34, %s35
      %p49 = scmp.eq.s32.totalorder %s27, 1
      %p50 = por %p48, %p49
      %p52 = scmp.ne.s32.totalorder %s35, %s51
      %p53 = scmp.eq.s32.totalorder %s27, 0
      %p54 = por %p52, %p53
      %s56 = sadd.s32 %s55, 1
      %p59 = scmp.eq.s32.totalorder %s21, 1
      %p60 = scmp.ne.s32.totalorder %s55, %s57
      %p61 = scmp.eq.s32.totalorder %s21, 0
      %p62 = por %p60, %p61
      %p63 = scmp.ne.s32.totalorder %s55, %s57
      %p64 = scmp.eq.s32.totalorder %s26, 1
      %p65 = por %p63, %p64
      %p66 = scmp.ne.s32.totalorder %s57, %s58
      %p67 = scmp.eq.s32.totalorder %s26, 0
      %p68 = por %p66, %p67
      %p69 = scmp.ne.s32.totalorder %s57, %s58
      %p70 = scmp.eq.s32.totalorder %s27, 1
      %p71 = por %p69, %p70
      %p73 = scmp.ne.s32.totalorder %s58, %s72
      %p74 = scmp.eq.s32.totalorder %s27, 0
      %p75 = por %p73, %p74
      %s77 = sadd.s32 %s76, 1
      %p80 = scmp.eq.s32.totalorder %s21, 1
      %p81 = scmp.ne.s32.totalorder %s76, %s78
      %p82 = scmp.eq.s32.totalorder %s21, 0
      %p83 = por %p81, %p82
      %p84 = scmp.ne.s32.totalorder %s76, %s78
      %p85 = scmp.eq.s32.totalorder %s26, 1
      %p86 = por %p84, %p85
      %p87 = scmp.ne.s32.totalorder %s78, %s79
      %p88 = scmp.eq.s32.totalorder %s26, 0
      %p89 = por %p87, %p88
      %p90 = scmp.ne.s32.totalorder %s78, %s79
      %p91 = scmp.eq.s32.totalorder %s27, 1
      %p92 = por %p90, %p91
      %p94 = scmp.ne.s32.totalorder %s79, %s93
      %p95 = scmp.eq.s32.totalorder %s27, 0
      %p96 = por %p94, %p95
      %s98 = sadd.s32 %s97, 1
      %p101 = scmp.eq.s32.totalorder %s21, 1
      %p102 = scmp.ne.s32.totalorder %s97, %s99
      %p103 = scmp.eq.s32.totalorder %s21, 0
      %p104 = por %p102, %p103
      %p105 = scmp.ne.s32.totalorder %s97, %s99
      %p106 = scmp.eq.s32.totalorder %s26, 1
      %p107 = por %p105, %p106
      %p108 = scmp.ne.s32.totalorder %s99, %s100
      %p109 = scmp.eq.s32.totalorder %s26, 0
      %p110 = por %p108, %p109
      %p111 = scmp.ne.s32.totalorder %s99, %s100
      %p112 = scmp.eq.s32.totalorder %s27, 1
      %p113 = por %p111, %p112
      %p115 = scmp.ne.s32.totalorder %s100, %s114
      %p116 = scmp.eq.s32.totalorder %s27, 0
      %p117 = por %p115, %p116
      %s119 = sadd.s32 %s118, 1
      %p122 = scmp.eq.s32.totalorder %s21, 1
      %p123 = scmp.ne.s32.totalorder %s118, %s120
      %p124 = scmp.eq.s32.totalorder %s21, 0
      %p125 = por %p123, %p124
      %p126 = scmp.ne.s32.totalorder %s118, %s120
      %p127 = scmp.eq.s32.totalorder %s26, 1
      %p128 = por %p126, %p127
      %p129 = scmp.ne.s32.totalorder %s120, %s121
      %p130 = scmp.eq.s32.totalorder %s26, 0
      %p131 = por %p129, %p130
      %p132 = scmp.ne.s32.totalorder %s120, %s121
      %p133 = scmp.eq.s32.totalorder %s27, 1
      %p134 = por %p132, %p133
      %p136 = scmp.ne.s32.totalorder %s121, %s135
      %p137 = scmp.eq.s32.totalorder %s27, 0
      %p138 = por %p136, %p137
      %s140 = sadd.s32 %s139, 1
      %p143 = scmp.eq.s32.totalorder %s21, 1
      %p144 = scmp.ne.s32.totalorder %s139, %s141
      %p145 = scmp.eq.s32.totalorder %s21, 0
      %p146 = por %p144, %p145
      %p147 = scmp.ne.s32.totalorder %s139, %s141
      %p148 = scmp.eq.s32.totalorder %s26, 1
      %p149 = por %p147, %p148
      %p150 = scmp.ne.s32.totalorder %s141, %s142
      %p151 = scmp.eq.s32.totalorder %s26, 0
      %p152 = por %p150, %p151
      %p153 = scmp.ne.s32.totalorder %s141, %s142
      %p154 = scmp.eq.s32.totalorder %s27, 1
      %p155 = por %p153, %p154
      %p157 = scmp.ne.s32.totalorder %s142, %s156
      %p158 = scmp.eq.s32.totalorder %s27, 0
      %p159 = por %p157, %p158
      %s161 = sadd.s32 %s160, 1
      %p164 = scmp.eq.s32.totalorder %s21, 1
      %p165 = scmp.ne.s32.totalorder %s160, %s162
      %p166 = scmp.eq.s32.totalorder %s21, 0
      %p167 = por %p165, %p166
      %p168 = scmp.ne.s32.totalorder %s160, %s162
      %p169 = scmp.eq.s32.totalorder %s26, 1
      %p170 = por %p168, %p169
      %p171 = scmp.ne.s32.totalorder %s162, %s163
      %p172 = scmp.eq.s32.totalorder %s26, 0
      %p173 = por %p171, %p172
      %p174 = scmp.ne.s32.totalorder %s162, %s163
      %p175 = scmp.eq.s32.totalorder %s27, 1
      %p176 = por %p174, %p175
      %p178 = scmp.ne.s32.totalorder %s163, %s177
      %p179 = scmp.eq.s32.totalorder %s27, 0
      %p180 = por %p178, %p179
      %s182 = sadd.s32 %s181, 1
      %p185 = scmp.eq.s32.totalorder %s21, 1
      %p186 = scmp.ne.s32.totalorder %s181, %s183
      %p187 = scmp.eq.s32.totalorder %s21, 0
      %p188 = por %p186, %p187
      %p189 = scmp.ne.s32.totalorder %s181, %s183
      %p190 = scmp.eq.s32.totalorder %s26, 1
      %p191 = por %p189, %p190
      %p192 = scmp.ne.s32.totalorder %s183, %s184
      %p193 = scmp.eq.s32.totalorder %s26, 0
      %p194 = por %p192, %p193
      %p195 = scmp.ne.s32.totalorder %s183, %s184
      %p196 = scmp.eq.s32.totalorder %s27, 1
      %p197 = por %p195, %p196
      %p199 = scmp.ne.s32.totalorder %s184, %s198
      %p200 = scmp.eq.s32.totalorder %s27, 0
      %p201 = por %p199, %p200
      %s203 = sadd.s32 %s202, 1
      %p206 = scmp.eq.s32.totalorder %s21, 1
      %p207 = scmp.ne.s32.totalorder %s202, %s204
      %p208 = scmp.eq.s32.totalorder %s21, 0
      %p209 = por %p207, %p208
      %p210 = scmp.ne.s32.totalorder %s202, %s204
      %p211 = scmp.eq.s32.totalorder %s26, 1
      %p212 = por %p210, %p211
      %p213 = scmp.ne.s32.totalorder %s204, %s205
      %p214 = scmp.eq.s32.totalorder %s26, 0
      %p215 = por %p213, %p214
      %p216 = scmp.ne.s32.totalorder %s204, %s205
      %p217 = scmp.eq.s32.totalorder %s27, 1
      %p218 = por %p216, %p217
      %p220 = scmp.ne.s32.totalorder %s205, %s219
      %p221 = scmp.eq.s32.totalorder %s27, 0
      %p222 = por %p220, %p221
      %s224 = sadd.s32 %s223, 1
      %p227 = scmp.eq.s32.totalorder %s21, 1
      %p228 = scmp.ne.s32.totalorder %s223, %s225
      %p229 = scmp.eq.s32.totalorder %s21, 0
      %p230 = por %p228, %p229
      %p231 = scmp.ne.s32.totalorder %s223, %s225
      %p232 = scmp.eq.s32.totalorder %s26, 1
      %p233 = por %p231, %p232
      %p234 = scmp.ne.s32.totalorder %s225, %s226
      %p235 = scmp.eq.s32.totalorder %s26, 0
      %p236 = por %p234, %p235
      %p237 = scmp.ne.s32.totalorder %s225, %s226
      %p238 = scmp.eq.s32.totalorder %s27, 1
      %p239 = por %p237, %p238
      %p241 = scmp.ne.s32.totalorder %s226, %s240
      %p242 = scmp.eq.s32.totalorder %s27, 0
      %p243 = por %p241, %p242
      %s245 = sadd.s32 %s244, 1
      %p248 = scmp.eq.s32.totalorder %s21, 1
      %p249 = scmp.ne.s32.totalorder %s244, %s246
      %p250 = scmp.eq.s32.totalorder %s21, 0
      %p251 = por %p249, %p250
      %p252 = scmp.ne.s32.totalorder %s244, %s246
      %p253 = scmp.eq.s32.totalorder %s26, 1
      %p254 = por %p252, %p253
      %p255 = scmp.ne.s32.totalorder %s246, %s247
      %p256 = scmp.eq.s32.totalorder %s26, 0
      %p257 = por %p255, %p256
      %p258 = scmp.ne.s32.totalorder %s246, %s247
      %p259 = scmp.eq.s32.totalorder %s27, 1
      %p260 = por %p258, %p259
      %p262 = scmp.ne.s32.totalorder %s247, %s261
      %p263 = scmp.eq.s32.totalorder %s27, 0
      %p264 = por %p262, %p263
      %s266 = sadd.s32 %s265, 1
      %p269 = scmp.eq.s32.totalorder %s21, 1
      %p270 = scmp.ne.s32.totalorder %s265, %s267
      %p271 = scmp.eq.s32.totalorder %s21, 0
      %p272 = por %p270, %p271
      %p273 = scmp.ne.s32.totalorder %s265, %s267
      %p274 = scmp.eq.s32.totalorder %s26, 1
      %p275 = por %p273, %p274
      %p276 = scmp.ne.s32.totalorder %s267, %s268
      %p277 = scmp.eq.s32.totalorder %s26, 0
      %p278 = por %p276, %p277
      %p279 = scmp.ne.s32.totalorder %s267, %s268
      %p280 = scmp.eq.s32.totalorder %s27, 1
      %p281 = por %p279, %p280
      %p283 = scmp.ne.s32.totalorder %s268, %s282
      %p284 = scmp.eq.s32.totalorder %s27, 0
      %p285 = por %p283, %p284
      %s287 = sadd.s32 %s286, 1
      %p290 = scmp.eq.s32.totalorder %s21, 1
      %p291 = scmp.ne.s32.totalorder %s286, %s288
      %p292 = scmp.eq.s32.totalorder %s21, 0
      %p293 = por %p291, %p292
      %p294 = scmp.ne.s32.totalorder %s286, %s288
      %p295 = scmp.eq.s32.totalorder %s26, 1
      %p296 = por %p294, %p295
      %p297 = scmp.ne.s32.totalorder %s288, %s289
      %p298 = scmp.eq.s32.totalorder %s26, 0
      %p299 = por %p297, %p298
      %p300 = scmp.ne.s32.totalorder %s288, %s289
      %p301 = scmp.eq.s32.totalorder %s27, 1
      %p302 = por %p300, %p301
      %p304 = scmp.ne.s32.totalorder %s289, %s303
      %p305 = scmp.eq.s32.totalorder %s27, 0
      %p306 = por %p304, %p305
      %s307 = ssub.s32 %s21, %s28
      %p308 = scmp.eq.s32.totalorder %s307, 0
      %s310 = sadd.s32 %s309, 1
      %s311 = scalar_select %p308, %s309, %s310
      %p314 = pneg %p308
      %p315 = scmp.eq.s32.totalorder %s21, 1
      %p316 = por %p314, %p315
      %p317 = scmp.ne.s32.totalorder %s309, %s312
      %p318 = scmp.eq.s32.totalorder %s21, 0
      %p319 = por %p317, %p318
      %p320 = scmp.ne.s32.totalorder %s309, %s312
      %p321 = scmp.eq.s32.totalorder %s26, 1
      %p322 = por %p320, %p321
      %p323 = scmp.ne.s32.totalorder %s312, %s313
      %p324 = scmp.eq.s32.totalorder %s26, 0
      %p325 = por %p323, %p324
      %p326 = scmp.ne.s32.totalorder %s312, %s313
      %p327 = scmp.eq.s32.totalorder %s27, 1
      %p328 = por %p326, %p327
      %p330 = scmp.ne.s32.totalorder %s313, %s329
      %p331 = scmp.eq.s32.totalorder %s27, 0
      %p332 = por %p330, %p331
      %p333 = scmp.le.s32.totalorder 1, %s21
      %p334 = scmp.lt.s32.totalorder %s21, 3
      %p335 = pnand %p333, %p334
      %p336 = pneg %p335
      // Predicated region
      $region9: #{simple_vgg_forward.1} parent=5 // pred_check
        _
      $region10: #{simple_vgg_forward.1} parent=5 // pred_check_branch
        %338 = sbr.rel (%p335) target = $region12
      $region11: #{simple_vgg_forward.1} parent=5 // pred_region
        %s339 = ssub.s32 %s21, 1
        // Predicated region
        $region13: #{simple_vgg_forward.1} parent=11 // pred_check
          %p340 = pneg %p68
        $region14: #{simple_vgg_forward.1} parent=11 // pred_check_branch
          %342 = sbr.rel (%p340) target = $region16
        $region15: #{simple_vgg_forward.1} parent=11 // pred_region
          _
        $region16: #{simple_vgg_forward.1} parent=11 // pred_fallthru
          _
        // Predicated region
        $region17: #{simple_vgg_forward.1} parent=11 // pred_check
          %p343 = pneg %p89
        $region18: #{simple_vgg_forward.1} parent=11 // pred_check_branch
          %345 = sbr.rel (%p343) target = $region20
        $region19: #{simple_vgg_forward.1} parent=11 // pred_region
          _
        $region20: #{simple_vgg_forward.1} parent=11 // pred_fallthru
          _
        // Predicated region
        $region21: #{simple_vgg_forward.1} parent=11 // pred_check
          %p346 = pneg %p110
        $region22: #{simple_vgg_forward.1} parent=11 // pred_check_branch
          %348 = sbr.rel (%p346) target = $region24
        $region23: #{simple_vgg_forward.1} parent=11 // pred_region
          %s350 = ssub.s32 16384, 16384
          %351 = vsyncadd [#allocation3], %s350
          %s352 = sshll.u32 [#allocation2], 4
          %s353 = int_to_ptr.vmem [resolvable:$true] %s352
          %358 = dma.hbm_to_vmem [thread:$0]  %s3, 16384, %s353, [#allocation3], 256, 256, 16
        $region24: #{simple_vgg_forward.1} parent=11 // pred_fallthru
          _
        // Predicated region
        $region25: #{simple_vgg_forward.1} parent=11 // pred_check
          %p359 = pneg %p131
        $region26: #{simple_vgg_forward.1} parent=11 // pred_check_branch
          %361 = sbr.rel (%p359) target = $region28
        $region27: #{simple_vgg_forward.1} parent=11 // pred_region
          _
        $region28: #{simple_vgg_forward.1} parent=11 // pred_fallthru
          _
        // Predicated region
        $region29: #{simple_vgg_forward.1} parent=11 // pred_check
          %p362 = pneg %p152
        $region30: #{simple_vgg_forward.1} parent=11 // pred_check_branch
          %364 = sbr.rel (%p362) target = $region32
        $region31: #{simple_vgg_forward.1} parent=11 // pred_region
          _
        $region32: #{simple_vgg_forward.1} parent=11 // pred_fallthru
          _
        // Predicated region
        $region33: #{simple_vgg_forward.1} parent=11 // pred_check
          %p365 = pneg %p173
        $region34: #{simple_vgg_forward.1} parent=11 // pred_check_branch
          %367 = sbr.rel (%p365) target = $region36
        $region35: #{simple_vgg_forward.1} parent=11 // pred_region
          _
        $region36: #{simple_vgg_forward.1} parent=11 // pred_fallthru
          _
        // Predicated region
        $region37: #{simple_vgg_forward.1} parent=11 // pred_check
          %p368 = pneg %p194
        $region38: #{simple_vgg_forward.1} parent=11 // pred_check_branch
          %370 = sbr.rel (%p368) target = $region40
        $region39: #{simple_vgg_forward.1} parent=11 // pred_region
          _
        $region40: #{simple_vgg_forward.1} parent=11 // pred_fallthru
          _
        // Predicated region
        $region41: #{simple_vgg_forward.1} parent=11 // pred_check
          %p371 = pneg %p215
        $region42: #{simple_vgg_forward.1} parent=11 // pred_check_branch
          %373 = sbr.rel (%p371) target = $region44
        $region43: #{simple_vgg_forward.1} parent=11 // pred_region
          _
        $region44: #{simple_vgg_forward.1} parent=11 // pred_fallthru
          _
        // Predicated region
        $region45: #{simple_vgg_forward.1} parent=11 // pred_check
          %p374 = pneg %p236
        $region46: #{simple_vgg_forward.1} parent=11 // pred_check_branch
          %376 = sbr.rel (%p374) target = $region48
        $region47: #{simple_vgg_forward.1} parent=11 // pred_region
          %s378 = ssub.s32 1024, 1024
          %379 = vsyncadd [#allocation5], %s378
          %s380 = sshll.u32 [#allocation4], 4
          %s381 = int_to_ptr.vmem [resolvable:$true] %s380
          %386 = dma.hbm_to_vmem [thread:$0]  %s9, 1024, %s381, [#allocation5], 64, 64, 4
        $region48: #{simple_vgg_forward.1} parent=11 // pred_fallthru
          _
        // Predicated region
        $region49: #{simple_vgg_forward.1} parent=11 // pred_check
          %p387 = pneg %p257
        $region50: #{simple_vgg_forward.1} parent=11 // pred_check_branch
          %389 = sbr.rel (%p387) target = $region52
        $region51: #{simple_vgg_forward.1} parent=11 // pred_region
          _
        $region52: #{simple_vgg_forward.1} parent=11 // pred_fallthru
          _
        // Predicated region
        $region53: #{simple_vgg_forward.1} parent=11 // pred_check
          %p390 = pneg %p278
        $region54: #{simple_vgg_forward.1} parent=11 // pred_check_branch
          %392 = sbr.rel (%p390) target = $region56
        $region55: #{simple_vgg_forward.1} parent=11 // pred_region
          %s394 = ssub.s32 1024, 1024
          %395 = vsyncadd [#allocation5], %s394
          %s396 = sshll.u32 [#allocation6], 4
          %s397 = int_to_ptr.vmem [resolvable:$true] %s396
          %402 = dma.hbm_to_vmem [thread:$0]  %s11, 1024, %s397, [#allocation5], 64, 64, 4
        $region56: #{simple_vgg_forward.1} parent=11 // pred_fallthru
          _
        // Predicated region
        $region57: #{simple_vgg_forward.1} parent=11 // pred_check
          %p403 = pneg %p299
        $region58: #{simple_vgg_forward.1} parent=11 // pred_check_branch
          %405 = sbr.rel (%p403) target = $region60
        $region59: #{simple_vgg_forward.1} parent=11 // pred_region
          _
        $region60: #{simple_vgg_forward.1} parent=11 // pred_fallthru
          _
      $region12: #{simple_vgg_forward.1} parent=5 // pred_fallthru
        _
      %p406 = scmp.lt.s32.totalorder %s21, 2
      // Predicated region
      $region61: #{simple_vgg_forward.1} parent=5 // pred_check
        %p407 = pneg %p406
      $region62: #{simple_vgg_forward.1} parent=5 // pred_check_branch
        %409 = sbr.rel (%p407) target = $region64
      $region63: #{simple_vgg_forward.1} parent=5 // pred_region
        // Predicated region
        $region65: #{simple_vgg_forward.1} parent=63 // pred_check
          %p410 = pneg %p41
        $region66: #{simple_vgg_forward.1} parent=63 // pred_check_branch
          %412 = sbr.rel (%p410) target = $region68
        $region67: #{simple_vgg_forward.1} parent=63 // pred_region
          %s413 = smul.u32 16, %s21
          %p414 = scmp.lt.s32.totalorder %s413, 31
          %s415 = scalar_select %p414, %s413, 31
          %s416 = smul.addr %s415, 8
          %s417 = scalar_lea.vmem %s0, %s416
          %s418 = smul.u32 16, %s21
        $region68: #{simple_vgg_forward.1} parent=63 // pred_fallthru
          _
      $region64: #{simple_vgg_forward.1} parent=5 // pred_fallthru
        _
      %p419 = scmp.le.s32.totalorder 1, %s21
      %p420 = scmp.lt.s32.totalorder %s21, 3
      %p421 = pnand %p419, %p420
      %p422 = pneg %p421
      // Predicated region
      $region69: #{simple_vgg_forward.1} parent=5 // pred_check
        _
      $region70: #{simple_vgg_forward.1} parent=5 // pred_check_branch
        %424 = sbr.rel (%p421) target = $region72
      $region71: #{simple_vgg_forward.1} parent=5 // pred_region
        %s425 = ssub.s32 %s21, 1
        // Predicated region
        $region73: #{simple_vgg_forward.1} parent=71 // pred_check
          %p426 = pneg %p110
        $region74: #{simple_vgg_forward.1} parent=71 // pred_check_branch
          %428 = sbr.rel (%p426) target = $region76
        $region75: #{simple_vgg_forward.1} parent=71 // pred_region
          %429 = dma.done [#allocation3], 16384
        $region76: #{simple_vgg_forward.1} parent=71 // pred_fallthru
          _
        // Predicated region
        $region77: #{simple_vgg_forward.1} parent=71 // pred_check
          %p430 = pneg %p236
        $region78: #{simple_vgg_forward.1} parent=71 // pred_check_branch
          %432 = sbr.rel (%p430) target = $region80
        $region79: #{simple_vgg_forward.1} parent=71 // pred_region
          %433 = dma.done [#allocation5], 1024
        $region80: #{simple_vgg_forward.1} parent=71 // pred_fallthru
          _
        // Predicated region
        $region81: #{simple_vgg_forward.1} parent=71 // pred_check
          %p434 = pneg %p278
        $region82: #{simple_vgg_forward.1} parent=71 // pred_check_branch
          %436 = sbr.rel (%p434) target = $region84
        $region83: #{simple_vgg_forward.1} parent=71 // pred_region
          %437 = dma.done [#allocation5], 1024
        $region84: #{simple_vgg_forward.1} parent=71 // pred_fallthru
          _
        %s438 = smul.u32 16, %s26
        %p439 = scmp.lt.s32.totalorder %s438, 31
        %s440 = scalar_select %p439, %s438, 31
        %s441 = smul.addr %s440, 8
        %s442 = scalar_lea.vmem %s0, %s441
        %p443 = pneg %p47
        %p444 = pneg %p44
        %p445 = pneg %p68
        %p446 = pneg %p65
        %p447 = pneg %p89
        %p448 = pneg %p86
        %p449 = pneg %p110
        %p450 = pneg %p107
        %p451 = pneg %p131
        %p452 = pneg %p128
        %p453 = pneg %p152
        %p454 = pneg %p149
        %p455 = pneg %p173
        %p456 = pneg %p170
        %p457 = pneg %p194
        %p458 = pneg %p191
        %p459 = pneg %p215
        %p460 = pneg %p212
        %p461 = pneg %p236
        %p462 = pneg %p233
        %p463 = pneg %p257
        %p464 = pneg %p254
        %p465 = pneg %p278
        %p466 = pneg %p275
        %p467 = pneg %p299
        %p468 = pneg %p296
        %p469 = pneg %p325
        %p470 = pneg %p322
        %s471 = smul.u32 16, %s26
        %p472 = scmp.lt.s32.totalorder %s471, 31
        %s473 = scalar_select %p472, %s471, 31
        %s474 = smul.addr %s473, 8
        %s475 = scalar_lea.vmem %s13, %s474
        %s476 = smul.u32 16, %s26
        %p477 = scmp.lt.s32.totalorder %s476, 31
        %s478 = scalar_select %p477, %s476, 31
        %s479 = smul.addr %s478, 8
        %s480 = scalar_lea.vmem %s0, %s479
        %s481 = smul.u32 16, %s26
        %s482 = smul.u32 16, %s26
        %p483 = scmp.lt.s32.totalorder %s482, 31
        %s484 = scalar_select %p483, %s482, 31
        %s485 = smul.addr %s484, 8
        %s486 = scalar_lea.vmem %s13, %s485
        %s487 = smul.u32 16, %s26
        %v489 = vld [vmem:[%s480] sm:$0xff]
        %v490 = vld [vmem:[%s480 + $0x8] sm:$0xff]
        %v491 = vld [vmem:[%s480 + $0x10] sm:$0xff]
        %v492 = vld [vmem:[%s480 + $0x18] sm:$0xff]
        %v493 = vld [vmem:[%s480 + $0x20] sm:$0xff]
        %v494 = vld [vmem:[%s480 + $0x28] sm:$0xff]
        %v495 = vld [vmem:[%s480 + $0x30] sm:$0xff]
        %v496 = vld [vmem:[%s480 + $0x38] sm:$0xff]
        %v497 = vld [vmem:[%s480 + $0x40] sm:$0xff]
        %v498 = vld [vmem:[%s480 + $0x48] sm:$0xff]
        %v499 = vld [vmem:[%s480 + $0x50] sm:$0xff]
        %v500 = vld [vmem:[%s480 + $0x58] sm:$0xff]
        %v501 = vld [vmem:[%s480 + $0x60] sm:$0xff]
        %v502 = vld [vmem:[%s480 + $0x68] sm:$0xff]
        %v503 = vld [vmem:[%s480 + $0x70] sm:$0xff]
        %v504 = vld [vmem:[%s480 + $0x78] sm:$0xff]
        %v505 = vpack.c.bf16 %v490, %v489
        %v506 = vpack.c.bf16 %v492, %v491
        %v507 = vpack.c.bf16 %v494, %v493
        %v508 = vpack.c.bf16 %v496, %v495
        %v509 = vpack.c.bf16 %v498, %v497
        %v510 = vpack.c.bf16 %v500, %v499
        %v511 = vpack.c.bf16 %v502, %v501
        %v512 = vpack.c.bf16 %v504, %v503
        %v513 = vld [vmem:[%s1] sm:$0xff]
        %v514 = vld [vmem:[%s1 + $0x8] sm:$0xff]
        %v515 = vld [vmem:[%s1 + $0x10] sm:$0xff]
        %v516 = vld [vmem:[%s1 + $0x18] sm:$0xff]
        %v517 = vld [vmem:[%s1 + $0x20] sm:$0xff]
        %v518 = vld [vmem:[%s1 + $0x28] sm:$0xff]
        %v519 = vld [vmem:[%s1 + $0x30] sm:$0xff]
        %v520 = vld [vmem:[%s1 + $0x38] sm:$0xff]
        %v521 = vld [vmem:[%s1 + $0x40] sm:$0xff]
        %v522 = vld [vmem:[%s1 + $0x48] sm:$0xff]
        %v523 = vld [vmem:[%s1 + $0x50] sm:$0xff]
        %v524 = vld [vmem:[%s1 + $0x58] sm:$0xff]
        %v525 = vld [vmem:[%s1 + $0x60] sm:$0xff]
        %v526 = vld [vmem:[%s1 + $0x68] sm:$0xff]
        %v527 = vld [vmem:[%s1 + $0x70] sm:$0xff]
        %v528 = vld [vmem:[%s1 + $0x78] sm:$0xff]
        %v529 = vld [vmem:[%s1 + $0x80] sm:$0xff]
        %v530 = vld [vmem:[%s1 + $0x88] sm:$0xff]
        %v531 = vld [vmem:[%s1 + $0x90] sm:$0xff]
        %v532 = vld [vmem:[%s1 + $0x98] sm:$0xff]
        %v533 = vld [vmem:[%s1 + $0xa0] sm:$0xff]
        %v534 = vld [vmem:[%s1 + $0xa8] sm:$0xff]
        %v535 = vld [vmem:[%s1 + $0xb0] sm:$0xff]
        %v536 = vld [vmem:[%s1 + $0xb8] sm:$0xff]
        %v537 = vld [vmem:[%s1 + $0xc0] sm:$0xff]
        %v538 = vld [vmem:[%s1 + $0xc8] sm:$0xff]
        %v539 = vld [vmem:[%s1 + $0xd0] sm:$0xff]
        %v540 = vld [vmem:[%s1 + $0xd8] sm:$0xff]
        %v541 = vld [vmem:[%s1 + $0xe0] sm:$0xff]
        %v542 = vld [vmem:[%s1 + $0xe8] sm:$0xff]
        %v543 = vld [vmem:[%s1 + $0xf0] sm:$0xff]
        %v544 = vld [vmem:[%s1 + $0xf8] sm:$0xff]
        %v545 = vld [vmem:[%s2] sm:$0xf]
        %v547 = vlaneseq
        %v548 = vshrl.u32 %v547, 7
        %v549 = vsub.s32 0, %v548
        %v550 = vrot.slane %v545, %v549
        %v551 = vlaneseq
        %v552 = vshrl.u32 %v551, 7
        %v553 = vsub.s32 1, %v552
        %v554 = vrot.slane %v545, %v553
        %v555 = vlaneseq
        %v556 = vshrl.u32 %v555, 7
        %v557 = vsub.s32 2, %v556
        %v558 = vrot.slane %v545, %v557
        %v559 = vlaneseq
        %v560 = vshrl.u32 %v559, 7
        %v561 = vsub.s32 3, %v560
        %v562 = vrot.slane %v545, %v561
        %v599 = vunpack.c.l.b16 %v513
        %v600 = vunpack.c.h.b16 %v513
        %v601 = vunpack.c.l.b16 %v514
        %v602 = vunpack.c.h.b16 %v514
        %v603 = vunpack.c.l.b16 %v515
        %v604 = vunpack.c.h.b16 %v515
        %v605 = vunpack.c.l.b16 %v516
        %v606 = vunpack.c.h.b16 %v516
        %v607 = vunpack.c.l.b16 %v517
        %v608 = vunpack.c.h.b16 %v517
        %v609 = vunpack.c.l.b16 %v518
        %v610 = vunpack.c.h.b16 %v518
        %v611 = vunpack.c.l.b16 %v519
        %v612 = vunpack.c.h.b16 %v519
        %v613 = vunpack.c.l.b16 %v520
        %v614 = vunpack.c.h.b16 %v520
        %v615 = vunpack.c.l.b16 %v521
        %v616 = vunpack.c.h.b16 %v521
        %v617 = vunpack.c.l.b16 %v522
        %v618 = vunpack.c.h.b16 %v522
        %v619 = vunpack.c.l.b16 %v523
        %v620 = vunpack.c.h.b16 %v523
        %v621 = vunpack.c.l.b16 %v524
        %v622 = vunpack.c.h.b16 %v524
        %v623 = vunpack.c.l.b16 %v525
        %v624 = vunpack.c.h.b16 %v525
        %v625 = vunpack.c.l.b16 %v526
        %v626 = vunpack.c.h.b16 %v526
        %v627 = vunpack.c.l.b16 %v527
        %v628 = vunpack.c.h.b16 %v527
        %v629 = vunpack.c.l.b16 %v528
        %v630 = vunpack.c.h.b16 %v528
        %v631 = vunpack.c.l.b16 %v529
        %v632 = vunpack.c.h.b16 %v529
        %v633 = vunpack.c.l.b16 %v530
        %v634 = vunpack.c.h.b16 %v530
        %v635 = vunpack.c.l.b16 %v531
        %v636 = vunpack.c.h.b16 %v531
        %v637 = vunpack.c.l.b16 %v532
        %v638 = vunpack.c.h.b16 %v532
        %v639 = vunpack.c.l.b16 %v533
        %v640 = vunpack.c.h.b16 %v533
        %v641 = vunpack.c.l.b16 %v534
        %v642 = vunpack.c.h.b16 %v534
        %v643 = vunpack.c.l.b16 %v535
        %v644 = vunpack.c.h.b16 %v535
        %v645 = vunpack.c.l.b16 %v536
        %v646 = vunpack.c.h.b16 %v536
        %v647 = vunpack.c.l.b16 %v537
        %v648 = vunpack.c.h.b16 %v537
        %v649 = vunpack.c.l.b16 %v538
        %v650 = vunpack.c.h.b16 %v538
        %v651 = vunpack.c.l.b16 %v539
        %v652 = vunpack.c.h.b16 %v539
        %v653 = vunpack.c.l.b16 %v540
        %v654 = vunpack.c.h.b16 %v540
        %v655 = vunpack.c.l.b16 %v541
        %v656 = vunpack.c.h.b16 %v541
        %v657 = vunpack.c.l.b16 %v542
        %v658 = vunpack.c.h.b16 %v542
        %v659 = vunpack.c.l.b16 %v543
        %v660 = vunpack.c.h.b16 %v543
        %v661 = vunpack.c.l.b16 %v544
        %v662 = vunpack.c.h.b16 %v544
        %v663 = vpack.c.b16 %v603, %v599
        %v664 = vpack.c.b16 %v604, %v600
        %v665 = vpack.c.b16 %v605, %v601
        %v666 = vpack.c.b16 %v606, %v602
        %v667 = vpack.c.b16 %v611, %v607
        %v668 = vpack.c.b16 %v612, %v608
        %v669 = vpack.c.b16 %v613, %v609
        %v670 = vpack.c.b16 %v614, %v610
        %v671 = vpack.c.b16 %v619, %v615
        %v672 = vpack.c.b16 %v620, %v616
        %v673 = vpack.c.b16 %v621, %v617
        %v674 = vpack.c.b16 %v622, %v618
        %v675 = vpack.c.b16 %v627, %v623
        %v676 = vpack.c.b16 %v628, %v624
        %v677 = vpack.c.b16 %v629, %v625
        %v678 = vpack.c.b16 %v630, %v626
        %v679 = vpack.c.b16 %v635, %v631
        %v680 = vpack.c.b16 %v636, %v632
        %v681 = vpack.c.b16 %v637, %v633
        %v682 = vpack.c.b16 %v638, %v634
        %v683 = vpack.c.b16 %v643, %v639
        %v684 = vpack.c.b16 %v644, %v640
        %v685 = vpack.c.b16 %v645, %v641
        %v686 = vpack.c.b16 %v646, %v642
        %v687 = vpack.c.b16 %v651, %v647
        %v688 = vpack.c.b16 %v652, %v648
        %v689 = vpack.c.b16 %v653, %v649
        %v690 = vpack.c.b16 %v654, %v650
        %v691 = vpack.c.b16 %v659, %v655
        %v692 = vpack.c.b16 %v660, %v656
        %v693 = vpack.c.b16 %v661, %v657
        %v694 = vpack.c.b16 %v662, %v658
        %727 = vmatprep.subr.bf16.mxu0 %v692
        %728 = vmatpush1.bf16.msra.mxu0 %v691
        %729 = vmatprep.subr.bf16.mxu0 %v688
        %730 = vmatpush1.bf16.msra.mxu0 %v687
        %731 = vmatprep.subr.bf16.mxu0 %v684
        %732 = vmatpush1.bf16.msra.mxu0 %v683
        %733 = vmatprep.subr.bf16.mxu0 %v680
        %734 = vmatpush1.bf16.msra.mxu0 %v679
        %735 = vmatprep.subr.bf16.mxu0 %v676
        %736 = vmatpush1.bf16.msra.mxu0 %v675
        %737 = vmatprep.subr.bf16.mxu0 %v672
        %738 = vmatpush1.bf16.msra.mxu0 %v671
        %739 = vmatprep.subr.bf16.mxu0 %v668
        %740 = vmatpush1.bf16.msra.mxu0 %v667
        %741 = vmatprep.subr.bf16.mxu0 %v664
        %742 = vmatpush1.bf16.msra.mxu0 %v663
        %743 = vmatprep.subr.bf16.mxu0 0
        %744 = vmatpush2.bf16.msra.mxu0 0
        %745 = vmatprep.subr.bf16.mxu0 0
        %746 = vmatpush2.bf16.msra.mxu0 0
        %747 = vmatprep.subr.bf16.mxu0 0
        %748 = vmatpush2.bf16.msra.mxu0 0
        %749 = vmatprep.subr.bf16.mxu0 0
        %750 = vmatpush2.bf16.msra.mxu0 0
        %751 = vmatprep.subr.bf16.mxu0 0
        %752 = vmatpush2.bf16.msra.mxu0 0
        %753 = vmatprep.subr.bf16.mxu0 0
        %754 = vmatpush2.bf16.msra.mxu0 0
        %755 = vmatprep.subr.bf16.mxu0 0
        %756 = vmatpush2.bf16.msra.mxu0 0
        %757 = vmatprep.subr.bf16.mxu0 0
        %758 = vmatpush2.bf16.msra.mxu0 0
        %759 = vmatprep.mubr.bf16.mxu0 0
        %760 = vmatmul.mubr.bf16.gmra.mxu0 %v505
        %v761 = vpop.f32.mrf.mxu0
        %v762 = vadd.f32 %v550, %v761
        %v763 = vpop.f32.mrf.mxu0
        %v764 = vadd.f32 %v554, %v763
        %v765 = vpop.f32.mrf.mxu0
        %v766 = vadd.f32 %v550, %v765
        %v767 = vpop.f32.mrf.mxu0
        %v768 = vadd.f32 %v554, %v767
        %769 = vmatprep.mubr.bf16.mxu0 0
        %770 = vmatmul.mubr.bf16.gmra.mxu0 %v506
        %v771 = vpop.f32.mrf.mxu0
        %v772 = vadd.f32 %v550, %v771
        %v773 = vpop.f32.mrf.mxu0
        %v774 = vadd.f32 %v554, %v773
        %v775 = vpop.f32.mrf.mxu0
        %v776 = vadd.f32 %v550, %v775
        %v777 = vpop.f32.mrf.mxu0
        %v778 = vadd.f32 %v554, %v777
        %779 = vmatprep.mubr.bf16.mxu0 0
        %780 = vmatmul.mubr.bf16.gmra.mxu0 %v507
        %v781 = vpop.f32.mrf.mxu0
        %v782 = vadd.f32 %v550, %v781
        %v783 = vpop.f32.mrf.mxu0
        %v784 = vadd.f32 %v554, %v783
        %v785 = vpop.f32.mrf.mxu0
        %v786 = vadd.f32 %v550, %v785
        %v787 = vpop.f32.mrf.mxu0
        %v788 = vadd.f32 %v554, %v787
        %789 = vmatprep.mubr.bf16.mxu0 0
        %790 = vmatmul.mubr.bf16.gmra.mxu0 %v508
        %v791 = vpop.f32.mrf.mxu0
        %v792 = vadd.f32 %v550, %v791
        %v793 = vpop.f32.mrf.mxu0
        %v794 = vadd.f32 %v554, %v793
        %v795 = vpop.f32.mrf.mxu0
        %v796 = vadd.f32 %v550, %v795
        %v797 = vpop.f32.mrf.mxu0
        %v798 = vadd.f32 %v554, %v797
        %799 = vmatprep.mubr.bf16.mxu0 0
        %800 = vmatmul.mubr.bf16.gmra.mxu0 %v509
        %v801 = vpop.f32.mrf.mxu0
        %v802 = vadd.f32 %v550, %v801
        %v803 = vpop.f32.mrf.mxu0
        %v804 = vadd.f32 %v554, %v803
        %v805 = vpop.f32.mrf.mxu0
        %v806 = vadd.f32 %v550, %v805
        %v807 = vpop.f32.mrf.mxu0
        %v808 = vadd.f32 %v554, %v807
        %809 = vmatprep.mubr.bf16.mxu0 0
        %810 = vmatmul.mubr.bf16.gmra.mxu0 %v510
        %v811 = vpop.f32.mrf.mxu0
        %v812 = vadd.f32 %v550, %v811
        %v813 = vpop.f32.mrf.mxu0
        %v814 = vadd.f32 %v554, %v813
        %v815 = vpop.f32.mrf.mxu0
        %v816 = vadd.f32 %v550, %v815
        %v817 = vpop.f32.mrf.mxu0
        %v818 = vadd.f32 %v554, %v817
        %819 = vmatprep.mubr.bf16.mxu0 0
        %820 = vmatmul.mubr.bf16.gmra.mxu0 %v511
        %v821 = vpop.f32.mrf.mxu0
        %v822 = vadd.f32 %v550, %v821
        %v823 = vpop.f32.mrf.mxu0
        %v824 = vadd.f32 %v554, %v823
        %v825 = vpop.f32.mrf.mxu0
        %v826 = vadd.f32 %v550, %v825
        %v827 = vpop.f32.mrf.mxu0
        %v828 = vadd.f32 %v554, %v827
        %829 = vmatprep.mubr.bf16.mxu0 0
        %830 = vmatmul.mubr.bf16.gmra.mxu0 %v512
        %v831 = vpop.f32.mrf.mxu0
        %v832 = vadd.f32 %v550, %v831
        %v833 = vpop.f32.mrf.mxu0
        %v834 = vadd.f32 %v554, %v833
        %v835 = vpop.f32.mrf.mxu0
        %v836 = vadd.f32 %v550, %v835
        %v837 = vpop.f32.mrf.mxu0
        %v838 = vadd.f32 %v554, %v837
        %839 = vdwg.mxu0
        %840 = vmatprep.subr.bf16.mxu0 %v694
        %841 = vmatpush1.bf16.msra.mxu0 %v693
        %842 = vmatprep.subr.bf16.mxu0 %v690
        %843 = vmatpush1.bf16.msra.mxu0 %v689
        %844 = vmatprep.subr.bf16.mxu0 %v686
        %845 = vmatpush1.bf16.msra.mxu0 %v685
        %846 = vmatprep.subr.bf16.mxu0 %v682
        %847 = vmatpush1.bf16.msra.mxu0 %v681
        %848 = vmatprep.subr.bf16.mxu0 %v678
        %849 = vmatpush1.bf16.msra.mxu0 %v677
        %850 = vmatprep.subr.bf16.mxu0 %v674
        %851 = vmatpush1.bf16.msra.mxu0 %v673
        %852 = vmatprep.subr.bf16.mxu0 %v670
        %853 = vmatpush1.bf16.msra.mxu0 %v669
        %854 = vmatprep.subr.bf16.mxu0 %v666
        %855 = vmatpush1.bf16.msra.mxu0 %v665
        %856 = vmatprep.subr.bf16.mxu0 0
        %857 = vmatpush2.bf16.msra.mxu0 0
        %858 = vmatprep.subr.bf16.mxu0 0
        %859 = vmatpush2.bf16.msra.mxu0 0
        %860 = vmatprep.subr.bf16.mxu0 0
        %861 = vmatpush2.bf16.msra.mxu0 0
        %862 = vmatprep.subr.bf16.mxu0 0
        %863 = vmatpush2.bf16.msra.mxu0 0
        %864 = vmatprep.subr.bf16.mxu0 0
        %865 = vmatpush2.bf16.msra.mxu0 0
        %866 = vmatprep.subr.bf16.mxu0 0
        %867 = vmatpush2.bf16.msra.mxu0 0
        %868 = vmatprep.subr.bf16.mxu0 0
        %869 = vmatpush2.bf16.msra.mxu0 0
        %870 = vmatprep.subr.bf16.mxu0 0
        %871 = vmatpush2.bf16.msra.mxu0 0
        %872 = vmatprep.mubr.bf16.mxu0 0
        %873 = vmatmul.mubr.bf16.gmra.mxu0 %v505
        %v874 = vpop.f32.mrf.mxu0
        %v875 = vadd.f32 %v558, %v874
        %v876 = vpop.f32.mrf.mxu0
        %v877 = vadd.f32 %v562, %v876
        %v878 = vpop.f32.mrf.mxu0
        %v879 = vadd.f32 %v558, %v878
        %v880 = vpop.f32.mrf.mxu0
        %v881 = vadd.f32 %v562, %v880
        %882 = vmatprep.mubr.bf16.mxu0 0
        %883 = vmatmul.mubr.bf16.gmra.mxu0 %v506
        %v884 = vpop.f32.mrf.mxu0
        %v885 = vadd.f32 %v558, %v884
        %v886 = vpop.f32.mrf.mxu0
        %v887 = vadd.f32 %v562, %v886
        %v888 = vpop.f32.mrf.mxu0
        %v889 = vadd.f32 %v558, %v888
        %v890 = vpop.f32.mrf.mxu0
        %v891 = vadd.f32 %v562, %v890
        %892 = vmatprep.mubr.bf16.mxu0 0
        %893 = vmatmul.mubr.bf16.gmra.mxu0 %v507
        %v894 = vpop.f32.mrf.mxu0
        %v895 = vadd.f32 %v558, %v894
        %v896 = vpop.f32.mrf.mxu0
        %v897 = vadd.f32 %v562, %v896
        %v898 = vpop.f32.mrf.mxu0
        %v899 = vadd.f32 %v558, %v898
        %v900 = vpop.f32.mrf.mxu0
        %v901 = vadd.f32 %v562, %v900
        %902 = vmatprep.mubr.bf16.mxu0 0
        %903 = vmatmul.mubr.bf16.gmra.mxu0 %v508
        %v904 = vpop.f32.mrf.mxu0
        %v905 = vadd.f32 %v558, %v904
        %v906 = vpop.f32.mrf.mxu0
        %v907 = vadd.f32 %v562, %v906
        %v908 = vpop.f32.mrf.mxu0
        %v909 = vadd.f32 %v558, %v908
        %v910 = vpop.f32.mrf.mxu0
        %v911 = vadd.f32 %v562, %v910
        %912 = vmatprep.mubr.bf16.mxu0 0
        %913 = vmatmul.mubr.bf16.gmra.mxu0 %v509
        %v914 = vpop.f32.mrf.mxu0
        %v915 = vadd.f32 %v558, %v914
        %v916 = vpop.f32.mrf.mxu0
        %v917 = vadd.f32 %v562, %v916
        %v918 = vpop.f32.mrf.mxu0
        %v919 = vadd.f32 %v558, %v918
        %v920 = vpop.f32.mrf.mxu0
        %v921 = vadd.f32 %v562, %v920
        %922 = vmatprep.mubr.bf16.mxu0 0
        %923 = vmatmul.mubr.bf16.gmra.mxu0 %v510
        %v924 = vpop.f32.mrf.mxu0
        %v925 = vadd.f32 %v558, %v924
        %v926 = vpop.f32.mrf.mxu0
        %v927 = vadd.f32 %v562, %v926
        %v928 = vpop.f32.mrf.mxu0
        %v929 = vadd.f32 %v558, %v928
        %v930 = vpop.f32.mrf.mxu0
        %v931 = vadd.f32 %v562, %v930
        %932 = vmatprep.mubr.bf16.mxu0 0
        %933 = vmatmul.mubr.bf16.gmra.mxu0 %v511
        %v934 = vpop.f32.mrf.mxu0
        %v935 = vadd.f32 %v558, %v934
        %v936 = vpop.f32.mrf.mxu0
        %v937 = vadd.f32 %v562, %v936
        %v938 = vpop.f32.mrf.mxu0
        %v939 = vadd.f32 %v558, %v938
        %v940 = vpop.f32.mrf.mxu0
        %v941 = vadd.f32 %v562, %v940
        %942 = vmatprep.mubr.bf16.mxu0 0
        %943 = vmatmul.mubr.bf16.gmra.mxu0 %v512
        %v944 = vpop.f32.mrf.mxu0
        %v945 = vadd.f32 %v558, %v944
        %v946 = vpop.f32.mrf.mxu0
        %v947 = vadd.f32 %v562, %v946
        %v948 = vpop.f32.mrf.mxu0
        %v949 = vadd.f32 %v558, %v948
        %v950 = vpop.f32.mrf.mxu0
        %v951 = vadd.f32 %v562, %v950
        %952 = vdwg.mxu0
        %v953 = vmax.f32 %v762, 0.0
        %v954 = vmax.f32 %v764, 0.0
        %v955 = vmax.f32 %v875, 0.0
        %v956 = vmax.f32 %v877, 0.0
        %v957 = vmax.f32 %v766, 0.0
        %v958 = vmax.f32 %v768, 0.0
        %v959 = vmax.f32 %v879, 0.0
        %v960 = vmax.f32 %v881, 0.0
        %v961 = vmax.f32 %v772, 0.0
        %v962 = vmax.f32 %v774, 0.0
        %v963 = vmax.f32 %v885, 0.0
        %v964 = vmax.f32 %v887, 0.0
        %v965 = vmax.f32 %v776, 0.0
        %v966 = vmax.f32 %v778, 0.0
        %v967 = vmax.f32 %v889, 0.0
        %v968 = vmax.f32 %v891, 0.0
        %v969 = vmax.f32 %v782, 0.0
        %v970 = vmax.f32 %v784, 0.0
        %v971 = vmax.f32 %v895, 0.0
        %v972 = vmax.f32 %v897, 0.0
        %v973 = vmax.f32 %v786, 0.0
        %v974 = vmax.f32 %v788, 0.0
        %v975 = vmax.f32 %v899, 0.0
        %v976 = vmax.f32 %v901, 0.0
        %v977 = vmax.f32 %v792, 0.0
        %v978 = vmax.f32 %v794, 0.0
        %v979 = vmax.f32 %v905, 0.0
        %v980 = vmax.f32 %v907, 0.0
        %v981 = vmax.f32 %v796, 0.0
        %v982 = vmax.f32 %v798, 0.0
        %v983 = vmax.f32 %v909, 0.0
        %v984 = vmax.f32 %v911, 0.0
        %v985 = vmax.f32 %v802, 0.0
        %v986 = vmax.f32 %v804, 0.0
        %v987 = vmax.f32 %v915, 0.0
        %v988 = vmax.f32 %v917, 0.0
        %v989 = vmax.f32 %v806, 0.0
        %v990 = vmax.f32 %v808, 0.0
        %v991 = vmax.f32 %v919, 0.0
        %v992 = vmax.f32 %v921, 0.0
        %v993 = vmax.f32 %v812, 0.0
        %v994 = vmax.f32 %v814, 0.0
        %v995 = vmax.f32 %v925, 0.0
        %v996 = vmax.f32 %v927, 0.0
        %v997 = vmax.f32 %v816, 0.0
        %v998 = vmax.f32 %v818, 0.0
        %v999 = vmax.f32 %v929, 0.0
        %v1000 = vmax.f32 %v931, 0.0
        %v1001 = vmax.f32 %v822, 0.0
        %v1002 = vmax.f32 %v824, 0.0
        %v1003 = vmax.f32 %v935, 0.0
        %v1004 = vmax.f32 %v937, 0.0
        %v1005 = vmax.f32 %v826, 0.0
        %v1006 = vmax.f32 %v828, 0.0
        %v1007 = vmax.f32 %v939, 0.0
        %v1008 = vmax.f32 %v941, 0.0
        %v1009 = vmax.f32 %v832, 0.0
        %v1010 = vmax.f32 %v834, 0.0
        %v1011 = vmax.f32 %v945, 0.0
        %v1012 = vmax.f32 %v947, 0.0
        %v1013 = vmax.f32 %v836, 0.0
        %v1014 = vmax.f32 %v838, 0.0
        %v1015 = vmax.f32 %v949, 0.0
        %v1016 = vmax.f32 %v951, 0.0
        %v1017 = vpack.c.bf16 %v957, %v953
        %v1018 = vpack.c.bf16 %v958, %v954
        %v1019 = vpack.c.bf16 %v959, %v955
        %v1020 = vpack.c.bf16 %v960, %v956
        %v1021 = vpack.c.bf16 %v965, %v961
        %v1022 = vpack.c.bf16 %v966, %v962
        %v1023 = vpack.c.bf16 %v967, %v963
        %v1024 = vpack.c.bf16 %v968, %v964
        %v1025 = vpack.c.bf16 %v973, %v969
        %v1026 = vpack.c.bf16 %v974, %v970
        %v1027 = vpack.c.bf16 %v975, %v971
        %v1028 = vpack.c.bf16 %v976, %v972
        %v1029 = vpack.c.bf16 %v981, %v977
        %v1030 = vpack.c.bf16 %v982, %v978
        %v1031 = vpack.c.bf16 %v983, %v979
        %v1032 = vpack.c.bf16 %v984, %v980
        %v1033 = vpack.c.bf16 %v989, %v985
        %v1034 = vpack.c.bf16 %v990, %v986
        %v1035 = vpack.c.bf16 %v991, %v987
        %v1036 = vpack.c.bf16 %v992, %v988
        %v1037 = vpack.c.bf16 %v997, %v993
        %v1038 = vpack.c.bf16 %v998, %v994
        %v1039 = vpack.c.bf16 %v999, %v995
        %v1040 = vpack.c.bf16 %v1000, %v996
        %v1041 = vpack.c.bf16 %v1005, %v1001
        %v1042 = vpack.c.bf16 %v1006, %v1002
        %v1043 = vpack.c.bf16 %v1007, %v1003
        %v1044 = vpack.c.bf16 %v1008, %v1004
        %v1045 = vpack.c.bf16 %v1013, %v1009
        %v1046 = vpack.c.bf16 %v1014, %v1010
        %v1047 = vpack.c.bf16 %v1015, %v1011
        %v1048 = vpack.c.bf16 %v1016, %v1012
        %v1049 = vld [vmem:[#allocation2] sm:$0xff]
        %v1050 = vld [vmem:[#allocation2 + $0x8] sm:$0xff]
        %v1051 = vld [vmem:[#allocation2 + $0x10] sm:$0xff]
        %v1052 = vld [vmem:[#allocation2 + $0x18] sm:$0xff]
        %v1053 = vld [vmem:[#allocation2 + $0x20] sm:$0xff]
        %v1054 = vld [vmem:[#allocation2 + $0x28] sm:$0xff]
        %v1055 = vld [vmem:[#allocation2 + $0x30] sm:$0xff]
        %v1056 = vld [vmem:[#allocation2 + $0x38] sm:$0xff]
        %v1057 = vld [vmem:[#allocation2 + $0x40] sm:$0xff]
        %v1058 = vld [vmem:[#allocation2 + $0x48] sm:$0xff]
        %v1059 = vld [vmem:[#allocation2 + $0x50] sm:$0xff]
        %v1060 = vld [vmem:[#allocation2 + $0x58] sm:$0xff]
        %v1061 = vld [vmem:[#allocation2 + $0x60] sm:$0xff]
        %v1062 = vld [vmem:[#allocation2 + $0x68] sm:$0xff]
        %v1063 = vld [vmem:[#allocation2 + $0x70] sm:$0xff]
        %v1064 = vld [vmem:[#allocation2 + $0x78] sm:$0xff]
        %v1065 = vld [vmem:[#allocation2 + $0x80] sm:$0xff]
        %v1066 = vld [vmem:[#allocation2 + $0x88] sm:$0xff]
        %v1067 = vld [vmem:[#allocation2 + $0x90] sm:$0xff]
        %v1068 = vld [vmem:[#allocation2 + $0x98] sm:$0xff]
        %v1069 = vld [vmem:[#allocation2 + $0xa0] sm:$0xff]
        %v1070 = vld [vmem:[#allocation2 + $0xa8] sm:$0xff]
        %v1071 = vld [vmem:[#allocation2 + $0xb0] sm:$0xff]
        %v1072 = vld [vmem:[#allocation2 + $0xb8] sm:$0xff]
        %v1073 = vld [vmem:[#allocation2 + $0xc0] sm:$0xff]
        %v1074 = vld [vmem:[#allocation2 + $0xc8] sm:$0xff]
        %v1075 = vld [vmem:[#allocation2 + $0xd0] sm:$0xff]
        %v1076 = vld [vmem:[#allocation2 + $0xd8] sm:$0xff]
        %v1077 = vld [vmem:[#allocation2 + $0xe0] sm:$0xff]
        %v1078 = vld [vmem:[#allocation2 + $0xe8] sm:$0xff]
        %v1079 = vld [vmem:[#allocation2 + $0xf0] sm:$0xff]
        %v1080 = vld [vmem:[#allocation2 + $0xf8] sm:$0xff]
        %v1081 = vld [vmem:[#allocation2 + $0x100] sm:$0xff]
        %v1082 = vld [vmem:[#allocation2 + $0x108] sm:$0xff]
        %v1083 = vld [vmem:[#allocation2 + $0x110] sm:$0xff]
        %v1084 = vld [vmem:[#allocation2 + $0x118] sm:$0xff]
        %v1085 = vld [vmem:[#allocation2 + $0x120] sm:$0xff]
        %v1086 = vld [vmem:[#allocation2 + $0x128] sm:$0xff]
        %v1087 = vld [vmem:[#allocation2 + $0x130] sm:$0xff]
        %v1088 = vld [vmem:[#allocation2 + $0x138] sm:$0xff]
        %v1089 = vld [vmem:[#allocation2 + $0x140] sm:$0xff]
        %v1090 = vld [vmem:[#allocation2 + $0x148] sm:$0xff]
        %v1091 = vld [vmem:[#allocation2 + $0x150] sm:$0xff]
        %v1092 = vld [vmem:[#allocation2 + $0x158] sm:$0xff]
        %v1093 = vld [vmem:[#allocation2 + $0x160] sm:$0xff]
        %v1094 = vld [vmem:[#allocation2 + $0x168] sm:$0xff]
        %v1095 = vld [vmem:[#allocation2 + $0x170] sm:$0xff]
        %v1096 = vld [vmem:[#allocation2 + $0x178] sm:$0xff]
        %v1097 = vld [vmem:[#allocation2 + $0x180] sm:$0xff]
        %v1098 = vld [vmem:[#allocation2 + $0x188] sm:$0xff]
        %v1099 = vld [vmem:[#allocation2 + $0x190] sm:$0xff]
        %v1100 = vld [vmem:[#allocation2 + $0x198] sm:$0xff]
        %v1101 = vld [vmem:[#allocation2 + $0x1a0] sm:$0xff]
        %v1102 = vld [vmem:[#allocation2 + $0x1a8] sm:$0xff]
        %v1103 = vld [vmem:[#allocation2 + $0x1b0] sm:$0xff]
        %v1104 = vld [vmem:[#allocation2 + $0x1b8] sm:$0xff]
        %v1105 = vld [vmem:[#allocation2 + $0x1c0] sm:$0xff]
        %v1106 = vld [vmem:[#allocation2 + $0x1c8] sm:$0xff]
        %v1107 = vld [vmem:[#allocation2 + $0x1d0] sm:$0xff]
        %v1108 = vld [vmem:[#allocation2 + $0x1d8] sm:$0xff]
        %v1109 = vld [vmem:[#allocation2 + $0x1e0] sm:$0xff]
        %v1110 = vld [vmem:[#allocation2 + $0x1e8] sm:$0xff]
        %v1111 = vld [vmem:[#allocation2 + $0x1f0] sm:$0xff]
        %v1112 = vld [vmem:[#allocation2 + $0x1f8] sm:$0xff]
        %v1113 = vld [vmem:[#allocation2 + $0x200] sm:$0xff]
        %v1114 = vld [vmem:[#allocation2 + $0x208] sm:$0xff]
        %v1115 = vld [vmem:[#allocation2 + $0x210] sm:$0xff]
        %v1116 = vld [vmem:[#allocation2 + $0x218] sm:$0xff]
        %v1117 = vld [vmem:[#allocation2 + $0x220] sm:$0xff]
        %v1118 = vld [vmem:[#allocation2 + $0x228] sm:$0xff]
        %v1119 = vld [vmem:[#allocation2 + $0x230] sm:$0xff]
        %v1120 = vld [vmem:[#allocation2 + $0x238] sm:$0xff]
        %v1121 = vld [vmem:[#allocation2 + $0x240] sm:$0xff]
        %v1122 = vld [vmem:[#allocation2 + $0x248] sm:$0xff]
        %v1123 = vld [vmem:[#allocation2 + $0x250] sm:$0xff]
        %v1124 = vld [vmem:[#allocation2 + $0x258] sm:$0xff]
        %v1125 = vld [vmem:[#allocation2 + $0x260] sm:$0xff]
        %v1126 = vld [vmem:[#allocation2 + $0x268] sm:$0xff]
        %v1127 = vld [vmem:[#allocation2 + $0x270] sm:$0xff]
        %v1128 = vld [vmem:[#allocation2 + $0x278] sm:$0xff]
        %v1129 = vld [vmem:[#allocation2 + $0x280] sm:$0xff]
        %v1130 = vld [vmem:[#allocation2 + $0x288] sm:$0xff]
        %v1131 = vld [vmem:[#allocation2 + $0x290] sm:$0xff]
        %v1132 = vld [vmem:[#allocation2 + $0x298] sm:$0xff]
        %v1133 = vld [vmem:[#allocation2 + $0x2a0] sm:$0xff]
        %v1134 = vld [vmem:[#allocation2 + $0x2a8] sm:$0xff]
        %v1135 = vld [vmem:[#allocation2 + $0x2b0] sm:$0xff]
        %v1136 = vld [vmem:[#allocation2 + $0x2b8] sm:$0xff]
        %v1137 = vld [vmem:[#allocation2 + $0x2c0] sm:$0xff]
        %v1138 = vld [vmem:[#allocation2 + $0x2c8] sm:$0xff]
        %v1139 = vld [vmem:[#allocation2 + $0x2d0] sm:$0xff]
        %v1140 = vld [vmem:[#allocation2 + $0x2d8] sm:$0xff]
        %v1141 = vld [vmem:[#allocation2 + $0x2e0] sm:$0xff]
        %v1142 = vld [vmem:[#allocation2 + $0x2e8] sm:$0xff]
        %v1143 = vld [vmem:[#allocation2 + $0x2f0] sm:$0xff]
        %v1144 = vld [vmem:[#allocation2 + $0x2f8] sm:$0xff]
        %v1145 = vld [vmem:[#allocation2 + $0x300] sm:$0xff]
        %v1146 = vld [vmem:[#allocation2 + $0x308] sm:$0xff]
        %v1147 = vld [vmem:[#allocation2 + $0x310] sm:$0xff]
        %v1148 = vld [vmem:[#allocation2 + $0x318] sm:$0xff]
        %v1149 = vld [vmem:[#allocation2 + $0x320] sm:$0xff]
        %v1150 = vld [vmem:[#allocation2 + $0x328] sm:$0xff]
        %v1151 = vld [vmem:[#allocation2 + $0x330] sm:$0xff]
        %v1152 = vld [vmem:[#allocation2 + $0x338] sm:$0xff]
        %v1153 = vld [vmem:[#allocation2 + $0x340] sm:$0xff]
        %v1154 = vld [vmem:[#allocation2 + $0x348] sm:$0xff]
        %v1155 = vld [vmem:[#allocation2 + $0x350] sm:$0xff]
        %v1156 = vld [vmem:[#allocation2 + $0x358] sm:$0xff]
        %v1157 = vld [vmem:[#allocation2 + $0x360] sm:$0xff]
        %v1158 = vld [vmem:[#allocation2 + $0x368] sm:$0xff]
        %v1159 = vld [vmem:[#allocation2 + $0x370] sm:$0xff]
        %v1160 = vld [vmem:[#allocation2 + $0x378] sm:$0xff]
        %v1161 = vld [vmem:[#allocation2 + $0x380] sm:$0xff]
        %v1162 = vld [vmem:[#allocation2 + $0x388] sm:$0xff]
        %v1163 = vld [vmem:[#allocation2 + $0x390] sm:$0xff]
        %v1164 = vld [vmem:[#allocation2 + $0x398] sm:$0xff]
        %v1165 = vld [vmem:[#allocation2 + $0x3a0] sm:$0xff]
        %v1166 = vld [vmem:[#allocation2 + $0x3a8] sm:$0xff]
        %v1167 = vld [vmem:[#allocation2 + $0x3b0] sm:$0xff]
        %v1168 = vld [vmem:[#allocation2 + $0x3b8] sm:$0xff]
        %v1169 = vld [vmem:[#allocation2 + $0x3c0] sm:$0xff]
        %v1170 = vld [vmem:[#allocation2 + $0x3c8] sm:$0xff]
        %v1171 = vld [vmem:[#allocation2 + $0x3d0] sm:$0xff]
        %v1172 = vld [vmem:[#allocation2 + $0x3d8] sm:$0xff]
        %v1173 = vld [vmem:[#allocation2 + $0x3e0] sm:$0xff]
        %v1174 = vld [vmem:[#allocation2 + $0x3e8] sm:$0xff]
        %v1175 = vld [vmem:[#allocation2 + $0x3f0] sm:$0xff]
        %v1176 = vld [vmem:[#allocation2 + $0x3f8] sm:$0xff]
        %v1177 = vld [vmem:[%s4] sm:$0xf]
        %v1179 = vlaneseq
        %v1180 = vshrl.u32 %v1179, 7
        %v1181 = vsub.s32 0, %v1180
        %v1182 = vrot.slane %v1177, %v1181
        %v1183 = vlaneseq
        %v1184 = vshrl.u32 %v1183, 7
        %v1185 = vsub.s32 1, %v1184
        %v1186 = vrot.slane %v1177, %v1185
        %v1187 = vlaneseq
        %v1188 = vshrl.u32 %v1187, 7
        %v1189 = vsub.s32 2, %v1188
        %v1190 = vrot.slane %v1177, %v1189
        %v1191 = vlaneseq
        %v1192 = vshrl.u32 %v1191, 7
        %v1193 = vsub.s32 3, %v1192
        %v1194 = vrot.slane %v1177, %v1193
        %v1327 = vunpack.c.l.b16 %v1049
        %v1328 = vunpack.c.h.b16 %v1049
        %v1329 = vunpack.c.l.b16 %v1050
        %v1330 = vunpack.c.h.b16 %v1050
        %v1331 = vunpack.c.l.b16 %v1051
        %v1332 = vunpack.c.h.b16 %v1051
        %v1333 = vunpack.c.l.b16 %v1052
        %v1334 = vunpack.c.h.b16 %v1052
        %v1335 = vunpack.c.l.b16 %v1053
        %v1336 = vunpack.c.h.b16 %v1053
        %v1337 = vunpack.c.l.b16 %v1054
        %v1338 = vunpack.c.h.b16 %v1054
        %v1339 = vunpack.c.l.b16 %v1055
        %v1340 = vunpack.c.h.b16 %v1055
        %v1341 = vunpack.c.l.b16 %v1056
        %v1342 = vunpack.c.h.b16 %v1056
        %v1343 = vunpack.c.l.b16 %v1057
        %v1344 = vunpack.c.h.b16 %v1057
        %v1345 = vunpack.c.l.b16 %v1058
        %v1346 = vunpack.c.h.b16 %v1058
        %v1347 = vunpack.c.l.b16 %v1059
        %v1348 = vunpack.c.h.b16 %v1059
        %v1349 = vunpack.c.l.b16 %v1060
        %v1350 = vunpack.c.h.b16 %v1060
        %v1351 = vunpack.c.l.b16 %v1061
        %v1352 = vunpack.c.h.b16 %v1061
        %v1353 = vunpack.c.l.b16 %v1062
        %v1354 = vunpack.c.h.b16 %v1062
        %v1355 = vunpack.c.l.b16 %v1063
        %v1356 = vunpack.c.h.b16 %v1063
        %v1357 = vunpack.c.l.b16 %v1064
        %v1358 = vunpack.c.h.b16 %v1064
        %v1359 = vunpack.c.l.b16 %v1065
        %v1360 = vunpack.c.h.b16 %v1065
        %v1361 = vunpack.c.l.b16 %v1066
        %v1362 = vunpack.c.h.b16 %v1066
        %v1363 = vunpack.c.l.b16 %v1067
        %v1364 = vunpack.c.h.b16 %v1067
        %v1365 = vunpack.c.l.b16 %v1068
        %v1366 = vunpack.c.h.b16 %v1068
        %v1367 = vunpack.c.l.b16 %v1069
        %v1368 = vunpack.c.h.b16 %v1069
        %v1369 = vunpack.c.l.b16 %v1070
        %v1370 = vunpack.c.h.b16 %v1070
        %v1371 = vunpack.c.l.b16 %v1071
        %v1372 = vunpack.c.h.b16 %v1071
        %v1373 = vunpack.c.l.b16 %v1072
        %v1374 = vunpack.c.h.b16 %v1072
        %v1375 = vunpack.c.l.b16 %v1073
        %v1376 = vunpack.c.h.b16 %v1073
        %v1377 = vunpack.c.l.b16 %v1074
        %v1378 = vunpack.c.h.b16 %v1074
        %v1379 = vunpack.c.l.b16 %v1075
        %v1380 = vunpack.c.h.b16 %v1075
        %v1381 = vunpack.c.l.b16 %v1076
        %v1382 = vunpack.c.h.b16 %v1076
        %v1383 = vunpack.c.l.b16 %v1077
        %v1384 = vunpack.c.h.b16 %v1077
        %v1385 = vunpack.c.l.b16 %v1078
        %v1386 = vunpack.c.h.b16 %v1078
        %v1387 = vunpack.c.l.b16 %v1079
        %v1388 = vunpack.c.h.b16 %v1079
        %v1389 = vunpack.c.l.b16 %v1080
        %v1390 = vunpack.c.h.b16 %v1080
        %v1391 = vunpack.c.l.b16 %v1081
        %v1392 = vunpack.c.h.b16 %v1081
        %v1393 = vunpack.c.l.b16 %v1082
        %v1394 = vunpack.c.h.b16 %v1082
        %v1395 = vunpack.c.l.b16 %v1083
        %v1396 = vunpack.c.h.b16 %v1083
        %v1397 = vunpack.c.l.b16 %v1084
        %v1398 = vunpack.c.h.b16 %v1084
        %v1399 = vunpack.c.l.b16 %v1085
        %v1400 = vunpack.c.h.b16 %v1085
        %v1401 = vunpack.c.l.b16 %v1086
        %v1402 = vunpack.c.h.b16 %v1086
        %v1403 = vunpack.c.l.b16 %v1087
        %v1404 = vunpack.c.h.b16 %v1087
        %v1405 = vunpack.c.l.b16 %v1088
        %v1406 = vunpack.c.h.b16 %v1088
        %v1407 = vunpack.c.l.b16 %v1089
        %v1408 = vunpack.c.h.b16 %v1089
        %v1409 = vunpack.c.l.b16 %v1090
        %v1410 = vunpack.c.h.b16 %v1090
        %v1411 = vunpack.c.l.b16 %v1091
        %v1412 = vunpack.c.h.b16 %v1091
        %v1413 = vunpack.c.l.b16 %v1092
        %v1414 = vunpack.c.h.b16 %v1092
        %v1415 = vunpack.c.l.b16 %v1093
        %v1416 = vunpack.c.h.b16 %v1093
        %v1417 = vunpack.c.l.b16 %v1094
        %v1418 = vunpack.c.h.b16 %v1094
        %v1419 = vunpack.c.l.b16 %v1095
        %v1420 = vunpack.c.h.b16 %v1095
        %v1421 = vunpack.c.l.b16 %v1096
        %v1422 = vunpack.c.h.b16 %v1096
        %v1423 = vunpack.c.l.b16 %v1097
        %v1424 = vunpack.c.h.b16 %v1097
        %v1425 = vunpack.c.l.b16 %v1098
        %v1426 = vunpack.c.h.b16 %v1098
        %v1427 = vunpack.c.l.b16 %v1099
        %v1428 = vunpack.c.h.b16 %v1099
        %v1429 = vunpack.c.l.b16 %v1100
        %v1430 = vunpack.c.h.b16 %v1100
        %v1431 = vunpack.c.l.b16 %v1101
        %v1432 = vunpack.c.h.b16 %v1101
        %v1433 = vunpack.c.l.b16 %v1102
        %v1434 = vunpack.c.h.b16 %v1102
        %v1435 = vunpack.c.l.b16 %v1103
        %v1436 = vunpack.c.h.b16 %v1103
        %v1437 = vunpack.c.l.b16 %v1104
        %v1438 = vunpack.c.h.b16 %v1104
        %v1439 = vunpack.c.l.b16 %v1105
        %v1440 = vunpack.c.h.b16 %v1105
        %v1441 = vunpack.c.l.b16 %v1106
        %v1442 = vunpack.c.h.b16 %v1106
        %v1443 = vunpack.c.l.b16 %v1107
        %v1444 = vunpack.c.h.b16 %v1107
        %v1445 = vunpack.c.l.b16 %v1108
        %v1446 = vunpack.c.h.b16 %v1108
        %v1447 = vunpack.c.l.b16 %v1109
        %v1448 = vunpack.c.h.b16 %v1109
        %v1449 = vunpack.c.l.b16 %v1110
        %v1450 = vunpack.c.h.b16 %v1110
        %v1451 = vunpack.c.l.b16 %v1111
        %v1452 = vunpack.c.h.b16 %v1111
        %v1453 = vunpack.c.l.b16 %v1112
        %v1454 = vunpack.c.h.b16 %v1112
        %v1455 = vunpack.c.l.b16 %v1113
        %v1456 = vunpack.c.h.b16 %v1113
        %v1457 = vunpack.c.l.b16 %v1114
        %v1458 = vunpack.c.h.b16 %v1114
        %v1459 = vunpack.c.l.b16 %v1115
        %v1460 = vunpack.c.h.b16 %v1115
        %v1461 = vunpack.c.l.b16 %v1116
        %v1462 = vunpack.c.h.b16 %v1116
        %v1463 = vunpack.c.l.b16 %v1117
        %v1464 = vunpack.c.h.b16 %v1117
        %v1465 = vunpack.c.l.b16 %v1118
        %v1466 = vunpack.c.h.b16 %v1118
        %v1467 = vunpack.c.l.b16 %v1119
        %v1468 = vunpack.c.h.b16 %v1119
        %v1469 = vunpack.c.l.b16 %v1120
        %v1470 = vunpack.c.h.b16 %v1120
        %v1471 = vunpack.c.l.b16 %v1121
        %v1472 = vunpack.c.h.b16 %v1121
        %v1473 = vunpack.c.l.b16 %v1122
        %v1474 = vunpack.c.h.b16 %v1122
        %v1475 = vunpack.c.l.b16 %v1123
        %v1476 = vunpack.c.h.b16 %v1123
        %v1477 = vunpack.c.l.b16 %v1124
        %v1478 = vunpack.c.h.b16 %v1124
        %v1479 = vunpack.c.l.b16 %v1125
        %v1480 = vunpack.c.h.b16 %v1125
        %v1481 = vunpack.c.l.b16 %v1126
        %v1482 = vunpack.c.h.b16 %v1126
        %v1483 = vunpack.c.l.b16 %v1127
        %v1484 = vunpack.c.h.b16 %v1127
        %v1485 = vunpack.c.l.b16 %v1128
        %v1486 = vunpack.c.h.b16 %v1128
        %v1487 = vunpack.c.l.b16 %v1129
        %v1488 = vunpack.c.h.b16 %v1129
        %v1489 = vunpack.c.l.b16 %v1130
        %v1490 = vunpack.c.h.b16 %v1130
        %v1491 = vunpack.c.l.b16 %v1131
        %v1492 = vunpack.c.h.b16 %v1131
        %v1493 = vunpack.c.l.b16 %v1132
        %v1494 = vunpack.c.h.b16 %v1132
        %v1495 = vunpack.c.l.b16 %v1133
        %v1496 = vunpack.c.h.b16 %v1133
        %v1497 = vunpack.c.l.b16 %v1134
        %v1498 = vunpack.c.h.b16 %v1134
        %v1499 = vunpack.c.l.b16 %v1135
        %v1500 = vunpack.c.h.b16 %v1135
        %v1501 = vunpack.c.l.b16 %v1136
        %v1502 = vunpack.c.h.b16 %v1136
        %v1503 = vunpack.c.l.b16 %v1137
        %v1504 = vunpack.c.h.b16 %v1137
        %v1505 = vunpack.c.l.b16 %v1138
        %v1506 = vunpack.c.h.b16 %v1138
        %v1507 = vunpack.c.l.b16 %v1139
        %v1508 = vunpack.c.h.b16 %v1139
        %v1509 = vunpack.c.l.b16 %v1140
        %v1510 = vunpack.c.h.b16 %v1140
        %v1511 = vunpack.c.l.b16 %v1141
        %v1512 = vunpack.c.h.b16 %v1141
        %v1513 = vunpack.c.l.b16 %v1142
        %v1514 = vunpack.c.h.b16 %v1142
        %v1515 = vunpack.c.l.b16 %v1143
        %v1516 = vunpack.c.h.b16 %v1143
        %v1517 = vunpack.c.l.b16 %v1144
        %v1518 = vunpack.c.h.b16 %v1144
        %v1519 = vunpack.c.l.b16 %v1145
        %v1520 = vunpack.c.h.b16 %v1145
        %v1521 = vunpack.c.l.b16 %v1146
        %v1522 = vunpack.c.h.b16 %v1146
        %v1523 = vunpack.c.l.b16 %v1147
        %v1524 = vunpack.c.h.b16 %v1147
        %v1525 = vunpack.c.l.b16 %v1148
        %v1526 = vunpack.c.h.b16 %v1148
        %v1527 = vunpack.c.l.b16 %v1149
        %v1528 = vunpack.c.h.b16 %v1149
        %v1529 = vunpack.c.l.b16 %v1150
        %v1530 = vunpack.c.h.b16 %v1150
        %v1531 = vunpack.c.l.b16 %v1151
        %v1532 = vunpack.c.h.b16 %v1151
        %v1533 = vunpack.c.l.b16 %v1152
        %v1534 = vunpack.c.h.b16 %v1152
        %v1535 = vunpack.c.l.b16 %v1153
        %v1536 = vunpack.c.h.b16 %v1153
        %v1537 = vunpack.c.l.b16 %v1154
        %v1538 = vunpack.c.h.b16 %v1154
        %v1539 = vunpack.c.l.b16 %v1155
        %v1540 = vunpack.c.h.b16 %v1155
        %v1541 = vunpack.c.l.b16 %v1156
        %v1542 = vunpack.c.h.b16 %v1156
        %v1543 = vunpack.c.l.b16 %v1157
        %v1544 = vunpack.c.h.b16 %v1157
        %v1545 = vunpack.c.l.b16 %v1158
        %v1546 = vunpack.c.h.b16 %v1158
        %v1547 = vunpack.c.l.b16 %v1159
        %v1548 = vunpack.c.h.b16 %v1159
        %v1549 = vunpack.c.l.b16 %v1160
        %v1550 = vunpack.c.h.b16 %v1160
        %v1551 = vunpack.c.l.b16 %v1161
        %v1552 = vunpack.c.h.b16 %v1161
        %v1553 = vunpack.c.l.b16 %v1162
        %v1554 = vunpack.c.h.b16 %v1162
        %v1555 = vunpack.c.l.b16 %v1163
        %v1556 = vunpack.c.h.b16 %v1163
        %v1557 = vunpack.c.l.b16 %v1164
        %v1558 = vunpack.c.h.b16 %v1164
        %v1559 = vunpack.c.l.b16 %v1165
        %v1560 = vunpack.c.h.b16 %v1165
        %v1561 = vunpack.c.l.b16 %v1166
        %v1562 = vunpack.c.h.b16 %v1166
        %v1563 = vunpack.c.l.b16 %v1167
        %v1564 = vunpack.c.h.b16 %v1167
        %v1565 = vunpack.c.l.b16 %v1168
        %v1566 = vunpack.c.h.b16 %v1168
        %v1567 = vunpack.c.l.b16 %v1169
        %v1568 = vunpack.c.h.b16 %v1169
        %v1569 = vunpack.c.l.b16 %v1170
        %v1570 = vunpack.c.h.b16 %v1170
        %v1571 = vunpack.c.l.b16 %v1171
        %v1572 = vunpack.c.h.b16 %v1171
        %v1573 = vunpack.c.l.b16 %v1172
        %v1574 = vunpack.c.h.b16 %v1172
        %v1575 = vunpack.c.l.b16 %v1173
        %v1576 = vunpack.c.h.b16 %v1173
        %v1577 = vunpack.c.l.b16 %v1174
        %v1578 = vunpack.c.h.b16 %v1174
        %v1579 = vunpack.c.l.b16 %v1175
        %v1580 = vunpack.c.h.b16 %v1175
        %v1581 = vunpack.c.l.b16 %v1176
        %v1582 = vunpack.c.h.b16 %v1176
        %v1583 = vpack.c.b16 %v1331, %v1327
        %v1584 = vpack.c.b16 %v1332, %v1328
        %v1585 = vpack.c.b16 %v1333, %v1329
        %v1586 = vpack.c.b16 %v1334, %v1330
        %v1587 = vpack.c.b16 %v1339, %v1335
        %v1588 = vpack.c.b16 %v1340, %v1336
        %v1589 = vpack.c.b16 %v1341, %v1337
        %v1590 = vpack.c.b16 %v1342, %v1338
        %v1591 = vpack.c.b16 %v1347, %v1343
        %v1592 = vpack.c.b16 %v1348, %v1344
        %v1593 = vpack.c.b16 %v1349, %v1345
        %v1594 = vpack.c.b16 %v1350, %v1346
        %v1595 = vpack.c.b16 %v1355, %v1351
        %v1596 = vpack.c.b16 %v1356, %v1352
        %v1597 = vpack.c.b16 %v1357, %v1353
        %v1598 = vpack.c.b16 %v1358, %v1354
        %v1599 = vpack.c.b16 %v1363, %v1359
        %v1600 = vpack.c.b16 %v1364, %v1360
        %v1601 = vpack.c.b16 %v1365, %v1361
        %v1602 = vpack.c.b16 %v1366, %v1362
        %v1603 = vpack.c.b16 %v1371, %v1367
        %v1604 = vpack.c.b16 %v1372, %v1368
        %v1605 = vpack.c.b16 %v1373, %v1369
        %v1606 = vpack.c.b16 %v1374, %v1370
        %v1607 = vpack.c.b16 %v1379, %v1375
        %v1608 = vpack.c.b16 %v1380, %v1376
        %v1609 = vpack.c.b16 %v1381, %v1377
        %v1610 = vpack.c.b16 %v1382, %v1378
        %v1611 = vpack.c.b16 %v1387, %v1383
        %v1612 = vpack.c.b16 %v1388, %v1384
        %v1613 = vpack.c.b16 %v1389, %v1385
        %v1614 = vpack.c.b16 %v1390, %v1386
        %v1615 = vpack.c.b16 %v1395, %v1391
        %v1616 = vpack.c.b16 %v1396, %v1392
        %v1617 = vpack.c.b16 %v1397, %v1393
        %v1618 = vpack.c.b16 %v1398, %v1394
        %v1619 = vpack.c.b16 %v1403, %v1399
        %v1620 = vpack.c.b16 %v1404, %v1400
        %v1621 = vpack.c.b16 %v1405, %v1401
        %v1622 = vpack.c.b16 %v1406, %v1402
        %v1623 = vpack.c.b16 %v1411, %v1407
        %v1624 = vpack.c.b16 %v1412, %v1408
        %v1625 = vpack.c.b16 %v1413, %v1409
        %v1626 = vpack.c.b16 %v1414, %v1410
        %v1627 = vpack.c.b16 %v1419, %v1415
        %v1628 = vpack.c.b16 %v1420, %v1416
        %v1629 = vpack.c.b16 %v1421, %v1417
        %v1630 = vpack.c.b16 %v1422, %v1418
        %v1631 = vpack.c.b16 %v1427, %v1423
        %v1632 = vpack.c.b16 %v1428, %v1424
        %v1633 = vpack.c.b16 %v1429, %v1425
        %v1634 = vpack.c.b16 %v1430, %v1426
        %v1635 = vpack.c.b16 %v1435, %v1431
        %v1636 = vpack.c.b16 %v1436, %v1432
        %v1637 = vpack.c.b16 %v1437, %v1433
        %v1638 = vpack.c.b16 %v1438, %v1434
        %v1639 = vpack.c.b16 %v1443, %v1439
        %v1640 = vpack.c.b16 %v1444, %v1440
        %v1641 = vpack.c.b16 %v1445, %v1441
        %v1642 = vpack.c.b16 %v1446, %v1442
        %v1643 = vpack.c.b16 %v1451, %v1447
        %v1644 = vpack.c.b16 %v1452, %v1448
        %v1645 = vpack.c.b16 %v1453, %v1449
        %v1646 = vpack.c.b16 %v1454, %v1450
        %v1647 = vpack.c.b16 %v1459, %v1455
        %v1648 = vpack.c.b16 %v1460, %v1456
        %v1649 = vpack.c.b16 %v1461, %v1457
        %v1650 = vpack.c.b16 %v1462, %v1458
        %v1651 = vpack.c.b16 %v1467, %v1463
        %v1652 = vpack.c.b16 %v1468, %v1464
        %v1653 = vpack.c.b16 %v1469, %v1465
        %v1654 = vpack.c.b16 %v1470, %v1466
        %v1655 = vpack.c.b16 %v1475, %v1471
        %v1656 = vpack.c.b16 %v1476, %v1472
        %v1657 = vpack.c.b16 %v1477, %v1473
        %v1658 = vpack.c.b16 %v1478, %v1474
        %v1659 = vpack.c.b16 %v1483, %v1479
        %v1660 = vpack.c.b16 %v1484, %v1480
        %v1661 = vpack.c.b16 %v1485, %v1481
        %v1662 = vpack.c.b16 %v1486, %v1482
        %v1663 = vpack.c.b16 %v1491, %v1487
        %v1664 = vpack.c.b16 %v1492, %v1488
        %v1665 = vpack.c.b16 %v1493, %v1489
        %v1666 = vpack.c.b16 %v1494, %v1490
        %v1667 = vpack.c.b16 %v1499, %v1495
        %v1668 = vpack.c.b16 %v1500, %v1496
        %v1669 = vpack.c.b16 %v1501, %v1497
        %v1670 = vpack.c.b16 %v1502, %v1498
        %v1671 = vpack.c.b16 %v1507, %v1503
        %v1672 = vpack.c.b16 %v1508, %v1504
        %v1673 = vpack.c.b16 %v1509, %v1505
        %v1674 = vpack.c.b16 %v1510, %v1506
        %v1675 = vpack.c.b16 %v1515, %v1511
        %v1676 = vpack.c.b16 %v1516, %v1512
        %v1677 = vpack.c.b16 %v1517, %v1513
        %v1678 = vpack.c.b16 %v1518, %v1514
        %v1679 = vpack.c.b16 %v1523, %v1519
        %v1680 = vpack.c.b16 %v1524, %v1520
        %v1681 = vpack.c.b16 %v1525, %v1521
        %v1682 = vpack.c.b16 %v1526, %v1522
        %v1683 = vpack.c.b16 %v1531, %v1527
        %v1684 = vpack.c.b16 %v1532, %v1528
        %v1685 = vpack.c.b16 %v1533, %v1529
        %v1686 = vpack.c.b16 %v1534, %v1530
        %v1687 = vpack.c.b16 %v1539, %v1535
        %v1688 = vpack.c.b16 %v1540, %v1536
        %v1689 = vpack.c.b16 %v1541, %v1537
        %v1690 = vpack.c.b16 %v1542, %v1538
        %v1691 = vpack.c.b16 %v1547, %v1543
        %v1692 = vpack.c.b16 %v1548, %v1544
        %v1693 = vpack.c.b16 %v1549, %v1545
        %v1694 = vpack.c.b16 %v1550, %v1546
        %v1695 = vpack.c.b16 %v1555, %v1551
        %v1696 = vpack.c.b16 %v1556, %v1552
        %v1697 = vpack.c.b16 %v1557, %v1553
        %v1698 = vpack.c.b16 %v1558, %v1554
        %v1699 = vpack.c.b16 %v1563, %v1559
        %v1700 = vpack.c.b16 %v1564, %v1560
        %v1701 = vpack.c.b16 %v1565, %v1561
        %v1702 = vpack.c.b16 %v1566, %v1562
        %v1703 = vpack.c.b16 %v1571, %v1567
        %v1704 = vpack.c.b16 %v1572, %v1568
        %v1705 = vpack.c.b16 %v1573, %v1569
        %v1706 = vpack.c.b16 %v1574, %v1570
        %v1707 = vpack.c.b16 %v1579, %v1575
        %v1708 = vpack.c.b16 %v1580, %v1576
        %v1709 = vpack.c.b16 %v1581, %v1577
        %v1710 = vpack.c.b16 %v1582, %v1578
        %1839 = vmatprep.subr.bf16.mxu0 %v1612
        %1840 = vmatpush1.bf16.msra.mxu0 %v1611
        %1841 = vmatprep.subr.bf16.mxu0 %v1608
        %1842 = vmatpush1.bf16.msra.mxu0 %v1607
        %1843 = vmatprep.subr.bf16.mxu0 %v1604
        %1844 = vmatpush1.bf16.msra.mxu0 %v1603
        %1845 = vmatprep.subr.bf16.mxu0 %v1600
        %1846 = vmatpush1.bf16.msra.mxu0 %v1599
        %1847 = vmatprep.subr.bf16.mxu0 %v1596
        %1848 = vmatpush1.bf16.msra.mxu0 %v1595
        %1849 = vmatprep.subr.bf16.mxu0 %v1592
        %1850 = vmatpush1.bf16.msra.mxu0 %v1591
        %1851 = vmatprep.subr.bf16.mxu0 %v1588
        %1852 = vmatpush1.bf16.msra.mxu0 %v1587
        %1853 = vmatprep.subr.bf16.mxu0 %v1584
        %1854 = vmatpush1.bf16.msra.mxu0 %v1583
        %1855 = vmatprep.subr.bf16.mxu0 %v1644
        %1856 = vmatpush2.bf16.msra.mxu0 %v1643
        %1857 = vmatprep.subr.bf16.mxu0 %v1640
        %1858 = vmatpush2.bf16.msra.mxu0 %v1639
        %1859 = vmatprep.subr.bf16.mxu0 %v1636
        %1860 = vmatpush2.bf16.msra.mxu0 %v1635
        %1861 = vmatprep.subr.bf16.mxu0 %v1632
        %1862 = vmatpush2.bf16.msra.mxu0 %v1631
        %1863 = vmatprep.subr.bf16.mxu0 %v1628
        %1864 = vmatpush2.bf16.msra.mxu0 %v1627
        %1865 = vmatprep.subr.bf16.mxu0 %v1624
        %1866 = vmatpush2.bf16.msra.mxu0 %v1623
        %1867 = vmatprep.subr.bf16.mxu0 %v1620
        %1868 = vmatpush2.bf16.msra.mxu0 %v1619
        %1869 = vmatprep.subr.bf16.mxu0 %v1616
        %1870 = vmatpush2.bf16.msra.mxu0 %v1615
        %1871 = vmatprep.mubr.bf16.mxu0 %v1018
        %1872 = vmatmul.mubr.bf16.gmra.mxu0 %v1017
        %v1873 = vpop.f32.mrf.mxu0
        %v1874 = vadd.f32 %v1182, %v1873
        %v1875 = vpop.f32.mrf.mxu0
        %v1876 = vadd.f32 %v1186, %v1875
        %v1877 = vpop.f32.mrf.mxu0
        %v1878 = vadd.f32 %v1182, %v1877
        %v1879 = vpop.f32.mrf.mxu0
        %v1880 = vadd.f32 %v1186, %v1879
        %1881 = vmatprep.mubr.bf16.mxu0 %v1022
        %1882 = vmatmul.mubr.bf16.gmra.mxu0 %v1021
        %v1883 = vpop.f32.mrf.mxu0
        %v1884 = vadd.f32 %v1182, %v1883
        %v1885 = vpop.f32.mrf.mxu0
        %v1886 = vadd.f32 %v1186, %v1885
        %v1887 = vpop.f32.mrf.mxu0
        %v1888 = vadd.f32 %v1182, %v1887
        %v1889 = vpop.f32.mrf.mxu0
        %v1890 = vadd.f32 %v1186, %v1889
        %1891 = vmatprep.mubr.bf16.mxu0 %v1026
        %1892 = vmatmul.mubr.bf16.gmra.mxu0 %v1025
        %v1893 = vpop.f32.mrf.mxu0
        %v1894 = vadd.f32 %v1182, %v1893
        %v1895 = vpop.f32.mrf.mxu0
        %v1896 = vadd.f32 %v1186, %v1895
        %v1897 = vpop.f32.mrf.mxu0
        %v1898 = vadd.f32 %v1182, %v1897
        %v1899 = vpop.f32.mrf.mxu0
        %v1900 = vadd.f32 %v1186, %v1899
        %1901 = vmatprep.mubr.bf16.mxu0 %v1030
        %1902 = vmatmul.mubr.bf16.gmra.mxu0 %v1029
        %v1903 = vpop.f32.mrf.mxu0
        %v1904 = vadd.f32 %v1182, %v1903
        %v1905 = vpop.f32.mrf.mxu0
        %v1906 = vadd.f32 %v1186, %v1905
        %v1907 = vpop.f32.mrf.mxu0
        %v1908 = vadd.f32 %v1182, %v1907
        %v1909 = vpop.f32.mrf.mxu0
        %v1910 = vadd.f32 %v1186, %v1909
        %1911 = vmatprep.mubr.bf16.mxu0 %v1034
        %1912 = vmatmul.mubr.bf16.gmra.mxu0 %v1033
        %v1913 = vpop.f32.mrf.mxu0
        %v1914 = vadd.f32 %v1182, %v1913
        %v1915 = vpop.f32.mrf.mxu0
        %v1916 = vadd.f32 %v1186, %v1915
        %v1917 = vpop.f32.mrf.mxu0
        %v1918 = vadd.f32 %v1182, %v1917
        %v1919 = vpop.f32.mrf.mxu0
        %v1920 = vadd.f32 %v1186, %v1919
        %1921 = vmatprep.mubr.bf16.mxu0 %v1038
        %1922 = vmatmul.mubr.bf16.gmra.mxu0 %v1037
        %v1923 = vpop.f32.mrf.mxu0
        %v1924 = vadd.f32 %v1182, %v1923
        %v1925 = vpop.f32.mrf.mxu0
        %v1926 = vadd.f32 %v1186, %v1925
        %v1927 = vpop.f32.mrf.mxu0
        %v1928 = vadd.f32 %v1182, %v1927
        %v1929 = vpop.f32.mrf.mxu0
        %v1930 = vadd.f32 %v1186, %v1929
        %1931 = vmatprep.mubr.bf16.mxu0 %v1042
        %1932 = vmatmul.mubr.bf16.gmra.mxu0 %v1041
        %v1933 = vpop.f32.mrf.mxu0
        %v1934 = vadd.f32 %v1182, %v1933
        %v1935 = vpop.f32.mrf.mxu0
        %v1936 = vadd.f32 %v1186, %v1935
        %v1937 = vpop.f32.mrf.mxu0
        %v1938 = vadd.f32 %v1182, %v1937
        %v1939 = vpop.f32.mrf.mxu0
        %v1940 = vadd.f32 %v1186, %v1939
        %1941 = vmatprep.mubr.bf16.mxu0 %v1046
        %1942 = vmatmul.mubr.bf16.gmra.mxu0 %v1045
        %v1943 = vpop.f32.mrf.mxu0
        %v1944 = vadd.f32 %v1182, %v1943
        %v1945 = vpop.f32.mrf.mxu0
        %v1946 = vadd.f32 %v1186, %v1945
        %v1947 = vpop.f32.mrf.mxu0
        %v1948 = vadd.f32 %v1182, %v1947
        %v1949 = vpop.f32.mrf.mxu0
        %v1950 = vadd.f32 %v1186, %v1949
        %1951 = vdwg.mxu0
        %1952 = vmatprep.subr.bf16.mxu0 %v1676
        %1953 = vmatpush1.bf16.msra.mxu0 %v1675
        %1954 = vmatprep.subr.bf16.mxu0 %v1672
        %1955 = vmatpush1.bf16.msra.mxu0 %v1671
        %1956 = vmatprep.subr.bf16.mxu0 %v1668
        %1957 = vmatpush1.bf16.msra.mxu0 %v1667
        %1958 = vmatprep.subr.bf16.mxu0 %v1664
        %1959 = vmatpush1.bf16.msra.mxu0 %v1663
        %1960 = vmatprep.subr.bf16.mxu0 %v1660
        %1961 = vmatpush1.bf16.msra.mxu0 %v1659
        %1962 = vmatprep.subr.bf16.mxu0 %v1656
        %1963 = vmatpush1.bf16.msra.mxu0 %v1655
        %1964 = vmatprep.subr.bf16.mxu0 %v1652
        %1965 = vmatpush1.bf16.msra.mxu0 %v1651
        %1966 = vmatprep.subr.bf16.mxu0 %v1648
        %1967 = vmatpush1.bf16.msra.mxu0 %v1647
        %1968 = vmatprep.subr.bf16.mxu0 %v1708
        %1969 = vmatpush2.bf16.msra.mxu0 %v1707
        %1970 = vmatprep.subr.bf16.mxu0 %v1704
        %1971 = vmatpush2.bf16.msra.mxu0 %v1703
        %1972 = vmatprep.subr.bf16.mxu0 %v1700
        %1973 = vmatpush2.bf16.msra.mxu0 %v1699
        %1974 = vmatprep.subr.bf16.mxu0 %v1696
        %1975 = vmatpush2.bf16.msra.mxu0 %v1695
        %1976 = vmatprep.subr.bf16.mxu0 %v1692
        %1977 = vmatpush2.bf16.msra.mxu0 %v1691
        %1978 = vmatprep.subr.bf16.mxu0 %v1688
        %1979 = vmatpush2.bf16.msra.mxu0 %v1687
        %1980 = vmatprep.subr.bf16.mxu0 %v1684
        %1981 = vmatpush2.bf16.msra.mxu0 %v1683
        %1982 = vmatprep.subr.bf16.mxu0 %v1680
        %1983 = vmatpush2.bf16.msra.mxu0 %v1679
        %1984 = vmatprep.mubr.bf16.mxu0 %v1020
        %1985 = vmatmul.mubr.bf16.gmra.mxu0 %v1019
        %v1986 = vpop.f32.mrf.mxu0
        %v1987 = vadd.f32 %v1874, %v1986
        %v1988 = vpop.f32.mrf.mxu0
        %v1989 = vadd.f32 %v1876, %v1988
        %v1990 = vpop.f32.mrf.mxu0
        %v1991 = vadd.f32 %v1878, %v1990
        %v1992 = vpop.f32.mrf.mxu0
        %v1993 = vadd.f32 %v1880, %v1992
        %1994 = vmatprep.mubr.bf16.mxu0 %v1024
        %1995 = vmatmul.mubr.bf16.gmra.mxu0 %v1023
        %v1996 = vpop.f32.mrf.mxu0
        %v1997 = vadd.f32 %v1884, %v1996
        %v1998 = vpop.f32.mrf.mxu0
        %v1999 = vadd.f32 %v1886, %v1998
        %v2000 = vpop.f32.mrf.mxu0
        %v2001 = vadd.f32 %v1888, %v2000
        %v2002 = vpop.f32.mrf.mxu0
        %v2003 = vadd.f32 %v1890, %v2002
        %2004 = vmatprep.mubr.bf16.mxu0 %v1028
        %2005 = vmatmul.mubr.bf16.gmra.mxu0 %v1027
        %v2006 = vpop.f32.mrf.mxu0
        %v2007 = vadd.f32 %v1894, %v2006
        %v2008 = vpop.f32.mrf.mxu0
        %v2009 = vadd.f32 %v1896, %v2008
        %v2010 = vpop.f32.mrf.mxu0
        %v2011 = vadd.f32 %v1898, %v2010
        %v2012 = vpop.f32.mrf.mxu0
        %v2013 = vadd.f32 %v1900, %v2012
        %2014 = vmatprep.mubr.bf16.mxu0 %v1032
        %2015 = vmatmul.mubr.bf16.gmra.mxu0 %v1031
        %v2016 = vpop.f32.mrf.mxu0
        %v2017 = vadd.f32 %v1904, %v2016
        %v2018 = vpop.f32.mrf.mxu0
        %v2019 = vadd.f32 %v1906, %v2018
        %v2020 = vpop.f32.mrf.mxu0
        %v2021 = vadd.f32 %v1908, %v2020
        %v2022 = vpop.f32.mrf.mxu0
        %v2023 = vadd.f32 %v1910, %v2022
        %2024 = vmatprep.mubr.bf16.mxu0 %v1036
        %2025 = vmatmul.mubr.bf16.gmra.mxu0 %v1035
        %v2026 = vpop.f32.mrf.mxu0
        %v2027 = vadd.f32 %v1914, %v2026
        %v2028 = vpop.f32.mrf.mxu0
        %v2029 = vadd.f32 %v1916, %v2028
        %v2030 = vpop.f32.mrf.mxu0
        %v2031 = vadd.f32 %v1918, %v2030
        %v2032 = vpop.f32.mrf.mxu0
        %v2033 = vadd.f32 %v1920, %v2032
        %2034 = vmatprep.mubr.bf16.mxu0 %v1040
        %2035 = vmatmul.mubr.bf16.gmra.mxu0 %v1039
        %v2036 = vpop.f32.mrf.mxu0
        %v2037 = vadd.f32 %v1924, %v2036
        %v2038 = vpop.f32.mrf.mxu0
        %v2039 = vadd.f32 %v1926, %v2038
        %v2040 = vpop.f32.mrf.mxu0
        %v2041 = vadd.f32 %v1928, %v2040
        %v2042 = vpop.f32.mrf.mxu0
        %v2043 = vadd.f32 %v1930, %v2042
        %2044 = vmatprep.mubr.bf16.mxu0 %v1044
        %2045 = vmatmul.mubr.bf16.gmra.mxu0 %v1043
        %v2046 = vpop.f32.mrf.mxu0
        %v2047 = vadd.f32 %v1934, %v2046
        %v2048 = vpop.f32.mrf.mxu0
        %v2049 = vadd.f32 %v1936, %v2048
        %v2050 = vpop.f32.mrf.mxu0
        %v2051 = vadd.f32 %v1938, %v2050
        %v2052 = vpop.f32.mrf.mxu0
        %v2053 = vadd.f32 %v1940, %v2052
        %2054 = vmatprep.mubr.bf16.mxu0 %v1048
        %2055 = vmatmul.mubr.bf16.gmra.mxu0 %v1047
        %v2056 = vpop.f32.mrf.mxu0
        %v2057 = vadd.f32 %v1944, %v2056
        %v2058 = vpop.f32.mrf.mxu0
        %v2059 = vadd.f32 %v1946, %v2058
        %v2060 = vpop.f32.mrf.mxu0
        %v2061 = vadd.f32 %v1948, %v2060
        %v2062 = vpop.f32.mrf.mxu0
        %v2063 = vadd.f32 %v1950, %v2062
        %2064 = vdwg.mxu0
        %2065 = vmatprep.subr.bf16.mxu0 %v1614
        %2066 = vmatpush1.bf16.msra.mxu0 %v1613
        %2067 = vmatprep.subr.bf16.mxu0 %v1610
        %2068 = vmatpush1.bf16.msra.mxu0 %v1609
        %2069 = vmatprep.subr.bf16.mxu0 %v1606
        %2070 = vmatpush1.bf16.msra.mxu0 %v1605
        %2071 = vmatprep.subr.bf16.mxu0 %v1602
        %2072 = vmatpush1.bf16.msra.mxu0 %v1601
        %2073 = vmatprep.subr.bf16.mxu0 %v1598
        %2074 = vmatpush1.bf16.msra.mxu0 %v1597
        %2075 = vmatprep.subr.bf16.mxu0 %v1594
        %2076 = vmatpush1.bf16.msra.mxu0 %v1593
        %2077 = vmatprep.subr.bf16.mxu0 %v1590
        %2078 = vmatpush1.bf16.msra.mxu0 %v1589
        %2079 = vmatprep.subr.bf16.mxu0 %v1586
        %2080 = vmatpush1.bf16.msra.mxu0 %v1585
        %2081 = vmatprep.subr.bf16.mxu0 %v1646
        %2082 = vmatpush2.bf16.msra.mxu0 %v1645
        %2083 = vmatprep.subr.bf16.mxu0 %v1642
        %2084 = vmatpush2.bf16.msra.mxu0 %v1641
        %2085 = vmatprep.subr.bf16.mxu0 %v1638
        %2086 = vmatpush2.bf16.msra.mxu0 %v1637
        %2087 = vmatprep.subr.bf16.mxu0 %v1634
        %2088 = vmatpush2.bf16.msra.mxu0 %v1633
        %2089 = vmatprep.subr.bf16.mxu0 %v1630
        %2090 = vmatpush2.bf16.msra.mxu0 %v1629
        %2091 = vmatprep.subr.bf16.mxu0 %v1626
        %2092 = vmatpush2.bf16.msra.mxu0 %v1625
        %2093 = vmatprep.subr.bf16.mxu0 %v1622
        %2094 = vmatpush2.bf16.msra.mxu0 %v1621
        %2095 = vmatprep.subr.bf16.mxu0 %v1618
        %2096 = vmatpush2.bf16.msra.mxu0 %v1617
        %2097 = vmatprep.mubr.bf16.mxu0 %v1018
        %2098 = vmatmul.mubr.bf16.gmra.mxu0 %v1017
        %v2099 = vpop.f32.mrf.mxu0
        %v2100 = vadd.f32 %v1190, %v2099
        %v2101 = vpop.f32.mrf.mxu0
        %v2102 = vadd.f32 %v1194, %v2101
        %v2103 = vpop.f32.mrf.mxu0
        %v2104 = vadd.f32 %v1190, %v2103
        %v2105 = vpop.f32.mrf.mxu0
        %v2106 = vadd.f32 %v1194, %v2105
        %2107 = vmatprep.mubr.bf16.mxu0 %v1022
        %2108 = vmatmul.mubr.bf16.gmra.mxu0 %v1021
        %v2109 = vpop.f32.mrf.mxu0
        %v2110 = vadd.f32 %v1190, %v2109
        %v2111 = vpop.f32.mrf.mxu0
        %v2112 = vadd.f32 %v1194, %v2111
        %v2113 = vpop.f32.mrf.mxu0
        %v2114 = vadd.f32 %v1190, %v2113
        %v2115 = vpop.f32.mrf.mxu0
        %v2116 = vadd.f32 %v1194, %v2115
        %2117 = vmatprep.mubr.bf16.mxu0 %v1026
        %2118 = vmatmul.mubr.bf16.gmra.mxu0 %v1025
        %v2119 = vpop.f32.mrf.mxu0
        %v2120 = vadd.f32 %v1190, %v2119
        %v2121 = vpop.f32.mrf.mxu0
        %v2122 = vadd.f32 %v1194, %v2121
        %v2123 = vpop.f32.mrf.mxu0
        %v2124 = vadd.f32 %v1190, %v2123
        %v2125 = vpop.f32.mrf.mxu0
        %v2126 = vadd.f32 %v1194, %v2125
        %2127 = vmatprep.mubr.bf16.mxu0 %v1030
        %2128 = vmatmul.mubr.bf16.gmra.mxu0 %v1029
        %v2129 = vpop.f32.mrf.mxu0
        %v2130 = vadd.f32 %v1190, %v2129
        %v2131 = vpop.f32.mrf.mxu0
        %v2132 = vadd.f32 %v1194, %v2131
        %v2133 = vpop.f32.mrf.mxu0
        %v2134 = vadd.f32 %v1190, %v2133
        %v2135 = vpop.f32.mrf.mxu0
        %v2136 = vadd.f32 %v1194, %v2135
        %2137 = vmatprep.mubr.bf16.mxu0 %v1034
        %2138 = vmatmul.mubr.bf16.gmra.mxu0 %v1033
        %v2139 = vpop.f32.mrf.mxu0
        %v2140 = vadd.f32 %v1190, %v2139
        %v2141 = vpop.f32.mrf.mxu0
        %v2142 = vadd.f32 %v1194, %v2141
        %v2143 = vpop.f32.mrf.mxu0
        %v2144 = vadd.f32 %v1190, %v2143
        %v2145 = vpop.f32.mrf.mxu0
        %v2146 = vadd.f32 %v1194, %v2145
        %2147 = vmatprep.mubr.bf16.mxu0 %v1038
        %2148 = vmatmul.mubr.bf16.gmra.mxu0 %v1037
        %v2149 = vpop.f32.mrf.mxu0
        %v2150 = vadd.f32 %v1190, %v2149
        %v2151 = vpop.f32.mrf.mxu0
        %v2152 = vadd.f32 %v1194, %v2151
        %v2153 = vpop.f32.mrf.mxu0
        %v2154 = vadd.f32 %v1190, %v2153
        %v2155 = vpop.f32.mrf.mxu0
        %v2156 = vadd.f32 %v1194, %v2155
        %2157 = vmatprep.mubr.bf16.mxu0 %v1042
        %2158 = vmatmul.mubr.bf16.gmra.mxu0 %v1041
        %v2159 = vpop.f32.mrf.mxu0
        %v2160 = vadd.f32 %v1190, %v2159
        %v2161 = vpop.f32.mrf.mxu0
        %v2162 = vadd.f32 %v1194, %v2161
        %v2163 = vpop.f32.mrf.mxu0
        %v2164 = vadd.f32 %v1190, %v2163
        %v2165 = vpop.f32.mrf.mxu0
        %v2166 = vadd.f32 %v1194, %v2165
        %2167 = vmatprep.mubr.bf16.mxu0 %v1046
        %2168 = vmatmul.mubr.bf16.gmra.mxu0 %v1045
        %v2169 = vpop.f32.mrf.mxu0
        %v2170 = vadd.f32 %v1190, %v2169
        %v2171 = vpop.f32.mrf.mxu0
        %v2172 = vadd.f32 %v1194, %v2171
        %v2173 = vpop.f32.mrf.mxu0
        %v2174 = vadd.f32 %v1190, %v2173
        %v2175 = vpop.f32.mrf.mxu0
        %v2176 = vadd.f32 %v1194, %v2175
        %2177 = vdwg.mxu0
        %2178 = vmatprep.subr.bf16.mxu0 %v1678
        %2179 = vmatpush1.bf16.msra.mxu0 %v1677
        %2180 = vmatprep.subr.bf16.mxu0 %v1674
        %2181 = vmatpush1.bf16.msra.mxu0 %v1673
        %2182 = vmatprep.subr.bf16.mxu0 %v1670
        %2183 = vmatpush1.bf16.msra.mxu0 %v1669
        %2184 = vmatprep.subr.bf16.mxu0 %v1666
        %2185 = vmatpush1.bf16.msra.mxu0 %v1665
        %2186 = vmatprep.subr.bf16.mxu0 %v1662
        %2187 = vmatpush1.bf16.msra.mxu0 %v1661
        %2188 = vmatprep.subr.bf16.mxu0 %v1658
        %2189 = vmatpush1.bf16.msra.mxu0 %v1657
        %2190 = vmatprep.subr.bf16.mxu0 %v1654
        %2191 = vmatpush1.bf16.msra.mxu0 %v1653
        %2192 = vmatprep.subr.bf16.mxu0 %v1650
        %2193 = vmatpush1.bf16.msra.mxu0 %v1649
        %2194 = vmatprep.subr.bf16.mxu0 %v1710
        %2195 = vmatpush2.bf16.msra.mxu0 %v1709
        %2196 = vmatprep.subr.bf16.mxu0 %v1706
        %2197 = vmatpush2.bf16.msra.mxu0 %v1705
        %2198 = vmatprep.subr.bf16.mxu0 %v1702
        %2199 = vmatpush2.bf16.msra.mxu0 %v1701
        %2200 = vmatprep.subr.bf16.mxu0 %v1698
        %2201 = vmatpush2.bf16.msra.mxu0 %v1697
        %2202 = vmatprep.subr.bf16.mxu0 %v1694
        %2203 = vmatpush2.bf16.msra.mxu0 %v1693
        %2204 = vmatprep.subr.bf16.mxu0 %v1690
        %2205 = vmatpush2.bf16.msra.mxu0 %v1689
        %2206 = vmatprep.subr.bf16.mxu0 %v1686
        %2207 = vmatpush2.bf16.msra.mxu0 %v1685
        %2208 = vmatprep.subr.bf16.mxu0 %v1682
        %2209 = vmatpush2.bf16.msra.mxu0 %v1681
        %2210 = vmatprep.mubr.bf16.mxu0 %v1020
        %2211 = vmatmul.mubr.bf16.gmra.mxu0 %v1019
        %v2212 = vpop.f32.mrf.mxu0
        %v2213 = vadd.f32 %v2100, %v2212
        %v2214 = vpop.f32.mrf.mxu0
        %v2215 = vadd.f32 %v2102, %v2214
        %v2216 = vpop.f32.mrf.mxu0
        %v2217 = vadd.f32 %v2104, %v2216
        %v2218 = vpop.f32.mrf.mxu0
        %v2219 = vadd.f32 %v2106, %v2218
        %2220 = vmatprep.mubr.bf16.mxu0 %v1024
        %2221 = vmatmul.mubr.bf16.gmra.mxu0 %v1023
        %v2222 = vpop.f32.mrf.mxu0
        %v2223 = vadd.f32 %v2110, %v2222
        %v2224 = vpop.f32.mrf.mxu0
        %v2225 = vadd.f32 %v2112, %v2224
        %v2226 = vpop.f32.mrf.mxu0
        %v2227 = vadd.f32 %v2114, %v2226
        %v2228 = vpop.f32.mrf.mxu0
        %v2229 = vadd.f32 %v2116, %v2228
        %2230 = vmatprep.mubr.bf16.mxu0 %v1028
        %2231 = vmatmul.mubr.bf16.gmra.mxu0 %v1027
        %v2232 = vpop.f32.mrf.mxu0
        %v2233 = vadd.f32 %v2120, %v2232
        %v2234 = vpop.f32.mrf.mxu0
        %v2235 = vadd.f32 %v2122, %v2234
        %v2236 = vpop.f32.mrf.mxu0
        %v2237 = vadd.f32 %v2124, %v2236
        %v2238 = vpop.f32.mrf.mxu0
        %v2239 = vadd.f32 %v2126, %v2238
        %2240 = vmatprep.mubr.bf16.mxu0 %v1032
        %2241 = vmatmul.mubr.bf16.gmra.mxu0 %v1031
        %v2242 = vpop.f32.mrf.mxu0
        %v2243 = vadd.f32 %v2130, %v2242
        %v2244 = vpop.f32.mrf.mxu0
        %v2245 = vadd.f32 %v2132, %v2244
        %v2246 = vpop.f32.mrf.mxu0
        %v2247 = vadd.f32 %v2134, %v2246
        %v2248 = vpop.f32.mrf.mxu0
        %v2249 = vadd.f32 %v2136, %v2248
        %2250 = vmatprep.mubr.bf16.mxu0 %v1036
        %2251 = vmatmul.mubr.bf16.gmra.mxu0 %v1035
        %v2252 = vpop.f32.mrf.mxu0
        %v2253 = vadd.f32 %v2140, %v2252
        %v2254 = vpop.f32.mrf.mxu0
        %v2255 = vadd.f32 %v2142, %v2254
        %v2256 = vpop.f32.mrf.mxu0
        %v2257 = vadd.f32 %v2144, %v2256
        %v2258 = vpop.f32.mrf.mxu0
        %v2259 = vadd.f32 %v2146, %v2258
        %2260 = vmatprep.mubr.bf16.mxu0 %v1040
        %2261 = vmatmul.mubr.bf16.gmra.mxu0 %v1039
        %v2262 = vpop.f32.mrf.mxu0
        %v2263 = vadd.f32 %v2150, %v2262
        %v2264 = vpop.f32.mrf.mxu0
        %v2265 = vadd.f32 %v2152, %v2264
        %v2266 = vpop.f32.mrf.mxu0
        %v2267 = vadd.f32 %v2154, %v2266
        %v2268 = vpop.f32.mrf.mxu0
        %v2269 = vadd.f32 %v2156, %v2268
        %2270 = vmatprep.mubr.bf16.mxu0 %v1044
        %2271 = vmatmul.mubr.bf16.gmra.mxu0 %v1043
        %v2272 = vpop.f32.mrf.mxu0
        %v2273 = vadd.f32 %v2160, %v2272
        %v2274 = vpop.f32.mrf.mxu0
        %v2275 = vadd.f32 %v2162, %v2274
        %v2276 = vpop.f32.mrf.mxu0
        %v2277 = vadd.f32 %v2164, %v2276
        %v2278 = vpop.f32.mrf.mxu0
        %v2279 = vadd.f32 %v2166, %v2278
        %2280 = vmatprep.mubr.bf16.mxu0 %v1048
        %2281 = vmatmul.mubr.bf16.gmra.mxu0 %v1047
        %v2282 = vpop.f32.mrf.mxu0
        %v2283 = vadd.f32 %v2170, %v2282
        %v2284 = vpop.f32.mrf.mxu0
        %v2285 = vadd.f32 %v2172, %v2284
        %v2286 = vpop.f32.mrf.mxu0
        %v2287 = vadd.f32 %v2174, %v2286
        %v2288 = vpop.f32.mrf.mxu0
        %v2289 = vadd.f32 %v2176, %v2288
        %2290 = vdwg.mxu0
        %v2291 = vmax.f32 %v1987, %v1989
        %v2292 = vmax.f32 %v1991, %v1993
        %v2293 = vmax.f32 %v1997, %v1999
        %v2294 = vmax.f32 %v2001, %v2003
        %v2295 = vmax.f32 %v2007, %v2009
        %v2296 = vmax.f32 %v2011, %v2013
        %v2297 = vmax.f32 %v2017, %v2019
        %v2298 = vmax.f32 %v2021, %v2023
        %v2299 = vmax.f32 %v2027, %v2029
        %v2300 = vmax.f32 %v2031, %v2033
        %v2301 = vmax.f32 %v2037, %v2039
        %v2302 = vmax.f32 %v2041, %v2043
        %v2303 = vmax.f32 %v2047, %v2049
        %v2304 = vmax.f32 %v2051, %v2053
        %v2305 = vmax.f32 %v2057, %v2059
        %v2306 = vmax.f32 %v2061, %v2063
        %v2307 = vmax.f32 %v2213, %v2215
        %v2308 = vmax.f32 %v2217, %v2219
        %v2309 = vmax.f32 %v2223, %v2225
        %v2310 = vmax.f32 %v2227, %v2229
        %v2311 = vmax.f32 %v2233, %v2235
        %v2312 = vmax.f32 %v2237, %v2239
        %v2313 = vmax.f32 %v2243, %v2245
        %v2314 = vmax.f32 %v2247, %v2249
        %v2315 = vmax.f32 %v2253, %v2255
        %v2316 = vmax.f32 %v2257, %v2259
        %v2317 = vmax.f32 %v2263, %v2265
        %v2318 = vmax.f32 %v2267, %v2269
        %v2319 = vmax.f32 %v2273, %v2275
        %v2320 = vmax.f32 %v2277, %v2279
        %v2321 = vmax.f32 %v2283, %v2285
        %v2322 = vmax.f32 %v2287, %v2289
        %v2323 = vmax.f32 %v2291, %v2307
        %v2324 = vmax.f32 %v2292, %v2308
        %v2325 = vmax.f32 %v2293, %v2309
        %v2326 = vmax.f32 %v2294, %v2310
        %v2327 = vmax.f32 %v2295, %v2311
        %v2328 = vmax.f32 %v2296, %v2312
        %v2329 = vmax.f32 %v2297, %v2313
        %v2330 = vmax.f32 %v2298, %v2314
        %v2331 = vmax.f32 %v2299, %v2315
        %v2332 = vmax.f32 %v2300, %v2316
        %v2333 = vmax.f32 %v2301, %v2317
        %v2334 = vmax.f32 %v2302, %v2318
        %v2335 = vmax.f32 %v2303, %v2319
        %v2336 = vmax.f32 %v2304, %v2320
        %v2337 = vmax.f32 %v2305, %v2321
        %v2338 = vmax.f32 %v2306, %v2322
        %v2339 = vmax.f32 %v2323, 0.0
        %v2340 = vmax.f32 %v2324, 0.0
        %v2341 = vmax.f32 %v2325, 0.0
        %v2342 = vmax.f32 %v2326, 0.0
        %v2343 = vmax.f32 %v2327, 0.0
        %v2344 = vmax.f32 %v2328, 0.0
        %v2345 = vmax.f32 %v2329, 0.0
        %v2346 = vmax.f32 %v2330, 0.0
        %v2347 = vmax.f32 %v2331, 0.0
        %v2348 = vmax.f32 %v2332, 0.0
        %v2349 = vmax.f32 %v2333, 0.0
        %v2350 = vmax.f32 %v2334, 0.0
        %v2351 = vmax.f32 %v2335, 0.0
        %v2352 = vmax.f32 %v2336, 0.0
        %v2353 = vmax.f32 %v2337, 0.0
        %v2354 = vmax.f32 %v2338, 0.0
        %v2355 = vpack.c.bf16 %v2340, %v2339
        %v2356 = vpack.c.bf16 %v2342, %v2341
        %v2357 = vpack.c.bf16 %v2344, %v2343
        %v2358 = vpack.c.bf16 %v2346, %v2345
        %v2359 = vpack.c.bf16 %v2348, %v2347
        %v2360 = vpack.c.bf16 %v2350, %v2349
        %v2361 = vpack.c.bf16 %v2352, %v2351
        %v2362 = vpack.c.bf16 %v2354, %v2353
        %v2363 = vld [vmem:[%s5] sm:$0xff]
        %v2364 = vld [vmem:[%s5 + $0x8] sm:$0xff]
        %v2365 = vld [vmem:[%s5 + $0x10] sm:$0xff]
        %v2366 = vld [vmem:[%s5 + $0x18] sm:$0xff]
        %v2367 = vld [vmem:[%s5 + $0x20] sm:$0xff]
        %v2368 = vld [vmem:[%s5 + $0x28] sm:$0xff]
        %v2369 = vld [vmem:[%s5 + $0x30] sm:$0xff]
        %v2370 = vld [vmem:[%s5 + $0x38] sm:$0xff]
        %v2371 = vld [vmem:[%s5 + $0x40] sm:$0xff]
        %v2372 = vld [vmem:[%s5 + $0x48] sm:$0xff]
        %v2373 = vld [vmem:[%s5 + $0x50] sm:$0xff]
        %v2374 = vld [vmem:[%s5 + $0x58] sm:$0xff]
        %v2375 = vld [vmem:[%s5 + $0x60] sm:$0xff]
        %v2376 = vld [vmem:[%s5 + $0x68] sm:$0xff]
        %v2377 = vld [vmem:[%s5 + $0x70] sm:$0xff]
        %v2378 = vld [vmem:[%s5 + $0x78] sm:$0xff]
        %v2379 = vld [vmem:[%s6] sm:$0x3]
        %v2381 = vlaneseq
        %v2382 = vshrl.u32 %v2381, 7
        %v2383 = vsub.s32 0, %v2382
        %v2384 = vrot.slane %v2379, %v2383
        %v2385 = vlaneseq
        %v2386 = vshrl.u32 %v2385, 7
        %v2387 = vsub.s32 1, %v2386
        %v2388 = vrot.slane %v2379, %v2387
        %v2407 = vunpack.c.l.b16 %v2363
        %v2408 = vunpack.c.h.b16 %v2363
        %v2409 = vunpack.c.l.b16 %v2364
        %v2410 = vunpack.c.h.b16 %v2364
        %v2411 = vunpack.c.l.b16 %v2365
        %v2412 = vunpack.c.h.b16 %v2365
        %v2413 = vunpack.c.l.b16 %v2366
        %v2414 = vunpack.c.h.b16 %v2366
        %v2415 = vunpack.c.l.b16 %v2367
        %v2416 = vunpack.c.h.b16 %v2367
        %v2417 = vunpack.c.l.b16 %v2368
        %v2418 = vunpack.c.h.b16 %v2368
        %v2419 = vunpack.c.l.b16 %v2369
        %v2420 = vunpack.c.h.b16 %v2369
        %v2421 = vunpack.c.l.b16 %v2370
        %v2422 = vunpack.c.h.b16 %v2370
        %v2423 = vunpack.c.l.b16 %v2371
        %v2424 = vunpack.c.h.b16 %v2371
        %v2425 = vunpack.c.l.b16 %v2372
        %v2426 = vunpack.c.h.b16 %v2372
        %v2427 = vunpack.c.l.b16 %v2373
        %v2428 = vunpack.c.h.b16 %v2373
        %v2429 = vunpack.c.l.b16 %v2374
        %v2430 = vunpack.c.h.b16 %v2374
        %v2431 = vunpack.c.l.b16 %v2375
        %v2432 = vunpack.c.h.b16 %v2375
        %v2433 = vunpack.c.l.b16 %v2376
        %v2434 = vunpack.c.h.b16 %v2376
        %v2435 = vunpack.c.l.b16 %v2377
        %v2436 = vunpack.c.h.b16 %v2377
        %v2437 = vunpack.c.l.b16 %v2378
        %v2438 = vunpack.c.h.b16 %v2378
        %v2439 = vpack.c.b16 %v2409, %v2407
        %v2440 = vpack.c.b16 %v2410, %v2408
        %v2441 = vpack.c.b16 %v2413, %v2411
        %v2442 = vpack.c.b16 %v2414, %v2412
        %v2443 = vpack.c.b16 %v2417, %v2415
        %v2444 = vpack.c.b16 %v2418, %v2416
        %v2445 = vpack.c.b16 %v2421, %v2419
        %v2446 = vpack.c.b16 %v2422, %v2420
        %v2447 = vpack.c.b16 %v2425, %v2423
        %v2448 = vpack.c.b16 %v2426, %v2424
        %v2449 = vpack.c.b16 %v2429, %v2427
        %v2450 = vpack.c.b16 %v2430, %v2428
        %v2451 = vpack.c.b16 %v2433, %v2431
        %v2452 = vpack.c.b16 %v2434, %v2432
        %v2453 = vpack.c.b16 %v2437, %v2435
        %v2454 = vpack.c.b16 %v2438, %v2436
        %2471 = vmatprep.subr.bf16.mxu0 %v2454
        %2472 = vmatpush1.bf16.msra.mxu0 %v2453
        %2473 = vmatprep.subr.bf16.mxu0 %v2452
        %2474 = vmatpush1.bf16.msra.mxu0 %v2451
        %2475 = vmatprep.subr.bf16.mxu0 %v2450
        %2476 = vmatpush1.bf16.msra.mxu0 %v2449
        %2477 = vmatprep.subr.bf16.mxu0 %v2448
        %2478 = vmatpush1.bf16.msra.mxu0 %v2447
        %2479 = vmatprep.subr.bf16.mxu0 %v2446
        %2480 = vmatpush1.bf16.msra.mxu0 %v2445
        %2481 = vmatprep.subr.bf16.mxu0 %v2444
        %2482 = vmatpush1.bf16.msra.mxu0 %v2443
        %2483 = vmatprep.subr.bf16.mxu0 %v2442
        %2484 = vmatpush1.bf16.msra.mxu0 %v2441
        %2485 = vmatprep.subr.bf16.mxu0 %v2440
        %2486 = vmatpush1.bf16.msra.mxu0 %v2439
        %2487 = vmatprep.subr.bf16.mxu0 0
        %2488 = vmatpush2.bf16.msra.mxu0 0
        %2489 = vmatprep.subr.bf16.mxu0 0
        %2490 = vmatpush2.bf16.msra.mxu0 0
        %2491 = vmatprep.subr.bf16.mxu0 0
        %2492 = vmatpush2.bf16.msra.mxu0 0
        %2493 = vmatprep.subr.bf16.mxu0 0
        %2494 = vmatpush2.bf16.msra.mxu0 0
        %2495 = vmatprep.subr.bf16.mxu0 0
        %2496 = vmatpush2.bf16.msra.mxu0 0
        %2497 = vmatprep.subr.bf16.mxu0 0
        %2498 = vmatpush2.bf16.msra.mxu0 0
        %2499 = vmatprep.subr.bf16.mxu0 0
        %2500 = vmatpush2.bf16.msra.mxu0 0
        %2501 = vmatprep.subr.bf16.mxu0 0
        %2502 = vmatpush2.bf16.msra.mxu0 0
        %2503 = vmatprep.mubr.bf16.mxu0 0
        %2504 = vmatmul.mubr.bf16.gmra.mxu0 %v2355
        %v2505 = vpop.f32.mrf.mxu0
        %v2506 = vadd.f32 %v2384, %v2505
        %v2507 = vpop.f32.mrf.mxu0
        %v2508 = vadd.f32 %v2388, %v2507
        %v2509 = vpop.f32.mrf.mxu0
        %v2510 = vadd.f32 %v2384, %v2509
        %v2511 = vpop.f32.mrf.mxu0
        %v2512 = vadd.f32 %v2388, %v2511
        %2513 = vmatprep.mubr.bf16.mxu0 0
        %2514 = vmatmul.mubr.bf16.gmra.mxu0 %v2356
        %v2515 = vpop.f32.mrf.mxu0
        %v2516 = vadd.f32 %v2384, %v2515
        %v2517 = vpop.f32.mrf.mxu0
        %v2518 = vadd.f32 %v2388, %v2517
        %v2519 = vpop.f32.mrf.mxu0
        %v2520 = vadd.f32 %v2384, %v2519
        %v2521 = vpop.f32.mrf.mxu0
        %v2522 = vadd.f32 %v2388, %v2521
        %2523 = vmatprep.mubr.bf16.mxu0 0
        %2524 = vmatmul.mubr.bf16.gmra.mxu0 %v2357
        %v2525 = vpop.f32.mrf.mxu0
        %v2526 = vadd.f32 %v2384, %v2525
        %v2527 = vpop.f32.mrf.mxu0
        %v2528 = vadd.f32 %v2388, %v2527
        %v2529 = vpop.f32.mrf.mxu0
        %v2530 = vadd.f32 %v2384, %v2529
        %v2531 = vpop.f32.mrf.mxu0
        %v2532 = vadd.f32 %v2388, %v2531
        %2533 = vmatprep.mubr.bf16.mxu0 0
        %2534 = vmatmul.mubr.bf16.gmra.mxu0 %v2358
        %v2535 = vpop.f32.mrf.mxu0
        %v2536 = vadd.f32 %v2384, %v2535
        %v2537 = vpop.f32.mrf.mxu0
        %v2538 = vadd.f32 %v2388, %v2537
        %v2539 = vpop.f32.mrf.mxu0
        %v2540 = vadd.f32 %v2384, %v2539
        %v2541 = vpop.f32.mrf.mxu0
        %v2542 = vadd.f32 %v2388, %v2541
        %2543 = vmatprep.mubr.bf16.mxu0 0
        %2544 = vmatmul.mubr.bf16.gmra.mxu0 %v2359
        %v2545 = vpop.f32.mrf.mxu0
        %v2546 = vadd.f32 %v2384, %v2545
        %v2547 = vpop.f32.mrf.mxu0
        %v2548 = vadd.f32 %v2388, %v2547
        %v2549 = vpop.f32.mrf.mxu0
        %v2550 = vadd.f32 %v2384, %v2549
        %v2551 = vpop.f32.mrf.mxu0
        %v2552 = vadd.f32 %v2388, %v2551
        %2553 = vmatprep.mubr.bf16.mxu0 0
        %2554 = vmatmul.mubr.bf16.gmra.mxu0 %v2360
        %v2555 = vpop.f32.mrf.mxu0
        %v2556 = vadd.f32 %v2384, %v2555
        %v2557 = vpop.f32.mrf.mxu0
        %v2558 = vadd.f32 %v2388, %v2557
        %v2559 = vpop.f32.mrf.mxu0
        %v2560 = vadd.f32 %v2384, %v2559
        %v2561 = vpop.f32.mrf.mxu0
        %v2562 = vadd.f32 %v2388, %v2561
        %2563 = vmatprep.mubr.bf16.mxu0 0
        %2564 = vmatmul.mubr.bf16.gmra.mxu0 %v2361
        %v2565 = vpop.f32.mrf.mxu0
        %v2566 = vadd.f32 %v2384, %v2565
        %v2567 = vpop.f32.mrf.mxu0
        %v2568 = vadd.f32 %v2388, %v2567
        %v2569 = vpop.f32.mrf.mxu0
        %v2570 = vadd.f32 %v2384, %v2569
        %v2571 = vpop.f32.mrf.mxu0
        %v2572 = vadd.f32 %v2388, %v2571
        %2573 = vmatprep.mubr.bf16.mxu0 0
        %2574 = vmatmul.mubr.bf16.gmra.mxu0 %v2362
        %v2575 = vpop.f32.mrf.mxu0
        %v2576 = vadd.f32 %v2384, %v2575
        %v2577 = vpop.f32.mrf.mxu0
        %v2578 = vadd.f32 %v2388, %v2577
        %v2579 = vpop.f32.mrf.mxu0
        %v2580 = vadd.f32 %v2384, %v2579
        %v2581 = vpop.f32.mrf.mxu0
        %v2582 = vadd.f32 %v2388, %v2581
        %2583 = vdwg.mxu0
        %v2584 = vmax.f32 %v2506, 0.0
        %v2585 = vmax.f32 %v2508, 0.0
        %v2586 = vmax.f32 %v2510, 0.0
        %v2587 = vmax.f32 %v2512, 0.0
        %v2588 = vmax.f32 %v2516, 0.0
        %v2589 = vmax.f32 %v2518, 0.0
        %v2590 = vmax.f32 %v2520, 0.0
        %v2591 = vmax.f32 %v2522, 0.0
        %v2592 = vmax.f32 %v2526, 0.0
        %v2593 = vmax.f32 %v2528, 0.0
        %v2594 = vmax.f32 %v2530, 0.0
        %v2595 = vmax.f32 %v2532, 0.0
        %v2596 = vmax.f32 %v2536, 0.0
        %v2597 = vmax.f32 %v2538, 0.0
        %v2598 = vmax.f32 %v2540, 0.0
        %v2599 = vmax.f32 %v2542, 0.0
        %v2600 = vmax.f32 %v2546, 0.0
        %v2601 = vmax.f32 %v2548, 0.0
        %v2602 = vmax.f32 %v2550, 0.0
        %v2603 = vmax.f32 %v2552, 0.0
        %v2604 = vmax.f32 %v2556, 0.0
        %v2605 = vmax.f32 %v2558, 0.0
        %v2606 = vmax.f32 %v2560, 0.0
        %v2607 = vmax.f32 %v2562, 0.0
        %v2608 = vmax.f32 %v2566, 0.0
        %v2609 = vmax.f32 %v2568, 0.0
        %v2610 = vmax.f32 %v2570, 0.0
        %v2611 = vmax.f32 %v2572, 0.0
        %v2612 = vmax.f32 %v2576, 0.0
        %v2613 = vmax.f32 %v2578, 0.0
        %v2614 = vmax.f32 %v2580, 0.0
        %v2615 = vmax.f32 %v2582, 0.0
        %v2616 = vpack.c.bf16 %v2586, %v2584
        %v2617 = vpack.c.bf16 %v2587, %v2585
        %v2618 = vpack.c.bf16 %v2590, %v2588
        %v2619 = vpack.c.bf16 %v2591, %v2589
        %v2620 = vpack.c.bf16 %v2594, %v2592
        %v2621 = vpack.c.bf16 %v2595, %v2593
        %v2622 = vpack.c.bf16 %v2598, %v2596
        %v2623 = vpack.c.bf16 %v2599, %v2597
        %v2624 = vpack.c.bf16 %v2602, %v2600
        %v2625 = vpack.c.bf16 %v2603, %v2601
        %v2626 = vpack.c.bf16 %v2606, %v2604
        %v2627 = vpack.c.bf16 %v2607, %v2605
        %v2628 = vpack.c.bf16 %v2610, %v2608
        %v2629 = vpack.c.bf16 %v2611, %v2609
        %v2630 = vpack.c.bf16 %v2614, %v2612
        %v2631 = vpack.c.bf16 %v2615, %v2613
        %v2632 = vld [vmem:[%s7] sm:$0xff]
        %v2633 = vld [vmem:[%s7 + $0x8] sm:$0xff]
        %v2634 = vld [vmem:[%s7 + $0x10] sm:$0xff]
        %v2635 = vld [vmem:[%s7 + $0x18] sm:$0xff]
        %v2636 = vld [vmem:[%s7 + $0x20] sm:$0xff]
        %v2637 = vld [vmem:[%s7 + $0x28] sm:$0xff]
        %v2638 = vld [vmem:[%s7 + $0x30] sm:$0xff]
        %v2639 = vld [vmem:[%s7 + $0x38] sm:$0xff]
        %v2640 = vld [vmem:[%s7 + $0x40] sm:$0xff]
        %v2641 = vld [vmem:[%s7 + $0x48] sm:$0xff]
        %v2642 = vld [vmem:[%s7 + $0x50] sm:$0xff]
        %v2643 = vld [vmem:[%s7 + $0x58] sm:$0xff]
        %v2644 = vld [vmem:[%s7 + $0x60] sm:$0xff]
        %v2645 = vld [vmem:[%s7 + $0x68] sm:$0xff]
        %v2646 = vld [vmem:[%s7 + $0x70] sm:$0xff]
        %v2647 = vld [vmem:[%s7 + $0x78] sm:$0xff]
        %v2648 = vld [vmem:[%s7 + $0x80] sm:$0xff]
        %v2649 = vld [vmem:[%s7 + $0x88] sm:$0xff]
        %v2650 = vld [vmem:[%s7 + $0x90] sm:$0xff]
        %v2651 = vld [vmem:[%s7 + $0x98] sm:$0xff]
        %v2652 = vld [vmem:[%s7 + $0xa0] sm:$0xff]
        %v2653 = vld [vmem:[%s7 + $0xa8] sm:$0xff]
        %v2654 = vld [vmem:[%s7 + $0xb0] sm:$0xff]
        %v2655 = vld [vmem:[%s7 + $0xb8] sm:$0xff]
        %v2656 = vld [vmem:[%s7 + $0xc0] sm:$0xff]
        %v2657 = vld [vmem:[%s7 + $0xc8] sm:$0xff]
        %v2658 = vld [vmem:[%s7 + $0xd0] sm:$0xff]
        %v2659 = vld [vmem:[%s7 + $0xd8] sm:$0xff]
        %v2660 = vld [vmem:[%s7 + $0xe0] sm:$0xff]
        %v2661 = vld [vmem:[%s7 + $0xe8] sm:$0xff]
        %v2662 = vld [vmem:[%s7 + $0xf0] sm:$0xff]
        %v2663 = vld [vmem:[%s7 + $0xf8] sm:$0xff]
        %v2664 = vld [vmem:[%s7 + $0x100] sm:$0xff]
        %v2665 = vld [vmem:[%s7 + $0x108] sm:$0xff]
        %v2666 = vld [vmem:[%s7 + $0x110] sm:$0xff]
        %v2667 = vld [vmem:[%s7 + $0x118] sm:$0xff]
        %v2668 = vld [vmem:[%s7 + $0x120] sm:$0xff]
        %v2669 = vld [vmem:[%s7 + $0x128] sm:$0xff]
        %v2670 = vld [vmem:[%s7 + $0x130] sm:$0xff]
        %v2671 = vld [vmem:[%s7 + $0x138] sm:$0xff]
        %v2672 = vld [vmem:[%s7 + $0x140] sm:$0xff]
        %v2673 = vld [vmem:[%s7 + $0x148] sm:$0xff]
        %v2674 = vld [vmem:[%s7 + $0x150] sm:$0xff]
        %v2675 = vld [vmem:[%s7 + $0x158] sm:$0xff]
        %v2676 = vld [vmem:[%s7 + $0x160] sm:$0xff]
        %v2677 = vld [vmem:[%s7 + $0x168] sm:$0xff]
        %v2678 = vld [vmem:[%s7 + $0x170] sm:$0xff]
        %v2679 = vld [vmem:[%s7 + $0x178] sm:$0xff]
        %v2680 = vld [vmem:[%s7 + $0x180] sm:$0xff]
        %v2681 = vld [vmem:[%s7 + $0x188] sm:$0xff]
        %v2682 = vld [vmem:[%s7 + $0x190] sm:$0xff]
        %v2683 = vld [vmem:[%s7 + $0x198] sm:$0xff]
        %v2684 = vld [vmem:[%s7 + $0x1a0] sm:$0xff]
        %v2685 = vld [vmem:[%s7 + $0x1a8] sm:$0xff]
        %v2686 = vld [vmem:[%s7 + $0x1b0] sm:$0xff]
        %v2687 = vld [vmem:[%s7 + $0x1b8] sm:$0xff]
        %v2688 = vld [vmem:[%s7 + $0x1c0] sm:$0xff]
        %v2689 = vld [vmem:[%s7 + $0x1c8] sm:$0xff]
        %v2690 = vld [vmem:[%s7 + $0x1d0] sm:$0xff]
        %v2691 = vld [vmem:[%s7 + $0x1d8] sm:$0xff]
        %v2692 = vld [vmem:[%s7 + $0x1e0] sm:$0xff]
        %v2693 = vld [vmem:[%s7 + $0x1e8] sm:$0xff]
        %v2694 = vld [vmem:[%s7 + $0x1f0] sm:$0xff]
        %v2695 = vld [vmem:[%s7 + $0x1f8] sm:$0xff]
        %v2696 = vld [vmem:[%s8] sm:$0xf]
        %v2698 = vlaneseq
        %v2699 = vshrl.u32 %v2698, 7
        %v2700 = vsub.s32 0, %v2699
        %v2701 = vrot.slane %v2696, %v2700
        %v2702 = vlaneseq
        %v2703 = vshrl.u32 %v2702, 7
        %v2704 = vsub.s32 1, %v2703
        %v2705 = vrot.slane %v2696, %v2704
        %v2706 = vlaneseq
        %v2707 = vshrl.u32 %v2706, 7
        %v2708 = vsub.s32 2, %v2707
        %v2709 = vrot.slane %v2696, %v2708
        %v2710 = vlaneseq
        %v2711 = vshrl.u32 %v2710, 7
        %v2712 = vsub.s32 3, %v2711
        %v2713 = vrot.slane %v2696, %v2712
        %v2782 = vunpack.c.l.b16 %v2632
        %v2783 = vunpack.c.h.b16 %v2632
        %v2784 = vunpack.c.l.b16 %v2633
        %v2785 = vunpack.c.h.b16 %v2633
        %v2786 = vunpack.c.l.b16 %v2634
        %v2787 = vunpack.c.h.b16 %v2634
        %v2788 = vunpack.c.l.b16 %v2635
        %v2789 = vunpack.c.h.b16 %v2635
        %v2790 = vunpack.c.l.b16 %v2636
        %v2791 = vunpack.c.h.b16 %v2636
        %v2792 = vunpack.c.l.b16 %v2637
        %v2793 = vunpack.c.h.b16 %v2637
        %v2794 = vunpack.c.l.b16 %v2638
        %v2795 = vunpack.c.h.b16 %v2638
        %v2796 = vunpack.c.l.b16 %v2639
        %v2797 = vunpack.c.h.b16 %v2639
        %v2798 = vunpack.c.l.b16 %v2640
        %v2799 = vunpack.c.h.b16 %v2640
        %v2800 = vunpack.c.l.b16 %v2641
        %v2801 = vunpack.c.h.b16 %v2641
        %v2802 = vunpack.c.l.b16 %v2642
        %v2803 = vunpack.c.h.b16 %v2642
        %v2804 = vunpack.c.l.b16 %v2643
        %v2805 = vunpack.c.h.b16 %v2643
        %v2806 = vunpack.c.l.b16 %v2644
        %v2807 = vunpack.c.h.b16 %v2644
        %v2808 = vunpack.c.l.b16 %v2645
        %v2809 = vunpack.c.h.b16 %v2645
        %v2810 = vunpack.c.l.b16 %v2646
        %v2811 = vunpack.c.h.b16 %v2646
        %v2812 = vunpack.c.l.b16 %v2647
        %v2813 = vunpack.c.h.b16 %v2647
        %v2814 = vunpack.c.l.b16 %v2648
        %v2815 = vunpack.c.h.b16 %v2648
        %v2816 = vunpack.c.l.b16 %v2649
        %v2817 = vunpack.c.h.b16 %v2649
        %v2818 = vunpack.c.l.b16 %v2650
        %v2819 = vunpack.c.h.b16 %v2650
        %v2820 = vunpack.c.l.b16 %v2651
        %v2821 = vunpack.c.h.b16 %v2651
        %v2822 = vunpack.c.l.b16 %v2652
        %v2823 = vunpack.c.h.b16 %v2652
        %v2824 = vunpack.c.l.b16 %v2653
        %v2825 = vunpack.c.h.b16 %v2653
        %v2826 = vunpack.c.l.b16 %v2654
        %v2827 = vunpack.c.h.b16 %v2654
        %v2828 = vunpack.c.l.b16 %v2655
        %v2829 = vunpack.c.h.b16 %v2655
        %v2830 = vunpack.c.l.b16 %v2656
        %v2831 = vunpack.c.h.b16 %v2656
        %v2832 = vunpack.c.l.b16 %v2657
        %v2833 = vunpack.c.h.b16 %v2657
        %v2834 = vunpack.c.l.b16 %v2658
        %v2835 = vunpack.c.h.b16 %v2658
        %v2836 = vunpack.c.l.b16 %v2659
        %v2837 = vunpack.c.h.b16 %v2659
        %v2838 = vunpack.c.l.b16 %v2660
        %v2839 = vunpack.c.h.b16 %v2660
        %v2840 = vunpack.c.l.b16 %v2661
        %v2841 = vunpack.c.h.b16 %v2661
        %v2842 = vunpack.c.l.b16 %v2662
        %v2843 = vunpack.c.h.b16 %v2662
        %v2844 = vunpack.c.l.b16 %v2663
        %v2845 = vunpack.c.h.b16 %v2663
        %v2846 = vunpack.c.l.b16 %v2664
        %v2847 = vunpack.c.h.b16 %v2664
        %v2848 = vunpack.c.l.b16 %v2665
        %v2849 = vunpack.c.h.b16 %v2665
        %v2850 = vunpack.c.l.b16 %v2666
        %v2851 = vunpack.c.h.b16 %v2666
        %v2852 = vunpack.c.l.b16 %v2667
        %v2853 = vunpack.c.h.b16 %v2667
        %v2854 = vunpack.c.l.b16 %v2668
        %v2855 = vunpack.c.h.b16 %v2668
        %v2856 = vunpack.c.l.b16 %v2669
        %v2857 = vunpack.c.h.b16 %v2669
        %v2858 = vunpack.c.l.b16 %v2670
        %v2859 = vunpack.c.h.b16 %v2670
        %v2860 = vunpack.c.l.b16 %v2671
        %v2861 = vunpack.c.h.b16 %v2671
        %v2862 = vunpack.c.l.b16 %v2672
        %v2863 = vunpack.c.h.b16 %v2672
        %v2864 = vunpack.c.l.b16 %v2673
        %v2865 = vunpack.c.h.b16 %v2673
        %v2866 = vunpack.c.l.b16 %v2674
        %v2867 = vunpack.c.h.b16 %v2674
        %v2868 = vunpack.c.l.b16 %v2675
        %v2869 = vunpack.c.h.b16 %v2675
        %v2870 = vunpack.c.l.b16 %v2676
        %v2871 = vunpack.c.h.b16 %v2676
        %v2872 = vunpack.c.l.b16 %v2677
        %v2873 = vunpack.c.h.b16 %v2677
        %v2874 = vunpack.c.l.b16 %v2678
        %v2875 = vunpack.c.h.b16 %v2678
        %v2876 = vunpack.c.l.b16 %v2679
        %v2877 = vunpack.c.h.b16 %v2679
        %v2878 = vunpack.c.l.b16 %v2680
        %v2879 = vunpack.c.h.b16 %v2680
        %v2880 = vunpack.c.l.b16 %v2681
        %v2881 = vunpack.c.h.b16 %v2681
        %v2882 = vunpack.c.l.b16 %v2682
        %v2883 = vunpack.c.h.b16 %v2682
        %v2884 = vunpack.c.l.b16 %v2683
        %v2885 = vunpack.c.h.b16 %v2683
        %v2886 = vunpack.c.l.b16 %v2684
        %v2887 = vunpack.c.h.b16 %v2684
        %v2888 = vunpack.c.l.b16 %v2685
        %v2889 = vunpack.c.h.b16 %v2685
        %v2890 = vunpack.c.l.b16 %v2686
        %v2891 = vunpack.c.h.b16 %v2686
        %v2892 = vunpack.c.l.b16 %v2687
        %v2893 = vunpack.c.h.b16 %v2687
        %v2894 = vunpack.c.l.b16 %v2688
        %v2895 = vunpack.c.h.b16 %v2688
        %v2896 = vunpack.c.l.b16 %v2689
        %v2897 = vunpack.c.h.b16 %v2689
        %v2898 = vunpack.c.l.b16 %v2690
        %v2899 = vunpack.c.h.b16 %v2690
        %v2900 = vunpack.c.l.b16 %v2691
        %v2901 = vunpack.c.h.b16 %v2691
        %v2902 = vunpack.c.l.b16 %v2692
        %v2903 = vunpack.c.h.b16 %v2692
        %v2904 = vunpack.c.l.b16 %v2693
        %v2905 = vunpack.c.h.b16 %v2693
        %v2906 = vunpack.c.l.b16 %v2694
        %v2907 = vunpack.c.h.b16 %v2694
        %v2908 = vunpack.c.l.b16 %v2695
        %v2909 = vunpack.c.h.b16 %v2695
        %v2910 = vpack.c.b16 %v2786, %v2782
        %v2911 = vpack.c.b16 %v2787, %v2783
        %v2912 = vpack.c.b16 %v2788, %v2784
        %v2913 = vpack.c.b16 %v2789, %v2785
        %v2914 = vpack.c.b16 %v2794, %v2790
        %v2915 = vpack.c.b16 %v2795, %v2791
        %v2916 = vpack.c.b16 %v2796, %v2792
        %v2917 = vpack.c.b16 %v2797, %v2793
        %v2918 = vpack.c.b16 %v2802, %v2798
        %v2919 = vpack.c.b16 %v2803, %v2799
        %v2920 = vpack.c.b16 %v2804, %v2800
        %v2921 = vpack.c.b16 %v2805, %v2801
        %v2922 = vpack.c.b16 %v2810, %v2806
        %v2923 = vpack.c.b16 %v2811, %v2807
        %v2924 = vpack.c.b16 %v2812, %v2808
        %v2925 = vpack.c.b16 %v2813, %v2809
        %v2926 = vpack.c.b16 %v2818, %v2814
        %v2927 = vpack.c.b16 %v2819, %v2815
        %v2928 = vpack.c.b16 %v2820, %v2816
        %v2929 = vpack.c.b16 %v2821, %v2817
        %v2930 = vpack.c.b16 %v2826, %v2822
        %v2931 = vpack.c.b16 %v2827, %v2823
        %v2932 = vpack.c.b16 %v2828, %v2824
        %v2933 = vpack.c.b16 %v2829, %v2825
        %v2934 = vpack.c.b16 %v2834, %v2830
        %v2935 = vpack.c.b16 %v2835, %v2831
        %v2936 = vpack.c.b16 %v2836, %v2832
        %v2937 = vpack.c.b16 %v2837, %v2833
        %v2938 = vpack.c.b16 %v2842, %v2838
        %v2939 = vpack.c.b16 %v2843, %v2839
        %v2940 = vpack.c.b16 %v2844, %v2840
        %v2941 = vpack.c.b16 %v2845, %v2841
        %v2942 = vpack.c.b16 %v2850, %v2846
        %v2943 = vpack.c.b16 %v2851, %v2847
        %v2944 = vpack.c.b16 %v2852, %v2848
        %v2945 = vpack.c.b16 %v2853, %v2849
        %v2946 = vpack.c.b16 %v2858, %v2854
        %v2947 = vpack.c.b16 %v2859, %v2855
        %v2948 = vpack.c.b16 %v2860, %v2856
        %v2949 = vpack.c.b16 %v2861, %v2857
        %v2950 = vpack.c.b16 %v2866, %v2862
        %v2951 = vpack.c.b16 %v2867, %v2863
        %v2952 = vpack.c.b16 %v2868, %v2864
        %v2953 = vpack.c.b16 %v2869, %v2865
        %v2954 = vpack.c.b16 %v2874, %v2870
        %v2955 = vpack.c.b16 %v2875, %v2871
        %v2956 = vpack.c.b16 %v2876, %v2872
        %v2957 = vpack.c.b16 %v2877, %v2873
        %v2958 = vpack.c.b16 %v2882, %v2878
        %v2959 = vpack.c.b16 %v2883, %v2879
        %v2960 = vpack.c.b16 %v2884, %v2880
        %v2961 = vpack.c.b16 %v2885, %v2881
        %v2962 = vpack.c.b16 %v2890, %v2886
        %v2963 = vpack.c.b16 %v2891, %v2887
        %v2964 = vpack.c.b16 %v2892, %v2888
        %v2965 = vpack.c.b16 %v2893, %v2889
        %v2966 = vpack.c.b16 %v2898, %v2894
        %v2967 = vpack.c.b16 %v2899, %v2895
        %v2968 = vpack.c.b16 %v2900, %v2896
        %v2969 = vpack.c.b16 %v2901, %v2897
        %v2970 = vpack.c.b16 %v2906, %v2902
        %v2971 = vpack.c.b16 %v2907, %v2903
        %v2972 = vpack.c.b16 %v2908, %v2904
        %v2973 = vpack.c.b16 %v2909, %v2905
        %3038 = vmatprep.subr.bf16.mxu0 %v2939
        %3039 = vmatpush1.bf16.msra.mxu0 %v2938
        %3040 = vmatprep.subr.bf16.mxu0 %v2935
        %3041 = vmatpush1.bf16.msra.mxu0 %v2934
        %3042 = vmatprep.subr.bf16.mxu0 %v2931
        %3043 = vmatpush1.bf16.msra.mxu0 %v2930
        %3044 = vmatprep.subr.bf16.mxu0 %v2927
        %3045 = vmatpush1.bf16.msra.mxu0 %v2926
        %3046 = vmatprep.subr.bf16.mxu0 %v2923
        %3047 = vmatpush1.bf16.msra.mxu0 %v2922
        %3048 = vmatprep.subr.bf16.mxu0 %v2919
        %3049 = vmatpush1.bf16.msra.mxu0 %v2918
        %3050 = vmatprep.subr.bf16.mxu0 %v2915
        %3051 = vmatpush1.bf16.msra.mxu0 %v2914
        %3052 = vmatprep.subr.bf16.mxu0 %v2911
        %3053 = vmatpush1.bf16.msra.mxu0 %v2910
        %3054 = vmatprep.subr.bf16.mxu0 %v2971
        %3055 = vmatpush2.bf16.msra.mxu0 %v2970
        %3056 = vmatprep.subr.bf16.mxu0 %v2967
        %3057 = vmatpush2.bf16.msra.mxu0 %v2966
        %3058 = vmatprep.subr.bf16.mxu0 %v2963
        %3059 = vmatpush2.bf16.msra.mxu0 %v2962
        %3060 = vmatprep.subr.bf16.mxu0 %v2959
        %3061 = vmatpush2.bf16.msra.mxu0 %v2958
        %3062 = vmatprep.subr.bf16.mxu0 %v2955
        %3063 = vmatpush2.bf16.msra.mxu0 %v2954
        %3064 = vmatprep.subr.bf16.mxu0 %v2951
        %3065 = vmatpush2.bf16.msra.mxu0 %v2950
        %3066 = vmatprep.subr.bf16.mxu0 %v2947
        %3067 = vmatpush2.bf16.msra.mxu0 %v2946
        %3068 = vmatprep.subr.bf16.mxu0 %v2943
        %3069 = vmatpush2.bf16.msra.mxu0 %v2942
        %3070 = vmatprep.mubr.bf16.mxu0 %v2617
        %3071 = vmatmul.mubr.bf16.gmra.mxu0 %v2616
        %v3072 = vpop.f32.mrf.mxu0
        %v3073 = vadd.f32 %v2701, %v3072
        %v3074 = vpop.f32.mrf.mxu0
        %v3075 = vadd.f32 %v2705, %v3074
        %v3076 = vpop.f32.mrf.mxu0
        %v3077 = vadd.f32 %v2701, %v3076
        %v3078 = vpop.f32.mrf.mxu0
        %v3079 = vadd.f32 %v2705, %v3078
        %3080 = vmatprep.mubr.bf16.mxu0 %v2619
        %3081 = vmatmul.mubr.bf16.gmra.mxu0 %v2618
        %v3082 = vpop.f32.mrf.mxu0
        %v3083 = vadd.f32 %v2701, %v3082
        %v3084 = vpop.f32.mrf.mxu0
        %v3085 = vadd.f32 %v2705, %v3084
        %v3086 = vpop.f32.mrf.mxu0
        %v3087 = vadd.f32 %v2701, %v3086
        %v3088 = vpop.f32.mrf.mxu0
        %v3089 = vadd.f32 %v2705, %v3088
        %3090 = vmatprep.mubr.bf16.mxu0 %v2621
        %3091 = vmatmul.mubr.bf16.gmra.mxu0 %v2620
        %v3092 = vpop.f32.mrf.mxu0
        %v3093 = vadd.f32 %v2701, %v3092
        %v3094 = vpop.f32.mrf.mxu0
        %v3095 = vadd.f32 %v2705, %v3094
        %v3096 = vpop.f32.mrf.mxu0
        %v3097 = vadd.f32 %v2701, %v3096
        %v3098 = vpop.f32.mrf.mxu0
        %v3099 = vadd.f32 %v2705, %v3098
        %3100 = vmatprep.mubr.bf16.mxu0 %v2623
        %3101 = vmatmul.mubr.bf16.gmra.mxu0 %v2622
        %v3102 = vpop.f32.mrf.mxu0
        %v3103 = vadd.f32 %v2701, %v3102
        %v3104 = vpop.f32.mrf.mxu0
        %v3105 = vadd.f32 %v2705, %v3104
        %v3106 = vpop.f32.mrf.mxu0
        %v3107 = vadd.f32 %v2701, %v3106
        %v3108 = vpop.f32.mrf.mxu0
        %v3109 = vadd.f32 %v2705, %v3108
        %3110 = vmatprep.mubr.bf16.mxu0 %v2625
        %3111 = vmatmul.mubr.bf16.gmra.mxu0 %v2624
        %v3112 = vpop.f32.mrf.mxu0
        %v3113 = vadd.f32 %v2701, %v3112
        %v3114 = vpop.f32.mrf.mxu0
        %v3115 = vadd.f32 %v2705, %v3114
        %v3116 = vpop.f32.mrf.mxu0
        %v3117 = vadd.f32 %v2701, %v3116
        %v3118 = vpop.f32.mrf.mxu0
        %v3119 = vadd.f32 %v2705, %v3118
        %3120 = vmatprep.mubr.bf16.mxu0 %v2627
        %3121 = vmatmul.mubr.bf16.gmra.mxu0 %v2626
        %v3122 = vpop.f32.mrf.mxu0
        %v3123 = vadd.f32 %v2701, %v3122
        %v3124 = vpop.f32.mrf.mxu0
        %v3125 = vadd.f32 %v2705, %v3124
        %v3126 = vpop.f32.mrf.mxu0
        %v3127 = vadd.f32 %v2701, %v3126
        %v3128 = vpop.f32.mrf.mxu0
        %v3129 = vadd.f32 %v2705, %v3128
        %3130 = vmatprep.mubr.bf16.mxu0 %v2629
        %3131 = vmatmul.mubr.bf16.gmra.mxu0 %v2628
        %v3132 = vpop.f32.mrf.mxu0
        %v3133 = vadd.f32 %v2701, %v3132
        %v3134 = vpop.f32.mrf.mxu0
        %v3135 = vadd.f32 %v2705, %v3134
        %v3136 = vpop.f32.mrf.mxu0
        %v3137 = vadd.f32 %v2701, %v3136
        %v3138 = vpop.f32.mrf.mxu0
        %v3139 = vadd.f32 %v2705, %v3138
        %3140 = vmatprep.mubr.bf16.mxu0 %v2631
        %3141 = vmatmul.mubr.bf16.gmra.mxu0 %v2630
        %v3142 = vpop.f32.mrf.mxu0
        %v3143 = vadd.f32 %v2701, %v3142
        %v3144 = vpop.f32.mrf.mxu0
        %v3145 = vadd.f32 %v2705, %v3144
        %v3146 = vpop.f32.mrf.mxu0
        %v3147 = vadd.f32 %v2701, %v3146
        %v3148 = vpop.f32.mrf.mxu0
        %v3149 = vadd.f32 %v2705, %v3148
        %3150 = vdwg.mxu0
        %3151 = vmatprep.subr.bf16.mxu0 %v2941
        %3152 = vmatpush1.bf16.msra.mxu0 %v2940
        %3153 = vmatprep.subr.bf16.mxu0 %v2937
        %3154 = vmatpush1.bf16.msra.mxu0 %v2936
        %3155 = vmatprep.subr.bf16.mxu0 %v2933
        %3156 = vmatpush1.bf16.msra.mxu0 %v2932
        %3157 = vmatprep.subr.bf16.mxu0 %v2929
        %3158 = vmatpush1.bf16.msra.mxu0 %v2928
        %3159 = vmatprep.subr.bf16.mxu0 %v2925
        %3160 = vmatpush1.bf16.msra.mxu0 %v2924
        %3161 = vmatprep.subr.bf16.mxu0 %v2921
        %3162 = vmatpush1.bf16.msra.mxu0 %v2920
        %3163 = vmatprep.subr.bf16.mxu0 %v2917
        %3164 = vmatpush1.bf16.msra.mxu0 %v2916
        %3165 = vmatprep.subr.bf16.mxu0 %v2913
        %3166 = vmatpush1.bf16.msra.mxu0 %v2912
        %3167 = vmatprep.subr.bf16.mxu0 %v2973
        %3168 = vmatpush2.bf16.msra.mxu0 %v2972
        %3169 = vmatprep.subr.bf16.mxu0 %v2969
        %3170 = vmatpush2.bf16.msra.mxu0 %v2968
        %3171 = vmatprep.subr.bf16.mxu0 %v2965
        %3172 = vmatpush2.bf16.msra.mxu0 %v2964
        %3173 = vmatprep.subr.bf16.mxu0 %v2961
        %3174 = vmatpush2.bf16.msra.mxu0 %v2960
        %3175 = vmatprep.subr.bf16.mxu0 %v2957
        %3176 = vmatpush2.bf16.msra.mxu0 %v2956
        %3177 = vmatprep.subr.bf16.mxu0 %v2953
        %3178 = vmatpush2.bf16.msra.mxu0 %v2952
        %3179 = vmatprep.subr.bf16.mxu0 %v2949
        %3180 = vmatpush2.bf16.msra.mxu0 %v2948
        %3181 = vmatprep.subr.bf16.mxu0 %v2945
        %3182 = vmatpush2.bf16.msra.mxu0 %v2944
        %3183 = vmatprep.mubr.bf16.mxu0 %v2617
        %3184 = vmatmul.mubr.bf16.gmra.mxu0 %v2616
        %v3185 = vpop.f32.mrf.mxu0
        %v3186 = vadd.f32 %v2709, %v3185
        %v3187 = vpop.f32.mrf.mxu0
        %v3188 = vadd.f32 %v2713, %v3187
        %v3189 = vpop.f32.mrf.mxu0
        %v3190 = vadd.f32 %v2709, %v3189
        %v3191 = vpop.f32.mrf.mxu0
        %v3192 = vadd.f32 %v2713, %v3191
        %3193 = vmatprep.mubr.bf16.mxu0 %v2619
        %3194 = vmatmul.mubr.bf16.gmra.mxu0 %v2618
        %v3195 = vpop.f32.mrf.mxu0
        %v3196 = vadd.f32 %v2709, %v3195
        %v3197 = vpop.f32.mrf.mxu0
        %v3198 = vadd.f32 %v2713, %v3197
        %v3199 = vpop.f32.mrf.mxu0
        %v3200 = vadd.f32 %v2709, %v3199
        %v3201 = vpop.f32.mrf.mxu0
        %v3202 = vadd.f32 %v2713, %v3201
        %3203 = vmatprep.mubr.bf16.mxu0 %v2621
        %3204 = vmatmul.mubr.bf16.gmra.mxu0 %v2620
        %v3205 = vpop.f32.mrf.mxu0
        %v3206 = vadd.f32 %v2709, %v3205
        %v3207 = vpop.f32.mrf.mxu0
        %v3208 = vadd.f32 %v2713, %v3207
        %v3209 = vpop.f32.mrf.mxu0
        %v3210 = vadd.f32 %v2709, %v3209
        %v3211 = vpop.f32.mrf.mxu0
        %v3212 = vadd.f32 %v2713, %v3211
        %3213 = vmatprep.mubr.bf16.mxu0 %v2623
        %3214 = vmatmul.mubr.bf16.gmra.mxu0 %v2622
        %v3215 = vpop.f32.mrf.mxu0
        %v3216 = vadd.f32 %v2709, %v3215
        %v3217 = vpop.f32.mrf.mxu0
        %v3218 = vadd.f32 %v2713, %v3217
        %v3219 = vpop.f32.mrf.mxu0
        %v3220 = vadd.f32 %v2709, %v3219
        %v3221 = vpop.f32.mrf.mxu0
        %v3222 = vadd.f32 %v2713, %v3221
        %3223 = vmatprep.mubr.bf16.mxu0 %v2625
        %3224 = vmatmul.mubr.bf16.gmra.mxu0 %v2624
        %v3225 = vpop.f32.mrf.mxu0
        %v3226 = vadd.f32 %v2709, %v3225
        %v3227 = vpop.f32.mrf.mxu0
        %v3228 = vadd.f32 %v2713, %v3227
        %v3229 = vpop.f32.mrf.mxu0
        %v3230 = vadd.f32 %v2709, %v3229
        %v3231 = vpop.f32.mrf.mxu0
        %v3232 = vadd.f32 %v2713, %v3231
        %3233 = vmatprep.mubr.bf16.mxu0 %v2627
        %3234 = vmatmul.mubr.bf16.gmra.mxu0 %v2626
        %v3235 = vpop.f32.mrf.mxu0
        %v3236 = vadd.f32 %v2709, %v3235
        %v3237 = vpop.f32.mrf.mxu0
        %v3238 = vadd.f32 %v2713, %v3237
        %v3239 = vpop.f32.mrf.mxu0
        %v3240 = vadd.f32 %v2709, %v3239
        %v3241 = vpop.f32.mrf.mxu0
        %v3242 = vadd.f32 %v2713, %v3241
        %3243 = vmatprep.mubr.bf16.mxu0 %v2629
        %3244 = vmatmul.mubr.bf16.gmra.mxu0 %v2628
        %v3245 = vpop.f32.mrf.mxu0
        %v3246 = vadd.f32 %v2709, %v3245
        %v3247 = vpop.f32.mrf.mxu0
        %v3248 = vadd.f32 %v2713, %v3247
        %v3249 = vpop.f32.mrf.mxu0
        %v3250 = vadd.f32 %v2709, %v3249
        %v3251 = vpop.f32.mrf.mxu0
        %v3252 = vadd.f32 %v2713, %v3251
        %3253 = vmatprep.mubr.bf16.mxu0 %v2631
        %3254 = vmatmul.mubr.bf16.gmra.mxu0 %v2630
        %v3255 = vpop.f32.mrf.mxu0
        %v3256 = vadd.f32 %v2709, %v3255
        %v3257 = vpop.f32.mrf.mxu0
        %v3258 = vadd.f32 %v2713, %v3257
        %v3259 = vpop.f32.mrf.mxu0
        %v3260 = vadd.f32 %v2709, %v3259
        %v3261 = vpop.f32.mrf.mxu0
        %v3262 = vadd.f32 %v2713, %v3261
        %3263 = vdwg.mxu0
        %v3264 = vmax.f32 %v3073, %v3075
        %v3265 = vmax.f32 %v3077, %v3079
        %v3266 = vmax.f32 %v3083, %v3085
        %v3267 = vmax.f32 %v3087, %v3089
        %v3268 = vmax.f32 %v3093, %v3095
        %v3269 = vmax.f32 %v3097, %v3099
        %v3270 = vmax.f32 %v3103, %v3105
        %v3271 = vmax.f32 %v3107, %v3109
        %v3272 = vmax.f32 %v3113, %v3115
        %v3273 = vmax.f32 %v3117, %v3119
        %v3274 = vmax.f32 %v3123, %v3125
        %v3275 = vmax.f32 %v3127, %v3129
        %v3276 = vmax.f32 %v3133, %v3135
        %v3277 = vmax.f32 %v3137, %v3139
        %v3278 = vmax.f32 %v3143, %v3145
        %v3279 = vmax.f32 %v3147, %v3149
        %v3280 = vmax.f32 %v3186, %v3188
        %v3281 = vmax.f32 %v3190, %v3192
        %v3282 = vmax.f32 %v3196, %v3198
        %v3283 = vmax.f32 %v3200, %v3202
        %v3284 = vmax.f32 %v3206, %v3208
        %v3285 = vmax.f32 %v3210, %v3212
        %v3286 = vmax.f32 %v3216, %v3218
        %v3287 = vmax.f32 %v3220, %v3222
        %v3288 = vmax.f32 %v3226, %v3228
        %v3289 = vmax.f32 %v3230, %v3232
        %v3290 = vmax.f32 %v3236, %v3238
        %v3291 = vmax.f32 %v3240, %v3242
        %v3292 = vmax.f32 %v3246, %v3248
        %v3293 = vmax.f32 %v3250, %v3252
        %v3294 = vmax.f32 %v3256, %v3258
        %v3295 = vmax.f32 %v3260, %v3262
        %v3296 = vmax.f32 %v3264, %v3280
        %v3297 = vmax.f32 %v3265, %v3281
        %v3298 = vmax.f32 %v3266, %v3282
        %v3299 = vmax.f32 %v3267, %v3283
        %v3300 = vmax.f32 %v3268, %v3284
        %v3301 = vmax.f32 %v3269, %v3285
        %v3302 = vmax.f32 %v3270, %v3286
        %v3303 = vmax.f32 %v3271, %v3287
        %v3304 = vmax.f32 %v3272, %v3288
        %v3305 = vmax.f32 %v3273, %v3289
        %v3306 = vmax.f32 %v3274, %v3290
        %v3307 = vmax.f32 %v3275, %v3291
        %v3308 = vmax.f32 %v3276, %v3292
        %v3309 = vmax.f32 %v3277, %v3293
        %v3310 = vmax.f32 %v3278, %v3294
        %v3311 = vmax.f32 %v3279, %v3295
        %v3312 = vmax.f32 %v3296, 0.0
        %v3313 = vmax.f32 %v3297, 0.0
        %v3314 = vmax.f32 %v3298, 0.0
        %v3315 = vmax.f32 %v3299, 0.0
        %v3316 = vmax.f32 %v3300, 0.0
        %v3317 = vmax.f32 %v3301, 0.0
        %v3318 = vmax.f32 %v3302, 0.0
        %v3319 = vmax.f32 %v3303, 0.0
        %v3320 = vmax.f32 %v3304, 0.0
        %v3321 = vmax.f32 %v3305, 0.0
        %v3322 = vmax.f32 %v3306, 0.0
        %v3323 = vmax.f32 %v3307, 0.0
        %v3324 = vmax.f32 %v3308, 0.0
        %v3325 = vmax.f32 %v3309, 0.0
        %v3326 = vmax.f32 %v3310, 0.0
        %v3327 = vmax.f32 %v3311, 0.0
        %v3328 = vpack.c.bf16 %v3313, %v3312
        %v3329 = vpack.c.bf16 %v3315, %v3314
        %v3330 = vpack.c.bf16 %v3317, %v3316
        %v3331 = vpack.c.bf16 %v3319, %v3318
        %v3332 = vpack.c.bf16 %v3321, %v3320
        %v3333 = vpack.c.bf16 %v3323, %v3322
        %v3334 = vpack.c.bf16 %v3325, %v3324
        %v3335 = vpack.c.bf16 %v3327, %v3326
        %v3336 = vld [vmem:[#allocation4] sm:$0xf]
        %v3337 = vld [vmem:[#allocation4 + $0x4] sm:$0xf]
        %v3338 = vld [vmem:[#allocation4 + $0x8] sm:$0xf]
        %v3339 = vld [vmem:[#allocation4 + $0xc] sm:$0xf]
        %v3340 = vld [vmem:[#allocation4 + $0x10] sm:$0xf]
        %v3341 = vld [vmem:[#allocation4 + $0x14] sm:$0xf]
        %v3342 = vld [vmem:[#allocation4 + $0x18] sm:$0xf]
        %v3343 = vld [vmem:[#allocation4 + $0x1c] sm:$0xf]
        %v3344 = vld [vmem:[#allocation4 + $0x20] sm:$0xf]
        %v3345 = vld [vmem:[#allocation4 + $0x24] sm:$0xf]
        %v3346 = vld [vmem:[#allocation4 + $0x28] sm:$0xf]
        %v3347 = vld [vmem:[#allocation4 + $0x2c] sm:$0xf]
        %v3348 = vld [vmem:[#allocation4 + $0x30] sm:$0xf]
        %v3349 = vld [vmem:[#allocation4 + $0x34] sm:$0xf]
        %v3350 = vld [vmem:[#allocation4 + $0x38] sm:$0xf]
        %v3351 = vld [vmem:[#allocation4 + $0x3c] sm:$0xf]
        %v3352 = vld [vmem:[%s10] sm:$0x1]
        %v3354 = vlaneseq
        %v3355 = vshrl.u32 %v3354, 7
        %v3356 = vsub.s32 0, %v3355
        %v3357 = vrot.slane %v3352, %v3356
        %v3375 = vunpack.c.l.b16 %v3336
        %v3376 = vunpack.c.l.b16 %v3337
        %v3377 = vunpack.c.l.b16 %v3338
        %v3378 = vunpack.c.l.b16 %v3339
        %v3379 = vunpack.c.l.b16 %v3340
        %v3380 = vunpack.c.l.b16 %v3341
        %v3381 = vunpack.c.l.b16 %v3342
        %v3382 = vunpack.c.l.b16 %v3343
        %v3383 = vunpack.c.l.b16 %v3344
        %v3384 = vunpack.c.l.b16 %v3345
        %v3385 = vunpack.c.l.b16 %v3346
        %v3386 = vunpack.c.l.b16 %v3347
        %v3387 = vunpack.c.l.b16 %v3348
        %v3388 = vunpack.c.l.b16 %v3349
        %v3389 = vunpack.c.l.b16 %v3350
        %v3390 = vunpack.c.l.b16 %v3351
        %v3391 = vpack.c.b16 %v3376, %v3375
        %v3392 = vpack.c.b16 %v3378, %v3377
        %v3393 = vpack.c.b16 %v3380, %v3379
        %v3394 = vpack.c.b16 %v3382, %v3381
        %v3395 = vpack.c.b16 %v3384, %v3383
        %v3396 = vpack.c.b16 %v3386, %v3385
        %v3397 = vpack.c.b16 %v3388, %v3387
        %v3398 = vpack.c.b16 %v3390, %v3389
        %3407 = vmatprep.subr.bf16.mxu0 0
        %3408 = vmatpush1.bf16.msra.mxu0 %v3398
        %3409 = vmatprep.subr.bf16.mxu0 0
        %3410 = vmatpush1.bf16.msra.mxu0 %v3397
        %3411 = vmatprep.subr.bf16.mxu0 0
        %3412 = vmatpush1.bf16.msra.mxu0 %v3396
        %3413 = vmatprep.subr.bf16.mxu0 0
        %3414 = vmatpush1.bf16.msra.mxu0 %v3395
        %3415 = vmatprep.subr.bf16.mxu0 0
        %3416 = vmatpush1.bf16.msra.mxu0 %v3394
        %3417 = vmatprep.subr.bf16.mxu0 0
        %3418 = vmatpush1.bf16.msra.mxu0 %v3393
        %3419 = vmatprep.subr.bf16.mxu0 0
        %3420 = vmatpush1.bf16.msra.mxu0 %v3392
        %3421 = vmatprep.subr.bf16.mxu0 0
        %3422 = vmatpush1.bf16.msra.mxu0 %v3391
        %3423 = vmatprep.subr.bf16.mxu0 0
        %3424 = vmatpush2.bf16.msra.mxu0 0
        %3425 = vmatprep.subr.bf16.mxu0 0
        %3426 = vmatpush2.bf16.msra.mxu0 0
        %3427 = vmatprep.subr.bf16.mxu0 0
        %3428 = vmatpush2.bf16.msra.mxu0 0
        %3429 = vmatprep.subr.bf16.mxu0 0
        %3430 = vmatpush2.bf16.msra.mxu0 0
        %3431 = vmatprep.subr.bf16.mxu0 0
        %3432 = vmatpush2.bf16.msra.mxu0 0
        %3433 = vmatprep.subr.bf16.mxu0 0
        %3434 = vmatpush2.bf16.msra.mxu0 0
        %3435 = vmatprep.subr.bf16.mxu0 0
        %3436 = vmatpush2.bf16.msra.mxu0 0
        %3437 = vmatprep.subr.bf16.mxu0 0
        %3438 = vmatpush2.bf16.msra.mxu0 0
        %3439 = vmatprep.mubr.bf16.mxu0 0
        %3440 = vmatmul.mubr.bf16.gmra.mxu0 %v3328
        %v3441 = vpop.f32.mrf.mxu0
        %v3442 = vadd.f32 %v3357, %v3441
        %v3443 = vpop.f32.mrf.mxu0
        %v3444 = vpop.f32.mrf.mxu0
        %v3445 = vadd.f32 %v3357, %v3444
        %v3446 = vpop.f32.mrf.mxu0
        %3447 = vmatprep.mubr.bf16.mxu0 0
        %3448 = vmatmul.mubr.bf16.gmra.mxu0 %v3329
        %v3449 = vpop.f32.mrf.mxu0
        %v3450 = vadd.f32 %v3357, %v3449
        %v3451 = vpop.f32.mrf.mxu0
        %v3452 = vpop.f32.mrf.mxu0
        %v3453 = vadd.f32 %v3357, %v3452
        %v3454 = vpop.f32.mrf.mxu0
        %3455 = vmatprep.mubr.bf16.mxu0 0
        %3456 = vmatmul.mubr.bf16.gmra.mxu0 %v3330
        %v3457 = vpop.f32.mrf.mxu0
        %v3458 = vadd.f32 %v3357, %v3457
        %v3459 = vpop.f32.mrf.mxu0
        %v3460 = vpop.f32.mrf.mxu0
        %v3461 = vadd.f32 %v3357, %v3460
        %v3462 = vpop.f32.mrf.mxu0
        %3463 = vmatprep.mubr.bf16.mxu0 0
        %3464 = vmatmul.mubr.bf16.gmra.mxu0 %v3331
        %v3465 = vpop.f32.mrf.mxu0
        %v3466 = vadd.f32 %v3357, %v3465
        %v3467 = vpop.f32.mrf.mxu0
        %v3468 = vpop.f32.mrf.mxu0
        %v3469 = vadd.f32 %v3357, %v3468
        %v3470 = vpop.f32.mrf.mxu0
        %3471 = vmatprep.mubr.bf16.mxu0 0
        %3472 = vmatmul.mubr.bf16.gmra.mxu0 %v3332
        %v3473 = vpop.f32.mrf.mxu0
        %v3474 = vadd.f32 %v3357, %v3473
        %v3475 = vpop.f32.mrf.mxu0
        %v3476 = vpop.f32.mrf.mxu0
        %v3477 = vadd.f32 %v3357, %v3476
        %v3478 = vpop.f32.mrf.mxu0
        %3479 = vmatprep.mubr.bf16.mxu0 0
        %3480 = vmatmul.mubr.bf16.gmra.mxu0 %v3333
        %v3481 = vpop.f32.mrf.mxu0
        %v3482 = vadd.f32 %v3357, %v3481
        %v3483 = vpop.f32.mrf.mxu0
        %v3484 = vpop.f32.mrf.mxu0
        %v3485 = vadd.f32 %v3357, %v3484
        %v3486 = vpop.f32.mrf.mxu0
        %3487 = vmatprep.mubr.bf16.mxu0 0
        %3488 = vmatmul.mubr.bf16.gmra.mxu0 %v3334
        %v3489 = vpop.f32.mrf.mxu0
        %v3490 = vadd.f32 %v3357, %v3489
        %v3491 = vpop.f32.mrf.mxu0
        %v3492 = vpop.f32.mrf.mxu0
        %v3493 = vadd.f32 %v3357, %v3492
        %v3494 = vpop.f32.mrf.mxu0
        %3495 = vmatprep.mubr.bf16.mxu0 0
        %3496 = vmatmul.mubr.bf16.gmra.mxu0 %v3335
        %v3497 = vpop.f32.mrf.mxu0
        %v3498 = vadd.f32 %v3357, %v3497
        %v3499 = vpop.f32.mrf.mxu0
        %v3500 = vpop.f32.mrf.mxu0
        %v3501 = vadd.f32 %v3357, %v3500
        %v3502 = vpop.f32.mrf.mxu0
        %3503 = vdwg.mxu0
        %v3504 = vmax.f32 %v3442, 0.0
        %v3505 = vmax.f32 %v3445, 0.0
        %v3506 = vmax.f32 %v3450, 0.0
        %v3507 = vmax.f32 %v3453, 0.0
        %v3508 = vmax.f32 %v3458, 0.0
        %v3509 = vmax.f32 %v3461, 0.0
        %v3510 = vmax.f32 %v3466, 0.0
        %v3511 = vmax.f32 %v3469, 0.0
        %v3512 = vmax.f32 %v3474, 0.0
        %v3513 = vmax.f32 %v3477, 0.0
        %v3514 = vmax.f32 %v3482, 0.0
        %v3515 = vmax.f32 %v3485, 0.0
        %v3516 = vmax.f32 %v3490, 0.0
        %v3517 = vmax.f32 %v3493, 0.0
        %v3518 = vmax.f32 %v3498, 0.0
        %v3519 = vmax.f32 %v3501, 0.0
        %v3520 = vpack.c.bf16 %v3505, %v3504
        %v3521 = vpack.c.bf16 %v3507, %v3506
        %v3522 = vpack.c.bf16 %v3509, %v3508
        %v3523 = vpack.c.bf16 %v3511, %v3510
        %v3524 = vpack.c.bf16 %v3513, %v3512
        %v3525 = vpack.c.bf16 %v3515, %v3514
        %v3526 = vpack.c.bf16 %v3517, %v3516
        %v3527 = vpack.c.bf16 %v3519, %v3518
        %v3528 = vld [vmem:[#allocation6] sm:$0xf]
        %v3529 = vld [vmem:[#allocation6 + $0x4] sm:$0xf]
        %v3530 = vld [vmem:[#allocation6 + $0x8] sm:$0xf]
        %v3531 = vld [vmem:[#allocation6 + $0xc] sm:$0xf]
        %v3532 = vld [vmem:[#allocation6 + $0x10] sm:$0xf]
        %v3533 = vld [vmem:[#allocation6 + $0x14] sm:$0xf]
        %v3534 = vld [vmem:[#allocation6 + $0x18] sm:$0xf]
        %v3535 = vld [vmem:[#allocation6 + $0x1c] sm:$0xf]
        %v3536 = vld [vmem:[#allocation6 + $0x20] sm:$0xf]
        %v3537 = vld [vmem:[#allocation6 + $0x24] sm:$0xf]
        %v3538 = vld [vmem:[#allocation6 + $0x28] sm:$0xf]
        %v3539 = vld [vmem:[#allocation6 + $0x2c] sm:$0xf]
        %v3540 = vld [vmem:[#allocation6 + $0x30] sm:$0xf]
        %v3541 = vld [vmem:[#allocation6 + $0x34] sm:$0xf]
        %v3542 = vld [vmem:[#allocation6 + $0x38] sm:$0xf]
        %v3543 = vld [vmem:[#allocation6 + $0x3c] sm:$0xf]
        %v3544 = vld [vmem:[%s12] sm:$0x1]
        %v3546 = vlaneseq
        %v3547 = vshrl.u32 %v3546, 7
        %v3548 = vsub.s32 0, %v3547
        %v3549 = vrot.slane %v3544, %v3548
        %v3567 = vunpack.c.l.b16 %v3528
        %v3568 = vunpack.c.l.b16 %v3529
        %v3569 = vunpack.c.l.b16 %v3530
        %v3570 = vunpack.c.l.b16 %v3531
        %v3571 = vunpack.c.l.b16 %v3532
        %v3572 = vunpack.c.l.b16 %v3533
        %v3573 = vunpack.c.l.b16 %v3534
        %v3574 = vunpack.c.l.b16 %v3535
        %v3575 = vunpack.c.l.b16 %v3536
        %v3576 = vunpack.c.l.b16 %v3537
        %v3577 = vunpack.c.l.b16 %v3538
        %v3578 = vunpack.c.l.b16 %v3539
        %v3579 = vunpack.c.l.b16 %v3540
        %v3580 = vunpack.c.l.b16 %v3541
        %v3581 = vunpack.c.l.b16 %v3542
        %v3582 = vunpack.c.l.b16 %v3543
        %v3583 = vpack.c.b16 %v3568, %v3567
        %v3584 = vpack.c.b16 %v3570, %v3569
        %v3585 = vpack.c.b16 %v3572, %v3571
        %v3586 = vpack.c.b16 %v3574, %v3573
        %v3587 = vpack.c.b16 %v3576, %v3575
        %v3588 = vpack.c.b16 %v3578, %v3577
        %v3589 = vpack.c.b16 %v3580, %v3579
        %v3590 = vpack.c.b16 %v3582, %v3581
        %3599 = vmatprep.subr.bf16.mxu0 0
        %3600 = vmatpush1.bf16.msra.mxu0 %v3590
        %3601 = vmatprep.subr.bf16.mxu0 0
        %3602 = vmatpush1.bf16.msra.mxu0 %v3589
        %3603 = vmatprep.subr.bf16.mxu0 0
        %3604 = vmatpush1.bf16.msra.mxu0 %v3588
        %3605 = vmatprep.subr.bf16.mxu0 0
        %3606 = vmatpush1.bf16.msra.mxu0 %v3587
        %3607 = vmatprep.subr.bf16.mxu0 0
        %3608 = vmatpush1.bf16.msra.mxu0 %v3586
        %3609 = vmatprep.subr.bf16.mxu0 0
        %3610 = vmatpush1.bf16.msra.mxu0 %v3585
        %3611 = vmatprep.subr.bf16.mxu0 0
        %3612 = vmatpush1.bf16.msra.mxu0 %v3584
        %3613 = vmatprep.subr.bf16.mxu0 0
        %3614 = vmatpush1.bf16.msra.mxu0 %v3583
        %3615 = vmatprep.subr.bf16.mxu0 0
        %3616 = vmatpush2.bf16.msra.mxu0 0
        %3617 = vmatprep.subr.bf16.mxu0 0
        %3618 = vmatpush2.bf16.msra.mxu0 0
        %3619 = vmatprep.subr.bf16.mxu0 0
        %3620 = vmatpush2.bf16.msra.mxu0 0
        %3621 = vmatprep.subr.bf16.mxu0 0
        %3622 = vmatpush2.bf16.msra.mxu0 0
        %3623 = vmatprep.subr.bf16.mxu0 0
        %3624 = vmatpush2.bf16.msra.mxu0 0
        %3625 = vmatprep.subr.bf16.mxu0 0
        %3626 = vmatpush2.bf16.msra.mxu0 0
        %3627 = vmatprep.subr.bf16.mxu0 0
        %3628 = vmatpush2.bf16.msra.mxu0 0
        %3629 = vmatprep.subr.bf16.mxu0 0
        %3630 = vmatpush2.bf16.msra.mxu0 0
        %3631 = vmatprep.mubr.bf16.mxu0 0
        %3632 = vmatmul.mubr.bf16.gmra.mxu0 %v3520
        %v3633 = vpop.f32.mrf.mxu0
        %v3634 = vadd.f32 %v3549, %v3633
        %v3635 = vpop.f32.mrf.mxu0
        %v3636 = vpop.f32.mrf.mxu0
        %v3637 = vadd.f32 %v3549, %v3636
        %v3638 = vpop.f32.mrf.mxu0
        %3639 = vmatprep.mubr.bf16.mxu0 0
        %3640 = vmatmul.mubr.bf16.gmra.mxu0 %v3521
        %v3641 = vpop.f32.mrf.mxu0
        %v3642 = vadd.f32 %v3549, %v3641
        %v3643 = vpop.f32.mrf.mxu0
        %v3644 = vpop.f32.mrf.mxu0
        %v3645 = vadd.f32 %v3549, %v3644
        %v3646 = vpop.f32.mrf.mxu0
        %3647 = vmatprep.mubr.bf16.mxu0 0
        %3648 = vmatmul.mubr.bf16.gmra.mxu0 %v3522
        %v3649 = vpop.f32.mrf.mxu0
        %v3650 = vadd.f32 %v3549, %v3649
        %v3651 = vpop.f32.mrf.mxu0
        %v3652 = vpop.f32.mrf.mxu0
        %v3653 = vadd.f32 %v3549, %v3652
        %v3654 = vpop.f32.mrf.mxu0
        %3655 = vmatprep.mubr.bf16.mxu0 0
        %3656 = vmatmul.mubr.bf16.gmra.mxu0 %v3523
        %v3657 = vpop.f32.mrf.mxu0
        %v3658 = vadd.f32 %v3549, %v3657
        %v3659 = vpop.f32.mrf.mxu0
        %v3660 = vpop.f32.mrf.mxu0
        %v3661 = vadd.f32 %v3549, %v3660
        %v3662 = vpop.f32.mrf.mxu0
        %3663 = vmatprep.mubr.bf16.mxu0 0
        %3664 = vmatmul.mubr.bf16.gmra.mxu0 %v3524
        %v3665 = vpop.f32.mrf.mxu0
        %v3666 = vadd.f32 %v3549, %v3665
        %v3667 = vpop.f32.mrf.mxu0
        %v3668 = vpop.f32.mrf.mxu0
        %v3669 = vadd.f32 %v3549, %v3668
        %v3670 = vpop.f32.mrf.mxu0
        %3671 = vmatprep.mubr.bf16.mxu0 0
        %3672 = vmatmul.mubr.bf16.gmra.mxu0 %v3525
        %v3673 = vpop.f32.mrf.mxu0
        %v3674 = vadd.f32 %v3549, %v3673
        %v3675 = vpop.f32.mrf.mxu0
        %v3676 = vpop.f32.mrf.mxu0
        %v3677 = vadd.f32 %v3549, %v3676
        %v3678 = vpop.f32.mrf.mxu0
        %3679 = vmatprep.mubr.bf16.mxu0 0
        %3680 = vmatmul.mubr.bf16.gmra.mxu0 %v3526
        %v3681 = vpop.f32.mrf.mxu0
        %v3682 = vadd.f32 %v3549, %v3681
        %v3683 = vpop.f32.mrf.mxu0
        %v3684 = vpop.f32.mrf.mxu0
        %v3685 = vadd.f32 %v3549, %v3684
        %v3686 = vpop.f32.mrf.mxu0
        %3687 = vmatprep.mubr.bf16.mxu0 0
        %3688 = vmatmul.mubr.bf16.gmra.mxu0 %v3527
        %v3689 = vpop.f32.mrf.mxu0
        %v3690 = vadd.f32 %v3549, %v3689
        %v3691 = vpop.f32.mrf.mxu0
        %v3692 = vpop.f32.mrf.mxu0
        %v3693 = vadd.f32 %v3549, %v3692
        %v3694 = vpop.f32.mrf.mxu0
        %3695 = vdwg.mxu0
        %3696 = vst [vmem:[%s486] sm:$0xff] %v3634
        %3697 = vst [vmem:[%s486 + $0x8] sm:$0xff] %v3637
        %3698 = vst [vmem:[%s486 + $0x10] sm:$0xff] %v3642
        %3699 = vst [vmem:[%s486 + $0x18] sm:$0xff] %v3645
        %3700 = vst [vmem:[%s486 + $0x20] sm:$0xff] %v3650
        %3701 = vst [vmem:[%s486 + $0x28] sm:$0xff] %v3653
        %3702 = vst [vmem:[%s486 + $0x30] sm:$0xff] %v3658
        %3703 = vst [vmem:[%s486 + $0x38] sm:$0xff] %v3661
        %3704 = vst [vmem:[%s486 + $0x40] sm:$0xff] %v3666
        %3705 = vst [vmem:[%s486 + $0x48] sm:$0xff] %v3669
        %3706 = vst [vmem:[%s486 + $0x50] sm:$0xff] %v3674
        %3707 = vst [vmem:[%s486 + $0x58] sm:$0xff] %v3677
        %3708 = vst [vmem:[%s486 + $0x60] sm:$0xff] %v3682
        %3709 = vst [vmem:[%s486 + $0x68] sm:$0xff] %v3685
        %3710 = vst [vmem:[%s486 + $0x70] sm:$0xff] %v3690
        %3711 = vst [vmem:[%s486 + $0x78] sm:$0xff] %v3693
        %s3712 = smul.u32 16, %s26
        %p3713 = scmp.lt.s32.totalorder %s3712, 31
        %s3714 = scalar_select %p3713, %s3712, 31
        %s3715 = smul.addr %s3714, 8
        %s3716 = scalar_lea.vmem %s13, %s3715
        // Predicated region
        $region85: #{simple_vgg_forward.1} parent=71 // pred_check
          %p3717 = pneg %p322
        $region86: #{simple_vgg_forward.1} parent=71 // pred_check_branch
          %3719 = sbr.rel (%p3717) target = $region88
        $region87: #{simple_vgg_forward.1} parent=71 // pred_region
          %s3720 = smul.u32 16, %s26
        $region88: #{simple_vgg_forward.1} parent=71 // pred_fallthru
          _
      $region72: #{simple_vgg_forward.1} parent=5 // pred_fallthru
        _
      %p3721 = scmp.le.s32.totalorder 2, %s21
      // Predicated region
      $region89: #{simple_vgg_forward.1} parent=5 // pred_check
        %p3722 = pneg %p3721
      $region90: #{simple_vgg_forward.1} parent=5 // pred_check_branch
        %3724 = sbr.rel (%p3722) target = $region92
      $region91: #{simple_vgg_forward.1} parent=5 // pred_region
        %s3725 = ssub.s32 %s21, 2
        // Predicated region
        $region93: #{simple_vgg_forward.1} parent=91 // pred_check
          %p3726 = pneg %p328
        $region94: #{simple_vgg_forward.1} parent=91 // pred_check_branch
          %3728 = sbr.rel (%p3726) target = $region96
        $region95: #{simple_vgg_forward.1} parent=91 // pred_region
          %s3729 = smul.u32 16, %s27
          %p3730 = scmp.lt.s32.totalorder %s3729, 31
          %s3731 = scalar_select %p3730, %s3729, 31
          %s3732 = smul.addr %s3731, 8
          %s3733 = scalar_lea.vmem %s13, %s3732
        $region96: #{simple_vgg_forward.1} parent=91 // pred_fallthru
          _
      $region92: #{simple_vgg_forward.1} parent=5 // pred_fallthru
        _
    $region6: #{simple_vgg_forward.1} parent=1 // loop_footer
      %s25 = sadd.s32 1, %s21
    $region7: #{simple_vgg_forward.1} parent=1 // loop_footer_branch
      %20 = sbr.rel target = $region3
    $region8: #{simple_vgg_forward.1} parent=1 // loop_exit
      _
    %3734 = vsyncpa [#allocation3], 1
    %s3735 = scalar_lea.sflag [#allocation3], 1
    %3736 = vsyncpa %s3735, 1
    %3737 = vsyncpa [#allocation5], 1

</llo_original>
